<compile_context>
chip_gen: v7x
topology: tpu7x:2x2x1
jax: 0.10.0
libtpu: 0.0.40
codegen_flags: <defaults>
</compile_context>

<pallas_src>
import functools
import math

import jax
import jax.numpy as jnp
import numpy as np
from jax.experimental import pallas as pl
from jax.experimental.pallas import tpu as pltpu

BN_EPS = 1e-5                 # torch.nn.BatchNorm2d default
LANE = 128                    # channel padding target (lane width)
_VMEM_LIMIT = 48 * 1024 * 1024  # explicit scoped-VMEM budget (safe on v5e/v6e/v7x)


# ----------------------------- small helpers ---------------------------------
def _rup(x, m):
    return (x + m - 1) // m * m


def _pick_row_tile(ho, wo, target_rows):
    """Largest divisor of `ho` whose tile (th*wo matmul rows) stays under target."""
    best = 1
    for th in range(1, ho + 1):
        if ho % th == 0 and th * wo <= max(target_rows, wo):
            best = th
    return best


def _make_taps(stride):
    """(phase_index, row_off, col_off, ki, kj) for each 3x3 tap (pad=1)."""
    taps = []
    for ki in range(3):
        for kj in range(3):
            taps.append(((ki % stride) * stride + (kj % stride),
                         ki // stride, kj // stride, ki, kj))
    return tuple(taps)


def _shortcut_tap(stride):
    """Phase/offset of the 1x1 strided shortcut conv input inside the phases."""
    p = (1 % stride) * stride + (1 % stride)
    off = (1 - (1 % stride)) // stride
    return (p, off, off)


def _pad_last(x, cp):
    c = x.shape[-1]
    if c == cp:
        return x
    pad = [(0, 0)] * (x.ndim - 1) + [(0, cp - c)]
    return jnp.pad(x, pad)


def _w3x3_mat(w_oihw, cin_p, cout_p):
    w = jnp.transpose(w_oihw, (2, 3, 1, 0))                     # (3,3,Cin,Cout)
    w = jnp.pad(w, ((0, 0), (0, 0),
                    (0, cin_p - w.shape[2]), (0, cout_p - w.shape[3])))
    return w.astype(jnp.bfloat16)


def _w1x1_mat(w_oihw, cin_p, cout_p):
    co, ci = w_oihw.shape[:2]
    w = jnp.transpose(w_oihw.reshape(co, ci), (1, 0))            # (Cin,Cout)
    w = jnp.pad(w, ((0, cin_p - ci), (0, cout_p - co)))
    return w.astype(jnp.bfloat16)


# ----------------------------- Pallas kernels ---------------------------------
def _conv_stats_kernel(*args, n_phase, taps, sc_tap):
    """3x3 conv as 9 shifted-tap MXU matmuls (+ optional fused 1x1 shortcut conv),
    with per-tile per-channel sum / sum-of-squares BN epilogue reductions."""
    phase_refs = args[:n_phase]
    if sc_tap is not None:
        w_ref, wsc_ref, y_ref, st_ref, ysc_ref, stsc_ref = args[n_phase:]
    else:
        w_ref, y_ref, st_ref = args[n_phase:]
    _, th, wo, cout_p = y_ref.shape
    row0 = pl.program_id(1) * th

    def tap(ph, oh, ow):
        t = phase_refs[ph][0, pl.ds(row0 + oh, th), pl.ds(ow, wo), :]
        return t.reshape(th * wo, t.shape[-1])                  # (rows, Cin_p) bf16

    def stats(acc):                                             # (rows, C) -> (1,1,8,C)
        s1 = jnp.sum(acc, axis=0, keepdims=True)                # sublane-axis reduce
        s2 = jnp.sum(acc * acc, axis=0, keepdims=True)
        pad = jnp.zeros((6, acc.shape[-1]), jnp.float32)
        return jnp.concatenate([s1, s2, pad], axis=0).reshape(1, 1, 8, acc.shape[-1])

    acc = jnp.zeros((th * wo, cout_p), jnp.float32)
    for ph, oh, ow, ki, kj in taps:                             # static 9-tap unroll
        acc = acc + jnp.dot(tap(ph, oh, ow), w_ref[ki, kj],
                            preferred_element_type=jnp.float32)
    y_ref[...] = acc.reshape(1, th, wo, cout_p)
    st_ref[...] = stats(acc)

    if sc_tap is not None:                                      # fused 1x1 shortcut conv
        csc = ysc_ref.shape[-1]
        acc_sc = jnp.dot(tap(*sc_tap), wsc_ref[...],
                         preferred_element_type=jnp.float32)
        ysc_ref[...] = acc_sc.reshape(1, th, wo, csc)
        stsc_ref[...] = stats(acc_sc)


def _bn_act_kernel(*args, has_res):
    """out = relu(y * scale + shift [+ res * res_scale + res_shift])."""
    if has_res:
        y_ref, r_ref, s_ref, b_ref, rs_ref, rb_ref, o_ref = args
    else:
        y_ref, s_ref, b_ref, o_ref = args
    y = y_ref[...] * s_ref[...] + b_ref[...]
    if has_res:
        y = y + r_ref[...] * rs_ref[...] + rb_ref[...]
    o_ref[...] = jnp.maximum(y, 0.0).astype(o_ref.dtype)


# --------------------------- pallas_call wrappers ------------------------------
def _conv_pass(phases, w, ho, wo, th, taps, wsc=None, sc_tap=None):
    n = phases[0].shape[0]
    cin_p = phases[0].shape[-1]
    cout_p = w.shape[-1]
    n_t = ho // th
    with_sc = wsc is not None

    args = list(phases) + [w] + ([wsc] if with_sc else [])
    # Phases stay resident per image (constant block over the row-tile axis);
    # the weight slab is resident across the whole grid.
    in_specs = [pl.BlockSpec((1,) + p.shape[1:], lambda i, t: (i, 0, 0, 0))
                for p in phases]
    in_specs.append(pl.BlockSpec(w.shape, lambda i, t: (0, 0, 0, 0)))
    if with_sc:
        in_specs.append(pl.BlockSpec(wsc.shape, lambda i, t: (0, 0)))

    out_shape = [jax.ShapeDtypeStruct((n, ho, wo, cout_p), jnp.float32),
                 jax.ShapeDtypeStruct((n, n_t, 8, cout_p), jnp.float32)]
    out_specs = [pl.BlockSpec((1, th, wo, cout_p), lambda i, t: (i, t, 0, 0)),
                 pl.BlockSpec((1, 1, 8, cout_p), lambda i, t: (i, t, 0, 0))]
    flops = 2 * n * ho * wo * (9 * cin_p) * cout_p
    if with_sc:
        csc_p = wsc.shape[-1]
        out_shape += [jax.ShapeDtypeStruct((n, ho, wo, csc_p), jnp.float32),
                      jax.ShapeDtypeStruct((n, n_t, 8, csc_p), jnp.float32)]
        out_specs += [pl.BlockSpec((1, th, wo, csc_p), lambda i, t: (i, t, 0, 0)),
                      pl.BlockSpec((1, 1, 8, csc_p), lambda i, t: (i, t, 0, 0))]
        flops += 2 * n * ho * wo * cin_p * csc_p
    bytes_accessed = int(sum(a.size * a.dtype.itemsize for a in args)
                         + sum(int(np.prod(s.shape)) * 4 for s in out_shape))

    kernel = functools.partial(_conv_stats_kernel, n_phase=len(phases),
                               taps=taps, sc_tap=sc_tap)
    return pl.pallas_call(
        kernel,
        grid=(n, n_t),
        out_shape=out_shape,
        in_specs=in_specs,
        out_specs=out_specs,
        compiler_params=pltpu.CompilerParams(
            dimension_semantics=("parallel", "parallel"),
            vmem_limit_bytes=_VMEM_LIMIT),
        cost_estimate=pl.CostEstimate(flops=int(flops), transcendentals=0,
                                      bytes_accessed=bytes_accessed),
    )(*args)


def _bn_act(y, scale, shift, th, out_dtype, res=None, res_scale=None, res_shift=None):
    n, ho, wo, cp = y.shape
    n_t = ho // th
    tile = pl.BlockSpec((1, th, wo, cp), lambda i, t: (i, t, 0, 0))
    vec = pl.BlockSpec((1, cp), lambda i, t: (0, 0))
    if res is not None:
        args = [y, res, scale, shift, res_scale, res_shift]
        in_specs = [tile, tile, vec, vec, vec, vec]
    else:
        args = [y, scale, shift]
        in_specs = [tile, vec, vec]
    kernel = functools.partial(_bn_act_kernel, has_res=res is not None)
    return pl.pallas_call(
        kernel,
        grid=(n, n_t),
        out_shape=jax.ShapeDtypeStruct((n, ho, wo, cp), out_dtype),
        in_specs=in_specs,
        out_specs=tile,
        compiler_params=pltpu.CompilerParams(
            dimension_semantics=("parallel", "parallel"),
            vmem_limit_bytes=_VMEM_LIMIT),
    )(*args)


def _bn_scale_shift(stats, gamma_p, beta_p, count):
    """Fold global batch statistics into per-channel scale/shift (tiny (C,) math)."""
    s1 = jnp.sum(stats[:, :, 0, :], axis=(0, 1))
    s2 = jnp.sum(stats[:, :, 1, :], axis=(0, 1))
    mean = s1 / count
    var = jnp.maximum(s2 / count - mean * mean, 0.0)   # biased variance (PyTorch BN)
    scale = gamma_p * jax.lax.rsqrt(var + BN_EPS)
    shift = beta_p - mean * scale
    return scale.reshape(1, -1), shift.reshape(1, -1)


# ------------------------------- forward pass ---------------------------------
@functools.partial(jax.jit, static_argnames=("stride", "row_tile"))
def basic_block_dubn(x_nchw, params, stride, row_tile=512):
    """Forward pass of BasicBlockDuBN (route='M'); NCHW in, NCHW out (f32)."""
    n, cin, h, w_sp = x_nchw.shape
    cmid = params["w1"].shape[0]
    cout = params["w2"].shape[0]
    cin_p, cmid_p, cout_p = _rup(cin, LANE), _rup(cmid, LANE), _rup(cout, LANE)
    has_sc_conv = (stride != 1) or (cin != cout)

    ho = (h + 2 - 3) // stride + 1
    wo = (w_sp + 2 - 3) // stride + 1
    th = _pick_row_tile(ho, wo, row_tile)
    count = n * ho * wo

    x = jnp.transpose(x_nchw, (0, 2, 3, 1))                      # NHWC f32
    # Padded, channel-padded, bf16 activation; decomposed into stride phases so
    # every in-kernel tap slice is a contiguous (stride-1) window.
    xp = jnp.pad(_pad_last(x, cin_p).astype(jnp.bfloat16),
                 ((0, 0), (1, 1), (1, 1), (0, 0)))
    phases1 = [xp[:, pi::stride, pj::stride, :]
               for pi in range(stride) for pj in range(stride)]

    w1 = _w3x3_mat(params["w1"], cin_p, cmid_p)
    w2 = _w3x3_mat(params["w2"], cmid_p, cout_p)

    # ---- conv1 (3x3, stride) [+ fused 1x1 shortcut conv] + BN partial stats
    if has_sc_conv:
        wsc = _w1x1_mat(params["wsc"], cin_p, cout_p)
        y1, st1, ysc, stsc = _conv_pass(phases1, w1, ho, wo, th, _make_taps(stride),
                                        wsc=wsc, sc_tap=_shortcut_tap(stride))
    else:
        y1, st1 = _conv_pass(phases1, w1, ho, wo, th, _make_taps(stride))

    s1, b1 = _bn_scale_shift(st1, _pad_last(params["g1"], cmid_p),
                             _pad_last(params["b1"], cmid_p), count)
    out1 = _bn_act(y1, s1, b1, th, jnp.bfloat16)                 # bn1 + relu (bf16 feed)

    # ---- conv2 (3x3, stride 1) + BN partial stats
    out1_p = jnp.pad(out1, ((0, 0), (1, 1), (1, 1), (0, 0)))
    y2, st2 = _conv_pass([out1_p], w2, ho, wo, th, _make_taps(1))
    s2, b2 = _bn_scale_shift(st2, _pad_last(params["g2"], cout_p),
                             _pad_last(params["b2"], cout_p), count)

    # ---- residual path: BN folded into the final epilogue (raw shortcut conv
    #      output, or identity with scale=1/shift=0).
    if has_sc_conv:
        ssc, bsc = _bn_scale_shift(stsc, _pad_last(params["gsc"], cout_p),
                                   _pad_last(params["bsc"], cout_p), count)
        res = ysc
    else:
        res = _pad_last(x, cout_p)                               # ho == h, wo == w here
        ssc = jnp.ones((1, cout_p), jnp.float32)
        bsc = jnp.zeros((1, cout_p), jnp.float32)

    # ---- bn2 + residual(+its BN) + relu, fused in one lane-dense kernel
    out = _bn_act(y2, s2, b2, th, jnp.float32,
                  res=res, res_scale=ssc, res_shift=bsc)
    return jnp.transpose(out[:, :, :, :cout], (0, 3, 1, 2))


# ------------------------- deterministic parameters ----------------------------
def init_params(key, in_planes, mid_planes, out_planes, stride):
    ks = jax.random.split(key, 9)

    def conv_w(k, co, ci, kh, kw):
        fan = ci * kh * kw
        return jax.random.normal(k, (co, ci, kh, kw), jnp.float32) / math.sqrt(fan)

    p = {
        "w1": conv_w(ks[0], mid_planes, in_planes, 3, 3),
        "g1": 1.0 + 0.1 * jax.random.normal(ks[1], (mid_planes,), jnp.float32),
        "b1": 0.1 * jax.random.normal(ks[2], (mid_planes,), jnp.float32),
        "w2": conv_w(ks[3], out_planes, mid_planes, 3, 3),
        "g2": 1.0 + 0.1 * jax.random.normal(ks[4], (out_planes,), jnp.float32),
        "b2": 0.1 * jax.random.normal(ks[5], (out_planes,), jnp.float32),
    }
    if stride != 1 or in_planes != out_planes:
        p["wsc"] = conv_w(ks[6], out_planes, in_planes, 1, 1)
        p["gsc"] = 1.0 + 0.1 * jax.random.normal(ks[7], (out_planes,), jnp.float32)
        p["bsc"] = 0.1 * jax.random.normal(ks[8], (out_planes,), jnp.float32)
    return p


# ----------------------------- pure-JAX reference ------------------------------
def _reference(x, params, stride, in_planes, out_planes, match_bf16=True):
    """Module semantics; optionally rounds conv operands to bf16 to match the
    kernel's MXU dtype (accumulation stays f32, BN/affine stay f32)."""
    cast = (lambda a: a.astype(jnp.bfloat16)) if match_bf16 else (lambda a: a)

    def conv(x, w, s, pad):
        return jax.lax.conv_general_dilated(
            cast(x), cast(w), (s, s), [(pad, pad), (pad, pad)],
            dimension_numbers=("NCHW", "OIHW", "NCHW"),
            preferred_element_type=jnp.float32)

    def bn(x, g, b):
        m = jnp.mean(x, axis=(0, 2, 3), keepdims=True)
        v = jnp.mean(jnp.square(x - m), axis=(0, 2, 3), keepdims=True)
        return ((x - m) * jax.lax.rsqrt(v + BN_EPS) * g.reshape(1, -1, 1, 1)
                + b.reshape(1, -1, 1, 1))

    out = jax.nn.relu(bn(conv(x, params["w1"], stride, 1), params["g1"], params["b1"]))
    out = bn(conv(out, params["w2"], 1, 1), params["g2"], params["b2"])
    if stride != 1 or in_planes != out_planes:
        sc = bn(conv(x, params["wsc"], stride, 0), params["gsc"], params["bsc"])
    else:
        sc = x
    return jax.nn.relu(out + sc)


if __name__ == "__main__":
    key = jax.random.PRNGKey(0)
    k1, k2, k3, k4 = jax.random.split(key, 4)

    # Case 1: strided block with a 1x1-conv shortcut (all three DualBNs active);
    # small row tile forces multiple row-tiles per image so the partial-stat
    # (sum / sum-of-squares) BN path is exercised across grid steps.
    n, cin, h, w, cmid, cout, stride = 2, 4, 16, 16, 8, 8, 2
    x = jax.random.normal(k1, (n, cin, h, w), jnp.float32)
    params = init_params(k2, cin, cmid, cout, stride)
    out = jax.block_until_ready(basic_block_dubn(x, params, stride=stride, row_tile=32))
    ref = jax.block_until_ready(_reference(x, params, stride, cin, cout))
    np.testing.assert_allclose(np.asarray(out), np.asarray(ref), rtol=5e-3, atol=5e-3)

    # Case 2: stride-1 identity-shortcut block.
    n, cin, h, w, cmid, cout, stride = 2, 8, 8, 8, 8, 8, 1
    x = jax.random.normal(k3, (n, cin, h, w), jnp.float32)
    params = init_params(k4, cin, cmid, cout, stride)
    out = jax.block_until_ready(basic_block_dubn(x, params, stride=stride))
    ref = jax.block_until_ready(_reference(x, params, stride, cin, cout))
    np.testing.assert_allclose(np.asarray(out), np.asarray(ref), rtol=5e-3, atol=5e-3)

    # TODO(synk): BatchNorm running-stat (momentum) buffer updates are a
    # training-time side effect that does not affect this forward output; not modeled.
    print("KERNEL_OK")
</pallas_src>

<mosaic_0001>
module attributes {stable_mosaic.version = 11 : i64} {
  func.func @_bn_act_kernel(%arg0: i32, %arg1: i32, %arg2: memref<1x4x8x128xf32, #tpu.memory_space<vmem>>, %arg3: memref<1x128xf32, #tpu.memory_space<vmem>>, %arg4: memref<1x128xf32, #tpu.memory_space<vmem>>, %arg5: memref<1x4x8x128xbf16, #tpu.memory_space<vmem>>) attributes {dimension_semantics = [#tpu.dimension_semantics<parallel>, #tpu.dimension_semantics<parallel>], iteration_bounds = array<i64: 2, 2>, scalar_prefetch = 0 : i64, scratch_operands = 0 : i64, tpu.core_type = #tpu.core_type<tc>, window_params = [{transform_indices = @transform_0, window_bounds = array<i64: 1, 4, 8, 128>}, {pipeline_mode = #tpu.pipeline_mode<synchronous>, transform_indices = @transform_1, window_bounds = array<i64: 1, 128>}, {pipeline_mode = #tpu.pipeline_mode<synchronous>, transform_indices = @transform_2, window_bounds = array<i64: 1, 128>}, {transform_indices = @transform_3, window_bounds = array<i64: 1, 4, 8, 128>}]} {
    %c0 = arith.constant 0 : index
    %c0_0 = arith.constant 0 : index
    %c0_1 = arith.constant 0 : index
    %c0_2 = arith.constant 0 : index
    %0 = vector.load %arg2[%c0, %c0_0, %c0_1, %c0_2] : memref<1x4x8x128xf32, #tpu.memory_space<vmem>>, vector<1x4x8x128xf32>
    %c0_3 = arith.constant 0 : index
    %c0_4 = arith.constant 0 : index
    %1 = vector.load %arg3[%c0_3, %c0_4] : memref<1x128xf32, #tpu.memory_space<vmem>>, vector<1x128xf32>
    %2 = vector.shape_cast %1 : vector<1x128xf32> to vector<1x1x1x128xf32>
    %3 = vector.broadcast %2 : vector<1x1x1x128xf32> to vector<1x4x8x128xf32>
    %4 = arith.mulf %0, %3 : vector<1x4x8x128xf32>
    %c0_5 = arith.constant 0 : index
    %c0_6 = arith.constant 0 : index
    %5 = vector.load %arg4[%c0_5, %c0_6] : memref<1x128xf32, #tpu.memory_space<vmem>>, vector<1x128xf32>
    %6 = vector.shape_cast %5 : vector<1x128xf32> to vector<1x1x1x128xf32>
    %7 = vector.broadcast %6 : vector<1x1x1x128xf32> to vector<1x4x8x128xf32>
    %8 = arith.addf %4, %7 : vector<1x4x8x128xf32>
    %cst = arith.constant 0.000000e+00 : f32
    %9 = vector.broadcast %cst : f32 to vector<1x4x8x128xf32>
    %10 = arith.maximumf %8, %9 : vector<1x4x8x128xf32>
    %11 = arith.truncf %10 : vector<1x4x8x128xf32> to vector<1x4x8x128xbf16>
    %c0_7 = arith.constant 0 : index
    %c0_8 = arith.constant 0 : index
    %c0_9 = arith.constant 0 : index
    %c0_10 = arith.constant 0 : index
    %12 = vector.load %arg5[%c0_7, %c0_8, %c0_9, %c0_10] : memref<1x4x8x128xbf16, #tpu.memory_space<vmem>>, vector<1x4x8x128xbf16>
    tpu.vector_store %arg5[%c0_7, %c0_8, %c0_9, %c0_10], %11 {strides = array<i32>} : memref<1x4x8x128xbf16, #tpu.memory_space<vmem>>, vector<1x4x8x128xbf16>,
    return
  }
  func.func @transform_0(%arg0: i32, %arg1: i32) -> (i32, i32, i32, i32) {
    %c0_i32 = arith.constant 0 : i32
    %c0_i32_0 = arith.constant 0 : i32
    %c0_i32_1 = arith.constant 0 : i32
    return %arg0, %arg1, %c0_i32, %c0_i32_0 : i32, i32, i32, i32
  }
  func.func @transform_1(%arg0: i32, %arg1: i32) -> (i32, i32) {
    %c0_i32 = arith.constant 0 : i32
    %c0_i32_0 = arith.constant 0 : i32
    %c0_i32_1 = arith.constant 0 : i32
    return %c0_i32, %c0_i32_0 : i32, i32
  }
  func.func @transform_2(%arg0: i32, %arg1: i32) -> (i32, i32) {
    %c0_i32 = arith.constant 0 : i32
    %c0_i32_0 = arith.constant 0 : i32
    %c0_i32_1 = arith.constant 0 : i32
    return %c0_i32, %c0_i32_0 : i32, i32
  }
  func.func @transform_3(%arg0: i32, %arg1: i32) -> (i32, i32, i32, i32) {
    %c0_i32 = arith.constant 0 : i32
    %c0_i32_0 = arith.constant 0 : i32
    %c0_i32_1 = arith.constant 0 : i32
    return %arg0, %arg1, %c0_i32, %c0_i32_0 : i32, i32, i32, i32
  }
}

module attributes {stable_mosaic.version = 11 : i64} {
  func.func @_conv_stats_kernel(%arg0: i32, %arg1: i32, %arg2: memref<1x9x9x128xbf16, #tpu.memory_space<vmem>>, %arg3: memref<1x9x9x128xbf16, #tpu.memory_space<vmem>>, %arg4: memref<1x9x9x128xbf16, #tpu.memory_space<vmem>>, %arg5: memref<1x9x9x128xbf16, #tpu.memory_space<vmem>>, %arg6: memref<3x3x128x128xbf16, #tpu.memory_space<vmem>>, %arg7: memref<128x128xbf16, #tpu.memory_space<vmem>>, %arg8: memref<1x4x8x128xf32, #tpu.memory_space<vmem>>, %arg9: memref<1x1x8x128xf32, #tpu.memory_space<vmem>>, %arg10: memref<1x4x8x128xf32, #tpu.memory_space<vmem>>, %arg11: memref<1x1x8x128xf32, #tpu.memory_space<vmem>>) attributes {dimension_semantics = [#tpu.dimension_semantics<parallel>, #tpu.dimension_semantics<parallel>], iteration_bounds = array<i64: 2, 2>, scalar_prefetch = 0 : i64, scratch_operands = 0 : i64, tpu.core_type = #tpu.core_type<tc>, window_params = [{transform_indices = @transform_0, window_bounds = array<i64: 1, 9, 9, 128>}, {transform_indices = @transform_1, window_bounds = array<i64: 1, 9, 9, 128>}, {transform_indices = @transform_2, window_bounds = array<i64: 1, 9, 9, 128>}, {transform_indices = @transform_3, window_bounds = array<i64: 1, 9, 9, 128>}, {pipeline_mode = #tpu.pipeline_mode<synchronous>, transform_indices = @transform_4, window_bounds = array<i64: 3, 3, 128, 128>}, {pipeline_mode = #tpu.pipeline_mode<synchronous>, transform_indices = @transform_5, window_bounds = array<i64: 128, 128>}, {transform_indices = @transform_6, window_bounds = array<i64: 1, 4, 8, 128>}, {transform_indices = @transform_7, window_bounds = array<i64: 1, 1, 8, 128>}, {transform_indices = @transform_8, window_bounds = array<i64: 1, 4, 8, 128>}, {transform_indices = @transform_9, window_bounds = array<i64: 1, 1, 8, 128>}]} {
    %c4_i32 = arith.constant 4 : i32
    %0 = arith.muli %arg1, %c4_i32 : i32
    %cst = arith.constant 0.000000e+00 : f32
    %1 = vector.broadcast %cst : f32 to vector<32x128xf32>
    %c0_i32 = arith.constant 0 : i32
    %2 = arith.addi %0, %c0_i32 : i32
    %c0 = arith.constant 0 : index
    %3 = arith.index_cast %2 : i32 to index
    %c0_0 = arith.constant 0 : index
    %c0_1 = arith.constant 0 : index
    %4 = vector.load %arg2[%c0, %3, %c0_0, %c0_1] : memref<1x9x9x128xbf16, #tpu.memory_space<vmem>>, vector<1x4x8x128xbf16>
    %5 = vector.shape_cast %4 : vector<1x4x8x128xbf16> to vector<4x8x128xbf16>
    %6 = vector.shape_cast %5 : vector<4x8x128xbf16> to vector<32x128xbf16>
    %c0_2 = arith.constant 0 : index
    %c0_3 = arith.constant 0 : index
    %c0_4 = arith.constant 0 : index
    %c0_5 = arith.constant 0 : index
    %7 = vector.load %arg6[%c0_2, %c0_3, %c0_4, %c0_5] : memref<3x3x128x128xbf16, #tpu.memory_space<vmem>>, vector<1x1x128x128xbf16>
    %8 = vector.shape_cast %7 : vector<1x1x128x128xbf16> to vector<128x128xbf16>
    %cst_6 = arith.constant dense<0.000000e+00> : vector<32x128xf32>
    %9 = tpu.matmul %6, %8, %cst_6 {dimension_numbers = #tpu.dot_dimension_numbers<[1], [0], [0], [1], [0, 0, 1, 1], [], []>} : vector<32x128xbf16>, vector<128x128xbf16>, vector<32x128xf32> -> vector<32x128xf32>
    %10 = arith.addf %1, %9 : vector<32x128xf32>
    %c0_i32_7 = arith.constant 0 : i32
    %11 = arith.addi %0, %c0_i32_7 : i32
    %c0_8 = arith.constant 0 : index
    %12 = arith.index_cast %11 : i32 to index
    %c0_9 = arith.constant 0 : index
    %c0_10 = arith.constant 0 : index
    %13 = vector.load %arg3[%c0_8, %12, %c0_9, %c0_10] : memref<1x9x9x128xbf16, #tpu.memory_space<vmem>>, vector<1x4x8x128xbf16>
    %14 = vector.shape_cast %13 : vector<1x4x8x128xbf16> to vector<4x8x128xbf16>
    %15 = vector.shape_cast %14 : vector<4x8x128xbf16> to vector<32x128xbf16>
    %c0_11 = arith.constant 0 : index
    %c1 = arith.constant 1 : index
    %c0_12 = arith.constant 0 : index
    %c0_13 = arith.constant 0 : index
    %16 = vector.load %arg6[%c0_11, %c1, %c0_12, %c0_13] : memref<3x3x128x128xbf16, #tpu.memory_space<vmem>>, vector<1x1x128x128xbf16>
    %17 = vector.shape_cast %16 : vector<1x1x128x128xbf16> to vector<128x128xbf16>
    %cst_14 = arith.constant dense<0.000000e+00> : vector<32x128xf32>
    %18 = tpu.matmul %15, %17, %cst_14 {dimension_numbers = #tpu.dot_dimension_numbers<[1], [0], [0], [1], [0, 0, 1, 1], [], []>} : vector<32x128xbf16>, vector<128x128xbf16>, vector<32x128xf32> -> vector<32x128xf32>
    %19 = arith.addf %10, %18 : vector<32x128xf32>
    %c0_i32_15 = arith.constant 0 : i32
    %20 = arith.addi %0, %c0_i32_15 : i32
    %c0_16 = arith.constant 0 : index
    %21 = arith.index_cast %20 : i32 to index
    %c1_17 = arith.constant 1 : index
    %c0_18 = arith.constant 0 : index
    %22 = vector.load %arg2[%c0_16, %21, %c1_17, %c0_18] : memref<1x9x9x128xbf16, #tpu.memory_space<vmem>>, vector<1x4x8x128xbf16>
    %23 = vector.shape_cast %22 : vector<1x4x8x128xbf16> to vector<4x8x128xbf16>
    %24 = vector.shape_cast %23 : vector<4x8x128xbf16> to vector<32x128xbf16>
    %c0_19 = arith.constant 0 : index
    %c2 = arith.constant 2 : index
    %c0_20 = arith.constant 0 : index
    %c0_21 = arith.constant 0 : index
    %25 = vector.load %arg6[%c0_19, %c2, %c0_20, %c0_21] : memref<3x3x128x128xbf16, #tpu.memory_space<vmem>>, vector<1x1x128x128xbf16>
    %26 = vector.shape_cast %25 : vector<1x1x128x128xbf16> to vector<128x128xbf16>
    %cst_22 = arith.constant dense<0.000000e+00> : vector<32x128xf32>
    %27 = tpu.matmul %24, %26, %cst_22 {dimension_numbers = #tpu.dot_dimension_numbers<[1], [0], [0], [1], [0, 0, 1, 1], [], []>} : vector<32x128xbf16>, vector<128x128xbf16>, vector<32x128xf32> -> vector<32x128xf32>
    %28 = arith.addf %19, %27 : vector<32x128xf32>
    %c0_i32_23 = arith.constant 0 : i32
    %29 = arith.addi %0, %c0_i32_23 : i32
    %c0_24 = arith.constant 0 : index
    %30 = arith.index_cast %29 : i32 to index
    %c0_25 = arith.constant 0 : index
    %c0_26 = arith.constant 0 : index
    %31 = vector.load %arg4[%c0_24, %30, %c0_25, %c0_26] : memref<1x9x9x128xbf16, #tpu.memory_space<vmem>>, vector<1x4x8x128xbf16>
    %32 = vector.shape_cast %31 : vector<1x4x8x128xbf16> to vector<4x8x128xbf16>
    %33 = vector.shape_cast %32 : vector<4x8x128xbf16> to vector<32x128xbf16>
    %c1_27 = arith.constant 1 : index
    %c0_28 = arith.constant 0 : index
    %c0_29 = arith.constant 0 : index
    %c0_30 = arith.constant 0 : index
    %34 = vector.load %arg6[%c1_27, %c0_28, %c0_29, %c0_30] : memref<3x3x128x128xbf16, #tpu.memory_space<vmem>>, vector<1x1x128x128xbf16>
    %35 = vector.shape_cast %34 : vector<1x1x128x128xbf16> to vector<128x128xbf16>
    %cst_31 = arith.constant dense<0.000000e+00> : vector<32x128xf32>
    %36 = tpu.matmul %33, %35, %cst_31 {dimension_numbers = #tpu.dot_dimension_numbers<[1], [0], [0], [1], [0, 0, 1, 1], [], []>} : vector<32x128xbf16>, vector<128x128xbf16>, vector<32x128xf32> -> vector<32x128xf32>
    %37 = arith.addf %28, %36 : vector<32x128xf32>
    %c0_i32_32 = arith.constant 0 : i32
    %38 = arith.addi %0, %c0_i32_32 : i32
    %c0_33 = arith.constant 0 : index
    %39 = arith.index_cast %38 : i32 to index
    %c0_34 = arith.constant 0 : index
    %c0_35 = arith.constant 0 : index
    %40 = vector.load %arg5[%c0_33, %39, %c0_34, %c0_35] : memref<1x9x9x128xbf16, #tpu.memory_space<vmem>>, vector<1x4x8x128xbf16>
    %41 = vector.shape_cast %40 : vector<1x4x8x128xbf16> to vector<4x8x128xbf16>
    %42 = vector.shape_cast %41 : vector<4x8x128xbf16> to vector<32x128xbf16>
    %c1_36 = arith.constant 1 : index
    %c1_37 = arith.constant 1 : index
    %c0_38 = arith.constant 0 : index
    %c0_39 = arith.constant 0 : index
    %43 = vector.load %arg6[%c1_36, %c1_37, %c0_38, %c0_39] : memref<3x3x128x128xbf16, #tpu.memory_space<vmem>>, vector<1x1x128x128xbf16>
    %44 = vector.shape_cast %43 : vector<1x1x128x128xbf16> to vector<128x128xbf16>
    %cst_40 = arith.constant dense<0.000000e+00> : vector<32x128xf32>
    %45 = tpu.matmul %42, %44, %cst_40 {dimension_numbers = #tpu.dot_dimension_numbers<[1], [0], [0], [1], [0, 0, 1, 1], [], []>} : vector<32x128xbf16>, vector<128x128xbf16>, vector<32x128xf32> -> vector<32x128xf32>
    %46 = arith.addf %37, %45 : vector<32x128xf32>
    %c0_i32_41 = arith.constant 0 : i32
    %47 = arith.addi %0, %c0_i32_41 : i32
    %c0_42 = arith.constant 0 : index
    %48 = arith.index_cast %47 : i32 to index
    %c1_43 = arith.constant 1 : index
    %c0_44 = arith.constant 0 : index
    %49 = vector.load %arg4[%c0_42, %48, %c1_43, %c0_44] : memref<1x9x9x128xbf16, #tpu.memory_space<vmem>>, vector<1x4x8x128xbf16>
    %50 = vector.shape_cast %49 : vector<1x4x8x128xbf16> to vector<4x8x128xbf16>
    %51 = vector.shape_cast %50 : vector<4x8x128xbf16> to vector<32x128xbf16>
    %c1_45 = arith.constant 1 : index
    %c2_46 = arith.constant 2 : index
    %c0_47 = arith.constant 0 : index
    %c0_48 = arith.constant 0 : index
    %52 = vector.load %arg6[%c1_45, %c2_46, %c0_47, %c0_48] : memref<3x3x128x128xbf16, #tpu.memory_space<vmem>>, vector<1x1x128x128xbf16>
    %53 = vector.shape_cast %52 : vector<1x1x128x128xbf16> to vector<128x128xbf16>
    %cst_49 = arith.constant dense<0.000000e+00> : vector<32x128xf32>
    %54 = tpu.matmul %51, %53, %cst_49 {dimension_numbers = #tpu.dot_dimension_numbers<[1], [0], [0], [1], [0, 0, 1, 1], [], []>} : vector<32x128xbf16>, vector<128x128xbf16>, vector<32x128xf32> -> vector<32x128xf32>
    %55 = arith.addf %46, %54 : vector<32x128xf32>
    %c1_i32 = arith.constant 1 : i32
    %56 = arith.addi %0, %c1_i32 : i32
    %c0_50 = arith.constant 0 : index
    %57 = arith.index_cast %56 : i32 to index
    %c0_51 = arith.constant 0 : index
    %c0_52 = arith.constant 0 : index
    %58 = vector.load %arg2[%c0_50, %57, %c0_51, %c0_52] : memref<1x9x9x128xbf16, #tpu.memory_space<vmem>>, vector<1x4x8x128xbf16>
    %59 = vector.shape_cast %58 : vector<1x4x8x128xbf16> to vector<4x8x128xbf16>
    %60 = vector.shape_cast %59 : vector<4x8x128xbf16> to vector<32x128xbf16>
    %c2_53 = arith.constant 2 : index
    %c0_54 = arith.constant 0 : index
    %c0_55 = arith.constant 0 : index
    %c0_56 = arith.constant 0 : index
    %61 = vector.load %arg6[%c2_53, %c0_54, %c0_55, %c0_56] : memref<3x3x128x128xbf16, #tpu.memory_space<vmem>>, vector<1x1x128x128xbf16>
    %62 = vector.shape_cast %61 : vector<1x1x128x128xbf16> to vector<128x128xbf16>
    %cst_57 = arith.constant dense<0.000000e+00> : vector<32x128xf32>
    %63 = tpu.matmul %60, %62, %cst_57 {dimension_numbers = #tpu.dot_dimension_numbers<[1], [0], [0], [1], [0, 0, 1, 1], [], []>} : vector<32x128xbf16>, vector<128x128xbf16>, vector<32x128xf32> -> vector<32x128xf32>
    %64 = arith.addf %55, %63 : vector<32x128xf32>
    %c1_i32_58 = arith.constant 1 : i32
    %65 = arith.addi %0, %c1_i32_58 : i32
    %c0_59 = arith.constant 0 : index
    %66 = arith.index_cast %65 : i32 to index
    %c0_60 = arith.constant 0 : index
    %c0_61 = arith.constant 0 : index
    %67 = vector.load %arg3[%c0_59, %66, %c0_60, %c0_61] : memref<1x9x9x128xbf16, #tpu.memory_space<vmem>>, vector<1x4x8x128xbf16>
    %68 = vector.shape_cast %67 : vector<1x4x8x128xbf16> to vector<4x8x128xbf16>
    %69 = vector.shape_cast %68 : vector<4x8x128xbf16> to vector<32x128xbf16>
    %c2_62 = arith.constant 2 : index
    %c1_63 = arith.constant 1 : index
    %c0_64 = arith.constant 0 : index
    %c0_65 = arith.constant 0 : index
    %70 = vector.load %arg6[%c2_62, %c1_63, %c0_64, %c0_65] : memref<3x3x128x128xbf16, #tpu.memory_space<vmem>>, vector<1x1x128x128xbf16>
    %71 = vector.shape_cast %70 : vector<1x1x128x128xbf16> to vector<128x128xbf16>
    %cst_66 = arith.constant dense<0.000000e+00> : vector<32x128xf32>
    %72 = tpu.matmul %69, %71, %cst_66 {dimension_numbers = #tpu.dot_dimension_numbers<[1], [0], [0], [1], [0, 0, 1, 1], [], []>} : vector<32x128xbf16>, vector<128x128xbf16>, vector<32x128xf32> -> vector<32x128xf32>
    %73 = arith.addf %64, %72 : vector<32x128xf32>
    %c1_i32_67 = arith.constant 1 : i32
    %74 = arith.addi %0, %c1_i32_67 : i32
    %c0_68 = arith.constant 0 : index
    %75 = arith.index_cast %74 : i32 to index
    %c1_69 = arith.constant 1 : index
    %c0_70 = arith.constant 0 : index
    %76 = vector.load %arg2[%c0_68, %75, %c1_69, %c0_70] : memref<1x9x9x128xbf16, #tpu.memory_space<vmem>>, vector<1x4x8x128xbf16>
    %77 = vector.shape_cast %76 : vector<1x4x8x128xbf16> to vector<4x8x128xbf16>
    %78 = vector.shape_cast %77 : vector<4x8x128xbf16> to vector<32x128xbf16>
    %c2_71 = arith.constant 2 : index
    %c2_72 = arith.constant 2 : index
    %c0_73 = arith.constant 0 : index
    %c0_74 = arith.constant 0 : index
    %79 = vector.load %arg6[%c2_71, %c2_72, %c0_73, %c0_74] : memref<3x3x128x128xbf16, #tpu.memory_space<vmem>>, vector<1x1x128x128xbf16>
    %80 = vector.shape_cast %79 : vector<1x1x128x128xbf16> to vector<128x128xbf16>
    %cst_75 = arith.constant dense<0.000000e+00> : vector<32x128xf32>
    %81 = tpu.matmul %78, %80, %cst_75 {dimension_numbers = #tpu.dot_dimension_numbers<[1], [0], [0], [1], [0, 0, 1, 1], [], []>} : vector<32x128xbf16>, vector<128x128xbf16>, vector<32x128xf32> -> vector<32x128xf32>
    %82 = arith.addf %73, %81 : vector<32x128xf32>
    %83 = vector.shape_cast %82 : vector<32x128xf32> to vector<1x4x8x128xf32>
    %c0_76 = arith.constant 0 : index
    %c0_77 = arith.constant 0 : index
    %c0_78 = arith.constant 0 : index
    %c0_79 = arith.constant 0 : index
    %84 = vector.load %arg8[%c0_76, %c0_77, %c0_78, %c0_79] : memref<1x4x8x128xf32, #tpu.memory_space<vmem>>, vector<1x4x8x128xf32>
    tpu.vector_store %arg8[%c0_76, %c0_77, %c0_78, %c0_79], %83 {strides = array<i32>} : memref<1x4x8x128xf32, #tpu.memory_space<vmem>>, vector<1x4x8x128xf32>,
    %cst_80 = arith.constant dense<0.000000e+00> : vector<128xf32>
    %85 = vector.multi_reduction <add>, %82, %cst_80 [0] : vector<32x128xf32> to vector<128xf32>
    %86 = vector.shape_cast %85 : vector<128xf32> to vector<1x128xf32>
    %87 = arith.mulf %82, %82 : vector<32x128xf32>
    %cst_81 = arith.constant dense<0.000000e+00> : vector<128xf32>
    %88 = vector.multi_reduction <add>, %87, %cst_81 [0] : vector<32x128xf32> to vector<128xf32>
    %89 = vector.shape_cast %88 : vector<128xf32> to vector<1x128xf32>
    %cst_82 = arith.constant 0.000000e+00 : f32
    %90 = vector.broadcast %cst_82 : f32 to vector<6x128xf32>
    %91 = tpu.concatenate %86, %89, %90 in 0 : vector<1x128xf32>, vector<1x128xf32>, vector<6x128xf32> -> vector<8x128xf32>
    %92 = vector.shape_cast %91 : vector<8x128xf32> to vector<1x1x8x128xf32>
    %c0_83 = arith.constant 0 : index
    %c0_84 = arith.constant 0 : index
    %c0_85 = arith.constant 0 : index
    %c0_86 = arith.constant 0 : index
    %93 = vector.load %arg9[%c0_83, %c0_84, %c0_85, %c0_86] : memref<1x1x8x128xf32, #tpu.memory_space<vmem>>, vector<1x1x8x128xf32>
    tpu.vector_store %arg9[%c0_83, %c0_84, %c0_85, %c0_86], %92 {strides = array<i32>} : memref<1x1x8x128xf32, #tpu.memory_space<vmem>>, vector<1x1x8x128xf32>,
    %c0_i32_87 = arith.constant 0 : i32
    %94 = arith.addi %0, %c0_i32_87 : i32
    %c0_88 = arith.constant 0 : index
    %95 = arith.index_cast %94 : i32 to index
    %c0_89 = arith.constant 0 : index
    %c0_90 = arith.constant 0 : index
    %96 = vector.load %arg5[%c0_88, %95, %c0_89, %c0_90] : memref<1x9x9x128xbf16, #tpu.memory_space<vmem>>, vector<1x4x8x128xbf16>
    %97 = vector.shape_cast %96 : vector<1x4x8x128xbf16> to vector<4x8x128xbf16>
    %98 = vector.shape_cast %97 : vector<4x8x128xbf16> to vector<32x128xbf16>
    %c0_91 = arith.constant 0 : index
    %c0_92 = arith.constant 0 : index
    %99 = vector.load %arg7[%c0_91, %c0_92] : memref<128x128xbf16, #tpu.memory_space<vmem>>, vector<128x128xbf16>
    %cst_93 = arith.constant dense<0.000000e+00> : vector<32x128xf32>
    %100 = tpu.matmul %98, %99, %cst_93 {dimension_numbers = #tpu.dot_dimension_numbers<[1], [0], [0], [1], [0, 0, 1, 1], [], []>} : vector<32x128xbf16>, vector<128x128xbf16>, vector<32x128xf32> -> vector<32x128xf32>
    %101 = vector.shape_cast %100 : vector<32x128xf32> to vector<1x4x8x128xf32>
    %c0_94 = arith.constant 0 : index
    %c0_95 = arith.constant 0 : index
    %c0_96 = arith.constant 0 : index
    %c0_97 = arith.constant 0 : index
    %102 = vector.load %arg10[%c0_94, %c0_95, %c0_96, %c0_97] : memref<1x4x8x128xf32, #tpu.memory_space<vmem>>, vector<1x4x8x128xf32>
    tpu.vector_store %arg10[%c0_94, %c0_95, %c0_96, %c0_97], %101 {strides = array<i32>} : memref<1x4x8x128xf32, #tpu.memory_space<vmem>>, vector<1x4x8x128xf32>,
    %cst_98 = arith.constant dense<0.000000e+00> : vector<128xf32>
    %103 = vector.multi_reduction <add>, %100, %cst_98 [0] : vector<32x128xf32> to vector<128xf32>
    %104 = vector.shape_cast %103 : vector<128xf32> to vector<1x128xf32>
    %105 = arith.mulf %100, %100 : vector<32x128xf32>
    %cst_99 = arith.constant dense<0.000000e+00> : vector<128xf32>
    %106 = vector.multi_reduction <add>, %105, %cst_99 [0] : vector<32x128xf32> to vector<128xf32>
    %107 = vector.shape_cast %106 : vector<128xf32> to vector<1x128xf32>
    %cst_100 = arith.constant 0.000000e+00 : f32
    %108 = vector.broadcast %cst_100 : f32 to vector<6x128xf32>
    %109 = tpu.concatenate %104, %107, %108 in 0 : vector<1x128xf32>, vector<1x128xf32>, vector<6x128xf32> -> vector<8x128xf32>
    %110 = vector.shape_cast %109 : vector<8x128xf32> to vector<1x1x8x128xf32>
    %c0_101 = arith.constant 0 : index
    %c0_102 = arith.constant 0 : index
    %c0_103 = arith.constant 0 : index
    %c0_104 = arith.constant 0 : index
    %111 = vector.load %arg11[%c0_101, %c0_102, %c0_103, %c0_104] : memref<1x1x8x128xf32, #tpu.memory_space<vmem>>, vector<1x1x8x128xf32>
    tpu.vector_store %arg11[%c0_101, %c0_102, %c0_103, %c0_104], %110 {strides = array<i32>} : memref<1x1x8x128xf32, #tpu.memory_space<vmem>>, vector<1x1x8x128xf32>,
    return
  }
  func.func @transform_0(%arg0: i32, %arg1: i32) -> (i32, i32, i32, i32) {
    %c0_i32 = arith.constant 0 : i32
    %c0_i32_0 = arith.constant 0 : i32
    %c0_i32_1 = arith.constant 0 : i32
    %c0_i32_2 = arith.constant 0 : i32
    return %arg0, %c0_i32, %c0_i32_0, %c0_i32_1 : i32, i32, i32, i32
  }
  func.func @transform_1(%arg0: i32, %arg1: i32) -> (i32, i32, i32, i32) {
    %c0_i32 = arith.constant 0 : i32
    %c0_i32_0 = arith.constant 0 : i32
    %c0_i32_1 = arith.constant 0 : i32
    %c0_i32_2 = arith.constant 0 : i32
    return %arg0, %c0_i32, %c0_i32_0, %c0_i32_1 : i32, i32, i32, i32
  }
  func.func @transform_2(%arg0: i32, %arg1: i32) -> (i32, i32, i32, i32) {
    %c0_i32 = arith.constant 0 : i32
    %c0_i32_0 = arith.constant 0 : i32
    %c0_i32_1 = arith.constant 0 : i32
    %c0_i32_2 = arith.constant 0 : i32
    return %arg0, %c0_i32, %c0_i32_0, %c0_i32_1 : i32, i32, i32, i32
  }
  func.func @transform_3(%arg0: i32, %arg1: i32) -> (i32, i32, i32, i32) {
    %c0_i32 = arith.constant 0 : i32
    %c0_i32_0 = arith.constant 0 : i32
    %c0_i32_1 = arith.constant 0 : i32
    %c0_i32_2 = arith.constant 0 : i32
    return %arg0, %c0_i32, %c0_i32_0, %c0_i32_1 : i32, i32, i32, i32
  }
  func.func @transform_4(%arg0: i32, %arg1: i32) -> (i32, i32, i32, i32) {
    %c0_i32 = arith.constant 0 : i32
    %c0_i32_0 = arith.constant 0 : i32
    %c0_i32_1 = arith.constant 0 : i32
    %c0_i32_2 = arith.constant 0 : i32
    %c0_i32_3 = arith.constant 0 : i32
    return %c0_i32, %c0_i32_0, %c0_i32_1, %c0_i32_2 : i32, i32, i32, i32
  }
  func.func @transform_5(%arg0: i32, %arg1: i32) -> (i32, i32) {
    %c0_i32 = arith.constant 0 : i32
    %c0_i32_0 = arith.constant 0 : i32
    %c0_i32_1 = arith.constant 0 : i32
    return %c0_i32, %c0_i32_0 : i32, i32
  }
  func.func @transform_6(%arg0: i32, %arg1: i32) -> (i32, i32, i32, i32) {
    %c0_i32 = arith.constant 0 : i32
    %c0_i32_0 = arith.constant 0 : i32
    %c0_i32_1 = arith.constant 0 : i32
    return %arg0, %arg1, %c0_i32, %c0_i32_0 : i32, i32, i32, i32
  }
  func.func @transform_7(%arg0: i32, %arg1: i32) -> (i32, i32, i32, i32) {
    %c0_i32 = arith.constant 0 : i32
    %c0_i32_0 = arith.constant 0 : i32
    %c0_i32_1 = arith.constant 0 : i32
    return %arg0, %arg1, %c0_i32, %c0_i32_0 : i32, i32, i32, i32
  }
  func.func @transform_8(%arg0: i32, %arg1: i32) -> (i32, i32, i32, i32) {
    %c0_i32 = arith.constant 0 : i32
    %c0_i32_0 = arith.constant 0 : i32
    %c0_i32_1 = arith.constant 0 : i32
    return %arg0, %arg1, %c0_i32, %c0_i32_0 : i32, i32, i32, i32
  }
  func.func @transform_9(%arg0: i32, %arg1: i32) -> (i32, i32, i32, i32) {
    %c0_i32 = arith.constant 0 : i32
    %c0_i32_0 = arith.constant 0 : i32
    %c0_i32_1 = arith.constant 0 : i32
    return %arg0, %arg1, %c0_i32, %c0_i32_0 : i32, i32, i32, i32
  }
}

module attributes {stable_mosaic.version = 11 : i64} {
  func.func @_conv_stats_kernel(%arg0: i32, %arg1: i32, %arg2: memref<1x10x10x128xbf16, #tpu.memory_space<vmem>>, %arg3: memref<3x3x128x128xbf16, #tpu.memory_space<vmem>>, %arg4: memref<1x4x8x128xf32, #tpu.memory_space<vmem>>, %arg5: memref<1x1x8x128xf32, #tpu.memory_space<vmem>>) attributes {dimension_semantics = [#tpu.dimension_semantics<parallel>, #tpu.dimension_semantics<parallel>], iteration_bounds = array<i64: 2, 2>, scalar_prefetch = 0 : i64, scratch_operands = 0 : i64, tpu.core_type = #tpu.core_type<tc>, window_params = [{transform_indices = @transform_0, window_bounds = array<i64: 1, 10, 10, 128>}, {pipeline_mode = #tpu.pipeline_mode<synchronous>, transform_indices = @transform_1, window_bounds = array<i64: 3, 3, 128, 128>}, {transform_indices = @transform_2, window_bounds = array<i64: 1, 4, 8, 128>}, {transform_indices = @transform_3, window_bounds = array<i64: 1, 1, 8, 128>}]} {
    %c4_i32 = arith.constant 4 : i32
    %0 = arith.muli %arg1, %c4_i32 : i32
    %cst = arith.constant 0.000000e+00 : f32
    %1 = vector.broadcast %cst : f32 to vector<32x128xf32>
    %c0_i32 = arith.constant 0 : i32
    %2 = arith.addi %0, %c0_i32 : i32
    %c0 = arith.constant 0 : index
    %3 = arith.index_cast %2 : i32 to index
    %c0_0 = arith.constant 0 : index
    %c0_1 = arith.constant 0 : index
    %4 = vector.load %arg2[%c0, %3, %c0_0, %c0_1] : memref<1x10x10x128xbf16, #tpu.memory_space<vmem>>, vector<1x4x8x128xbf16>
    %5 = vector.shape_cast %4 : vector<1x4x8x128xbf16> to vector<4x8x128xbf16>
    %6 = vector.shape_cast %5 : vector<4x8x128xbf16> to vector<32x128xbf16>
    %c0_2 = arith.constant 0 : index
    %c0_3 = arith.constant 0 : index
    %c0_4 = arith.constant 0 : index
    %c0_5 = arith.constant 0 : index
    %7 = vector.load %arg3[%c0_2, %c0_3, %c0_4, %c0_5] : memref<3x3x128x128xbf16, #tpu.memory_space<vmem>>, vector<1x1x128x128xbf16>
    %8 = vector.shape_cast %7 : vector<1x1x128x128xbf16> to vector<128x128xbf16>
    %cst_6 = arith.constant dense<0.000000e+00> : vector<32x128xf32>
    %9 = tpu.matmul %6, %8, %cst_6 {dimension_numbers = #tpu.dot_dimension_numbers<[1], [0], [0], [1], [0, 0, 1, 1], [], []>} : vector<32x128xbf16>, vector<128x128xbf16>, vector<32x128xf32> -> vector<32x128xf32>
    %10 = arith.addf %1, %9 : vector<32x128xf32>
    %c0_i32_7 = arith.constant 0 : i32
    %11 = arith.addi %0, %c0_i32_7 : i32
    %c0_8 = arith.constant 0 : index
    %12 = arith.index_cast %11 : i32 to index
    %c1 = arith.constant 1 : index
    %c0_9 = arith.constant 0 : index
    %13 = vector.load %arg2[%c0_8, %12, %c1, %c0_9] : memref<1x10x10x128xbf16, #tpu.memory_space<vmem>>, vector<1x4x8x128xbf16>
    %14 = vector.shape_cast %13 : vector<1x4x8x128xbf16> to vector<4x8x128xbf16>
    %15 = vector.shape_cast %14 : vector<4x8x128xbf16> to vector<32x128xbf16>
    %c0_10 = arith.constant 0 : index
    %c1_11 = arith.constant 1 : index
    %c0_12 = arith.constant 0 : index
    %c0_13 = arith.constant 0 : index
    %16 = vector.load %arg3[%c0_10, %c1_11, %c0_12, %c0_13] : memref<3x3x128x128xbf16, #tpu.memory_space<vmem>>, vector<1x1x128x128xbf16>
    %17 = vector.shape_cast %16 : vector<1x1x128x128xbf16> to vector<128x128xbf16>
    %cst_14 = arith.constant dense<0.000000e+00> : vector<32x128xf32>
    %18 = tpu.matmul %15, %17, %cst_14 {dimension_numbers = #tpu.dot_dimension_numbers<[1], [0], [0], [1], [0, 0, 1, 1], [], []>} : vector<32x128xbf16>, vector<128x128xbf16>, vector<32x128xf32> -> vector<32x128xf32>
    %19 = arith.addf %10, %18 : vector<32x128xf32>
    %c0_i32_15 = arith.constant 0 : i32
    %20 = arith.addi %0, %c0_i32_15 : i32
    %c0_16 = arith.constant 0 : index
    %21 = arith.index_cast %20 : i32 to index
    %c2 = arith.constant 2 : index
    %c0_17 = arith.constant 0 : index
    %22 = vector.load %arg2[%c0_16, %21, %c2, %c0_17] : memref<1x10x10x128xbf16, #tpu.memory_space<vmem>>, vector<1x4x8x128xbf16>
    %23 = vector.shape_cast %22 : vector<1x4x8x128xbf16> to vector<4x8x128xbf16>
    %24 = vector.shape_cast %23 : vector<4x8x128xbf16> to vector<32x128xbf16>
    %c0_18 = arith.constant 0 : index
    %c2_19 = arith.constant 2 : index
    %c0_20 = arith.constant 0 : index
    %c0_21 = arith.constant 0 : index
    %25 = vector.load %arg3[%c0_18, %c2_19, %c0_20, %c0_21] : memref<3x3x128x128xbf16, #tpu.memory_space<vmem>>, vector<1x1x128x128xbf16>
    %26 = vector.shape_cast %25 : vector<1x1x128x128xbf16> to vector<128x128xbf16>
    %cst_22 = arith.constant dense<0.000000e+00> : vector<32x128xf32>
    %27 = tpu.matmul %24, %26, %cst_22 {dimension_numbers = #tpu.dot_dimension_numbers<[1], [0], [0], [1], [0, 0, 1, 1], [], []>} : vector<32x128xbf16>, vector<128x128xbf16>, vector<32x128xf32> -> vector<32x128xf32>
    %28 = arith.addf %19, %27 : vector<32x128xf32>
    %c1_i32 = arith.constant 1 : i32
    %29 = arith.addi %0, %c1_i32 : i32
    %c0_23 = arith.constant 0 : index
    %30 = arith.index_cast %29 : i32 to index
    %c0_24 = arith.constant 0 : index
    %c0_25 = arith.constant 0 : index
    %31 = vector.load %arg2[%c0_23, %30, %c0_24, %c0_25] : memref<1x10x10x128xbf16, #tpu.memory_space<vmem>>, vector<1x4x8x128xbf16>
    %32 = vector.shape_cast %31 : vector<1x4x8x128xbf16> to vector<4x8x128xbf16>
    %33 = vector.shape_cast %32 : vector<4x8x128xbf16> to vector<32x128xbf16>
    %c1_26 = arith.constant 1 : index
    %c0_27 = arith.constant 0 : index
    %c0_28 = arith.constant 0 : index
    %c0_29 = arith.constant 0 : index
    %34 = vector.load %arg3[%c1_26, %c0_27, %c0_28, %c0_29] : memref<3x3x128x128xbf16, #tpu.memory_space<vmem>>, vector<1x1x128x128xbf16>
    %35 = vector.shape_cast %34 : vector<1x1x128x128xbf16> to vector<128x128xbf16>
    %cst_30 = arith.constant dense<0.000000e+00> : vector<32x128xf32>
    %36 = tpu.matmul %33, %35, %cst_30 {dimension_numbers = #tpu.dot_dimension_numbers<[1], [0], [0], [1], [0, 0, 1, 1], [], []>} : vector<32x128xbf16>, vector<128x128xbf16>, vector<32x128xf32> -> vector<32x128xf32>
    %37 = arith.addf %28, %36 : vector<32x128xf32>
    %c1_i32_31 = arith.constant 1 : i32
    %38 = arith.addi %0, %c1_i32_31 : i32
    %c0_32 = arith.constant 0 : index
    %39 = arith.index_cast %38 : i32 to index
    %c1_33 = arith.constant 1 : index
    %c0_34 = arith.constant 0 : index
    %40 = vector.load %arg2[%c0_32, %39, %c1_33, %c0_34] : memref<1x10x10x128xbf16, #tpu.memory_space<vmem>>, vector<1x4x8x128xbf16>
    %41 = vector.shape_cast %40 : vector<1x4x8x128xbf16> to vector<4x8x128xbf16>
    %42 = vector.shape_cast %41 : vector<4x8x128xbf16> to vector<32x128xbf16>
    %c1_35 = arith.constant 1 : index
    %c1_36 = arith.constant 1 : index
    %c0_37 = arith.constant 0 : index
    %c0_38 = arith.constant 0 : index
    %43 = vector.load %arg3[%c1_35, %c1_36, %c0_37, %c0_38] : memref<3x3x128x128xbf16, #tpu.memory_space<vmem>>, vector<1x1x128x128xbf16>
    %44 = vector.shape_cast %43 : vector<1x1x128x128xbf16> to vector<128x128xbf16>
    %cst_39 = arith.constant dense<0.000000e+00> : vector<32x128xf32>
    %45 = tpu.matmul %42, %44, %cst_39 {dimension_numbers = #tpu.dot_dimension_numbers<[1], [0], [0], [1], [0, 0, 1, 1], [], []>} : vector<32x128xbf16>, vector<128x128xbf16>, vector<32x128xf32> -> vector<32x128xf32>
    %46 = arith.addf %37, %45 : vector<32x128xf32>
    %c1_i32_40 = arith.constant 1 : i32
    %47 = arith.addi %0, %c1_i32_40 : i32
    %c0_41 = arith.constant 0 : index
    %48 = arith.index_cast %47 : i32 to index
    %c2_42 = arith.constant 2 : index
    %c0_43 = arith.constant 0 : index
    %49 = vector.load %arg2[%c0_41, %48, %c2_42, %c0_43] : memref<1x10x10x128xbf16, #tpu.memory_space<vmem>>, vector<1x4x8x128xbf16>
    %50 = vector.shape_cast %49 : vector<1x4x8x128xbf16> to vector<4x8x128xbf16>
    %51 = vector.shape_cast %50 : vector<4x8x128xbf16> to vector<32x128xbf16>
    %c1_44 = arith.constant 1 : index
    %c2_45 = arith.constant 2 : index
    %c0_46 = arith.constant 0 : index
    %c0_47 = arith.constant 0 : index
    %52 = vector.load %arg3[%c1_44, %c2_45, %c0_46, %c0_47] : memref<3x3x128x128xbf16, #tpu.memory_space<vmem>>, vector<1x1x128x128xbf16>
    %53 = vector.shape_cast %52 : vector<1x1x128x128xbf16> to vector<128x128xbf16>
    %cst_48 = arith.constant dense<0.000000e+00> : vector<32x128xf32>
    %54 = tpu.matmul %51, %53, %cst_48 {dimension_numbers = #tpu.dot_dimension_numbers<[1], [0], [0], [1], [0, 0, 1, 1], [], []>} : vector<32x128xbf16>, vector<128x128xbf16>, vector<32x128xf32> -> vector<32x128xf32>
    %55 = arith.addf %46, %54 : vector<32x128xf32>
    %c2_i32 = arith.constant 2 : i32
    %56 = arith.addi %0, %c2_i32 : i32
    %c0_49 = arith.constant 0 : index
    %57 = arith.index_cast %56 : i32 to index
    %c0_50 = arith.constant 0 : index
    %c0_51 = arith.constant 0 : index
    %58 = vector.load %arg2[%c0_49, %57, %c0_50, %c0_51] : memref<1x10x10x128xbf16, #tpu.memory_space<vmem>>, vector<1x4x8x128xbf16>
    %59 = vector.shape_cast %58 : vector<1x4x8x128xbf16> to vector<4x8x128xbf16>
    %60 = vector.shape_cast %59 : vector<4x8x128xbf16> to vector<32x128xbf16>
    %c2_52 = arith.constant 2 : index
    %c0_53 = arith.constant 0 : index
    %c0_54 = arith.constant 0 : index
    %c0_55 = arith.constant 0 : index
    %61 = vector.load %arg3[%c2_52, %c0_53, %c0_54, %c0_55] : memref<3x3x128x128xbf16, #tpu.memory_space<vmem>>, vector<1x1x128x128xbf16>
    %62 = vector.shape_cast %61 : vector<1x1x128x128xbf16> to vector<128x128xbf16>
    %cst_56 = arith.constant dense<0.000000e+00> : vector<32x128xf32>
    %63 = tpu.matmul %60, %62, %cst_56 {dimension_numbers = #tpu.dot_dimension_numbers<[1], [0], [0], [1], [0, 0, 1, 1], [], []>} : vector<32x128xbf16>, vector<128x128xbf16>, vector<32x128xf32> -> vector<32x128xf32>
    %64 = arith.addf %55, %63 : vector<32x128xf32>
    %c2_i32_57 = arith.constant 2 : i32
    %65 = arith.addi %0, %c2_i32_57 : i32
    %c0_58 = arith.constant 0 : index
    %66 = arith.index_cast %65 : i32 to index
    %c1_59 = arith.constant 1 : index
    %c0_60 = arith.constant 0 : index
    %67 = vector.load %arg2[%c0_58, %66, %c1_59, %c0_60] : memref<1x10x10x128xbf16, #tpu.memory_space<vmem>>, vector<1x4x8x128xbf16>
    %68 = vector.shape_cast %67 : vector<1x4x8x128xbf16> to vector<4x8x128xbf16>
    %69 = vector.shape_cast %68 : vector<4x8x128xbf16> to vector<32x128xbf16>
    %c2_61 = arith.constant 2 : index
    %c1_62 = arith.constant 1 : index
    %c0_63 = arith.constant 0 : index
    %c0_64 = arith.constant 0 : index
    %70 = vector.load %arg3[%c2_61, %c1_62, %c0_63, %c0_64] : memref<3x3x128x128xbf16, #tpu.memory_space<vmem>>, vector<1x1x128x128xbf16>
    %71 = vector.shape_cast %70 : vector<1x1x128x128xbf16> to vector<128x128xbf16>
    %cst_65 = arith.constant dense<0.000000e+00> : vector<32x128xf32>
    %72 = tpu.matmul %69, %71, %cst_65 {dimension_numbers = #tpu.dot_dimension_numbers<[1], [0], [0], [1], [0, 0, 1, 1], [], []>} : vector<32x128xbf16>, vector<128x128xbf16>, vector<32x128xf32> -> vector<32x128xf32>
    %73 = arith.addf %64, %72 : vector<32x128xf32>
    %c2_i32_66 = arith.constant 2 : i32
    %74 = arith.addi %0, %c2_i32_66 : i32
    %c0_67 = arith.constant 0 : index
    %75 = arith.index_cast %74 : i32 to index
    %c2_68 = arith.constant 2 : index
    %c0_69 = arith.constant 0 : index
    %76 = vector.load %arg2[%c0_67, %75, %c2_68, %c0_69] : memref<1x10x10x128xbf16, #tpu.memory_space<vmem>>, vector<1x4x8x128xbf16>
    %77 = vector.shape_cast %76 : vector<1x4x8x128xbf16> to vector<4x8x128xbf16>
    %78 = vector.shape_cast %77 : vector<4x8x128xbf16> to vector<32x128xbf16>
    %c2_70 = arith.constant 2 : index
    %c2_71 = arith.constant 2 : index
    %c0_72 = arith.constant 0 : index
    %c0_73 = arith.constant 0 : index
    %79 = vector.load %arg3[%c2_70, %c2_71, %c0_72, %c0_73] : memref<3x3x128x128xbf16, #tpu.memory_space<vmem>>, vector<1x1x128x128xbf16>
    %80 = vector.shape_cast %79 : vector<1x1x128x128xbf16> to vector<128x128xbf16>
    %cst_74 = arith.constant dense<0.000000e+00> : vector<32x128xf32>
    %81 = tpu.matmul %78, %80, %cst_74 {dimension_numbers = #tpu.dot_dimension_numbers<[1], [0], [0], [1], [0, 0, 1, 1], [], []>} : vector<32x128xbf16>, vector<128x128xbf16>, vector<32x128xf32> -> vector<32x128xf32>
    %82 = arith.addf %73, %81 : vector<32x128xf32>
    %83 = vector.shape_cast %82 : vector<32x128xf32> to vector<1x4x8x128xf32>
    %c0_75 = arith.constant 0 : index
    %c0_76 = arith.constant 0 : index
    %c0_77 = arith.constant 0 : index
    %c0_78 = arith.constant 0 : index
    %84 = vector.load %arg4[%c0_75, %c0_76, %c0_77, %c0_78] : memref<1x4x8x128xf32, #tpu.memory_space<vmem>>, vector<1x4x8x128xf32>
    tpu.vector_store %arg4[%c0_75, %c0_76, %c0_77, %c0_78], %83 {strides = array<i32>} : memref<1x4x8x128xf32, #tpu.memory_space<vmem>>, vector<1x4x8x128xf32>,
    %cst_79 = arith.constant dense<0.000000e+00> : vector<128xf32>
    %85 = vector.multi_reduction <add>, %82, %cst_79 [0] : vector<32x128xf32> to vector<128xf32>
    %86 = vector.shape_cast %85 : vector<128xf32> to vector<1x128xf32>
    %87 = arith.mulf %82, %82 : vector<32x128xf32>
    %cst_80 = arith.constant dense<0.000000e+00> : vector<128xf32>
    %88 = vector.multi_reduction <add>, %87, %cst_80 [0] : vector<32x128xf32> to vector<128xf32>
    %89 = vector.shape_cast %88 : vector<128xf32> to vector<1x128xf32>
    %cst_81 = arith.constant 0.000000e+00 : f32
    %90 = vector.broadcast %cst_81 : f32 to vector<6x128xf32>
    %91 = tpu.concatenate %86, %89, %90 in 0 : vector<1x128xf32>, vector<1x128xf32>, vector<6x128xf32> -> vector<8x128xf32>
    %92 = vector.shape_cast %91 : vector<8x128xf32> to vector<1x1x8x128xf32>
    %c0_82 = arith.constant 0 : index
    %c0_83 = arith.constant 0 : index
    %c0_84 = arith.constant 0 : index
    %c0_85 = arith.constant 0 : index
    %93 = vector.load %arg5[%c0_82, %c0_83, %c0_84, %c0_85] : memref<1x1x8x128xf32, #tpu.memory_space<vmem>>, vector<1x1x8x128xf32>
    tpu.vector_store %arg5[%c0_82, %c0_83, %c0_84, %c0_85], %92 {strides = array<i32>} : memref<1x1x8x128xf32, #tpu.memory_space<vmem>>, vector<1x1x8x128xf32>,
    return
  }
  func.func @transform_0(%arg0: i32, %arg1: i32) -> (i32, i32, i32, i32) {
    %c0_i32 = arith.constant 0 : i32
    %c0_i32_0 = arith.constant 0 : i32
    %c0_i32_1 = arith.constant 0 : i32
    %c0_i32_2 = arith.constant 0 : i32
    return %arg0, %c0_i32, %c0_i32_0, %c0_i32_1 : i32, i32, i32, i32
  }
  func.func @transform_1(%arg0: i32, %arg1: i32) -> (i32, i32, i32, i32) {
    %c0_i32 = arith.constant 0 : i32
    %c0_i32_0 = arith.constant 0 : i32
    %c0_i32_1 = arith.constant 0 : i32
    %c0_i32_2 = arith.constant 0 : i32
    %c0_i32_3 = arith.constant 0 : i32
    return %c0_i32, %c0_i32_0, %c0_i32_1, %c0_i32_2 : i32, i32, i32, i32
  }
  func.func @transform_2(%arg0: i32, %arg1: i32) -> (i32, i32, i32, i32) {
    %c0_i32 = arith.constant 0 : i32
    %c0_i32_0 = arith.constant 0 : i32
    %c0_i32_1 = arith.constant 0 : i32
    return %arg0, %arg1, %c0_i32, %c0_i32_0 : i32, i32, i32, i32
  }
  func.func @transform_3(%arg0: i32, %arg1: i32) -> (i32, i32, i32, i32) {
    %c0_i32 = arith.constant 0 : i32
    %c0_i32_0 = arith.constant 0 : i32
    %c0_i32_1 = arith.constant 0 : i32
    return %arg0, %arg1, %c0_i32, %c0_i32_0 : i32, i32, i32, i32
  }
}

module attributes {stable_mosaic.version = 11 : i64} {
  func.func @_bn_act_kernel(%arg0: i32, %arg1: i32, %arg2: memref<1x4x8x128xf32, #tpu.memory_space<vmem>>, %arg3: memref<1x4x8x128xf32, #tpu.memory_space<vmem>>, %arg4: memref<1x128xf32, #tpu.memory_space<vmem>>, %arg5: memref<1x128xf32, #tpu.memory_space<vmem>>, %arg6: memref<1x128xf32, #tpu.memory_space<vmem>>, %arg7: memref<1x128xf32, #tpu.memory_space<vmem>>, %arg8: memref<1x4x8x128xf32, #tpu.memory_space<vmem>>) attributes {dimension_semantics = [#tpu.dimension_semantics<parallel>, #tpu.dimension_semantics<parallel>], iteration_bounds = array<i64: 2, 2>, scalar_prefetch = 0 : i64, scratch_operands = 0 : i64, tpu.core_type = #tpu.core_type<tc>, window_params = [{transform_indices = @transform_0, window_bounds = array<i64: 1, 4, 8, 128>}, {transform_indices = @transform_1, window_bounds = array<i64: 1, 4, 8, 128>}, {pipeline_mode = #tpu.pipeline_mode<synchronous>, transform_indices = @transform_2, window_bounds = array<i64: 1, 128>}, {pipeline_mode = #tpu.pipeline_mode<synchronous>, transform_indices = @transform_3, window_bounds = array<i64: 1, 128>}, {pipeline_mode = #tpu.pipeline_mode<synchronous>, transform_indices = @transform_4, window_bounds = array<i64: 1, 128>}, {pipeline_mode = #tpu.pipeline_mode<synchronous>, transform_indices = @transform_5, window_bounds = array<i64: 1, 128>}, {transform_indices = @transform_6, window_bounds = array<i64: 1, 4, 8, 128>}]} {
    %c0 = arith.constant 0 : index
    %c0_0 = arith.constant 0 : index
    %c0_1 = arith.constant 0 : index
    %c0_2 = arith.constant 0 : index
    %0 = vector.load %arg2[%c0, %c0_0, %c0_1, %c0_2] : memref<1x4x8x128xf32, #tpu.memory_space<vmem>>, vector<1x4x8x128xf32>
    %c0_3 = arith.constant 0 : index
    %c0_4 = arith.constant 0 : index
    %1 = vector.load %arg4[%c0_3, %c0_4] : memref<1x128xf32, #tpu.memory_space<vmem>>, vector<1x128xf32>
    %2 = vector.shape_cast %1 : vector<1x128xf32> to vector<1x1x1x128xf32>
    %3 = vector.broadcast %2 : vector<1x1x1x128xf32> to vector<1x4x8x128xf32>
    %4 = arith.mulf %0, %3 : vector<1x4x8x128xf32>
    %c0_5 = arith.constant 0 : index
    %c0_6 = arith.constant 0 : index
    %5 = vector.load %arg5[%c0_5, %c0_6] : memref<1x128xf32, #tpu.memory_space<vmem>>, vector<1x128xf32>
    %6 = vector.shape_cast %5 : vector<1x128xf32> to vector<1x1x1x128xf32>
    %7 = vector.broadcast %6 : vector<1x1x1x128xf32> to vector<1x4x8x128xf32>
    %8 = arith.addf %4, %7 : vector<1x4x8x128xf32>
    %c0_7 = arith.constant 0 : index
    %c0_8 = arith.constant 0 : index
    %c0_9 = arith.constant 0 : index
    %c0_10 = arith.constant 0 : index
    %9 = vector.load %arg3[%c0_7, %c0_8, %c0_9, %c0_10] : memref<1x4x8x128xf32, #tpu.memory_space<vmem>>, vector<1x4x8x128xf32>
    %c0_11 = arith.constant 0 : index
    %c0_12 = arith.constant 0 : index
    %10 = vector.load %arg6[%c0_11, %c0_12] : memref<1x128xf32, #tpu.memory_space<vmem>>, vector<1x128xf32>
    %11 = vector.shape_cast %10 : vector<1x128xf32> to vector<1x1x1x128xf32>
    %12 = vector.broadcast %11 : vector<1x1x1x128xf32> to vector<1x4x8x128xf32>
    %13 = arith.mulf %9, %12 : vector<1x4x8x128xf32>
    %14 = arith.addf %8, %13 : vector<1x4x8x128xf32>
    %c0_13 = arith.constant 0 : index
    %c0_14 = arith.constant 0 : index
    %15 = vector.load %arg7[%c0_13, %c0_14] : memref<1x128xf32, #tpu.memory_space<vmem>>, vector<1x128xf32>
    %16 = vector.shape_cast %15 : vector<1x128xf32> to vector<1x1x1x128xf32>
    %17 = vector.broadcast %16 : vector<1x1x1x128xf32> to vector<1x4x8x128xf32>
    %18 = arith.addf %14, %17 : vector<1x4x8x128xf32>
    %cst = arith.constant 0.000000e+00 : f32
    %19 = vector.broadcast %cst : f32 to vector<1x4x8x128xf32>
    %20 = arith.maximumf %18, %19 : vector<1x4x8x128xf32>
    %c0_15 = arith.constant 0 : index
    %c0_16 = arith.constant 0 : index
    %c0_17 = arith.constant 0 : index
    %c0_18 = arith.constant 0 : index
    %21 = vector.load %arg8[%c0_15, %c0_16, %c0_17, %c0_18] : memref<1x4x8x128xf32, #tpu.memory_space<vmem>>, vector<1x4x8x128xf32>
    tpu.vector_store %arg8[%c0_15, %c0_16, %c0_17, %c0_18], %20 {strides = array<i32>} : memref<1x4x8x128xf32, #tpu.memory_space<vmem>>, vector<1x4x8x128xf32>,
    return
  }
  func.func @transform_0(%arg0: i32, %arg1: i32) -> (i32, i32, i32, i32) {
    %c0_i32 = arith.constant 0 : i32
    %c0_i32_0 = arith.constant 0 : i32
    %c0_i32_1 = arith.constant 0 : i32
    return %arg0, %arg1, %c0_i32, %c0_i32_0 : i32, i32, i32, i32
  }
  func.func @transform_1(%arg0: i32, %arg1: i32) -> (i32, i32, i32, i32) {
    %c0_i32 = arith.constant 0 : i32
    %c0_i32_0 = arith.constant 0 : i32
    %c0_i32_1 = arith.constant 0 : i32
    return %arg0, %arg1, %c0_i32, %c0_i32_0 : i32, i32, i32, i32
  }
  func.func @transform_2(%arg0: i32, %arg1: i32) -> (i32, i32) {
    %c0_i32 = arith.constant 0 : i32
    %c0_i32_0 = arith.constant 0 : i32
    %c0_i32_1 = arith.constant 0 : i32
    return %c0_i32, %c0_i32_0 : i32, i32
  }
  func.func @transform_3(%arg0: i32, %arg1: i32) -> (i32, i32) {
    %c0_i32 = arith.constant 0 : i32
    %c0_i32_0 = arith.constant 0 : i32
    %c0_i32_1 = arith.constant 0 : i32
    return %c0_i32, %c0_i32_0 : i32, i32
  }
  func.func @transform_4(%arg0: i32, %arg1: i32) -> (i32, i32) {
    %c0_i32 = arith.constant 0 : i32
    %c0_i32_0 = arith.constant 0 : i32
    %c0_i32_1 = arith.constant 0 : i32
    return %c0_i32, %c0_i32_0 : i32, i32
  }
  func.func @transform_5(%arg0: i32, %arg1: i32) -> (i32, i32) {
    %c0_i32 = arith.constant 0 : i32
    %c0_i32_0 = arith.constant 0 : i32
    %c0_i32_1 = arith.constant 0 : i32
    return %c0_i32, %c0_i32_0 : i32, i32
  }
  func.func @transform_6(%arg0: i32, %arg1: i32) -> (i32, i32, i32, i32) {
    %c0_i32 = arith.constant 0 : i32
    %c0_i32_0 = arith.constant 0 : i32
    %c0_i32_1 = arith.constant 0 : i32
    return %arg0, %arg1, %c0_i32, %c0_i32_0 : i32, i32, i32, i32
  }
}

</mosaic_0001>

<llo_original>
// kernel: basic_block_dubn.5
$region0: #{basic_block_dubn.5}
  #allocation0 [shape = 'u32[]', space=smem, size = 0x4, offset = 0x4, fixed_abs, tag = 'smem constant byte address 0x4 - core index']
  #allocation1 [shape = 'u32[144,128]{1,0:T(1,128)}', space=vmem, size = 0x12000, scoped, tag = 'internal scratch']
  %s0 = inlined_call_operand.vmem [shape: f32[2,8,8,128], index: 0, kind: input, shape index: {}]
  %s1 = inlined_call_operand.vmem [shape: f32[1,128], index: 1, kind: input, shape index: {}]
  %s2 = inlined_call_operand.vmem [shape: f32[1,128], index: 2, kind: input, shape index: {}]
  %s3 = inlined_call_operand.vmem [shape: bf16[2,8,8,128], index: 3, kind: output, shape index: {}]
  %s4 = sld [smem:[#allocation0]]
  $region45: #{basic_block_dubn.5} parent=0
    _
  %s6 = ssub.s32 1, %s4
  %s7 = scalar_select 0, %s6, %s4
  loop: start=0, step=1, limit=6
  $region2: #{basic_block_dubn.5} parent=0 // loop_pre_header
    _
  $region3: #{basic_block_dubn.5} parent=0 // loop_header
    %s9 = sphi 0, %s13
    %p10 = scmp.ge.s32.totalorder %s9, 6
    %s16 = sphi 0, %s28
    %s17 = sphi 0, %s24
    %s18 = sphi 0, %s16
    %s19 = sphi 0, %s17
    %s20 = sphi 0, %s18
    %s21 = sphi 0, %s19
    %s33 = sphi 0, %s35
    %s36 = sphi 0, %s33
    %s37 = sphi 0, %s36
    %s53 = sphi 0, %s37
    %s57 = sphi 0, %s57
    %s59 = sphi 0, %s57
    %s60 = sphi 0, %s59
    %s74 = sphi 0, %s60
    %s78 = sphi 0, %s78
    %s80 = sphi 0, %s78
    %s81 = sphi 0, %s80
    %s95 = sphi 0, %s81
    %s103 = sphi 0, %s105
    %s106 = sphi 0, %s103
    %s107 = sphi 0, %s106
    %s123 = sphi 0, %s107
  $region4: #{basic_block_dubn.5} parent=0 // loop_header_branch
    %12 = sbr.rel (%p10) target = $region8
  $region5: #{basic_block_dubn.5} parent=0 // loop_body
    %s14 = ssub.s32 %s9, 1
    %s15 = ssub.s32 %s9, 2
    %s22 = sadd.s32 1, %s17
    %p23 = scmp.ge.s32.totalorder %s22, 2
    %s24 = scalar_select %p23, 0, %s22
    %s25 = sadd.s32 1, %s16
    %s26 = scalar_select %p23, %s25, %s16
    %p27 = scmp.ge.s32.totalorder %s26, 2
    %s28 = scalar_select %p27, 0, %s26
    %s29 = ssub.s32 %s16, %s28
    %s30 = ssub.s32 %s17, %s24
    %s31 = sor.u32 %s29, %s30
    %p32 = scmp.eq.s32.totalorder %s31, 0
    %s34 = sadd.s32 %s33, 1
    %s35 = scalar_select %p32, %s33, %s34
    %p38 = pneg %p32
    %p39 = scmp.eq.s32.totalorder %s9, 3
    %p40 = por %p38, %p39
    %p41 = scmp.ne.s32.totalorder %s33, %s36
    %p42 = scmp.eq.s32.totalorder %s9, 0
    %p43 = por %p41, %p42
    %p44 = scmp.ne.s32.totalorder %s33, %s36
    %p45 = scmp.eq.s32.totalorder %s14, 3
    %p46 = por %p44, %p45
    %p47 = scmp.ne.s32.totalorder %s36, %s37
    %p48 = scmp.eq.s32.totalorder %s14, 0
    %p49 = por %p47, %p48
    %p50 = scmp.ne.s32.totalorder %s36, %s37
    %p51 = scmp.eq.s32.totalorder %s15, 3
    %p52 = por %p50, %p51
    %p54 = scmp.ne.s32.totalorder %s37, %s53
    %p55 = scmp.eq.s32.totalorder %s15, 0
    %p56 = por %p54, %p55
    %s58 = sadd.s32 %s57, 1
    %p61 = scmp.eq.s32.totalorder %s9, 3
    %p62 = scmp.ne.s32.totalorder %s57, %s59
    %p63 = scmp.eq.s32.totalorder %s9, 0
    %p64 = por %p62, %p63
    %p65 = scmp.ne.s32.totalorder %s57, %s59
    %p66 = scmp.eq.s32.totalorder %s14, 3
    %p67 = por %p65, %p66
    %p68 = scmp.ne.s32.totalorder %s59, %s60
    %p69 = scmp.eq.s32.totalorder %s14, 0
    %p70 = por %p68, %p69
    %p71 = scmp.ne.s32.totalorder %s59, %s60
    %p72 = scmp.eq.s32.totalorder %s15, 3
    %p73 = por %p71, %p72
    %p75 = scmp.ne.s32.totalorder %s60, %s74
    %p76 = scmp.eq.s32.totalorder %s15, 0
    %p77 = por %p75, %p76
    %s79 = sadd.s32 %s78, 1
    %p82 = scmp.eq.s32.totalorder %s9, 3
    %p83 = scmp.ne.s32.totalorder %s78, %s80
    %p84 = scmp.eq.s32.totalorder %s9, 0
    %p85 = por %p83, %p84
    %p86 = scmp.ne.s32.totalorder %s78, %s80
    %p87 = scmp.eq.s32.totalorder %s14, 3
    %p88 = por %p86, %p87
    %p89 = scmp.ne.s32.totalorder %s80, %s81
    %p90 = scmp.eq.s32.totalorder %s14, 0
    %p91 = por %p89, %p90
    %p92 = scmp.ne.s32.totalorder %s80, %s81
    %p93 = scmp.eq.s32.totalorder %s15, 3
    %p94 = por %p92, %p93
    %p96 = scmp.ne.s32.totalorder %s81, %s95
    %p97 = scmp.eq.s32.totalorder %s15, 0
    %p98 = por %p96, %p97
    %s99 = ssub.s32 %s16, %s28
    %s100 = ssub.s32 %s17, %s24
    %s101 = sor.u32 %s99, %s100
    %p102 = scmp.eq.s32.totalorder %s101, 0
    %s104 = sadd.s32 %s103, 1
    %s105 = scalar_select %p102, %s103, %s104
    %p108 = pneg %p102
    %p109 = scmp.eq.s32.totalorder %s9, 3
    %p110 = por %p108, %p109
    %p111 = scmp.ne.s32.totalorder %s103, %s106
    %p112 = scmp.eq.s32.totalorder %s9, 0
    %p113 = por %p111, %p112
    %p114 = scmp.ne.s32.totalorder %s103, %s106
    %p115 = scmp.eq.s32.totalorder %s14, 3
    %p116 = por %p114, %p115
    %p117 = scmp.ne.s32.totalorder %s106, %s107
    %p118 = scmp.eq.s32.totalorder %s14, 0
    %p119 = por %p117, %p118
    %p120 = scmp.ne.s32.totalorder %s106, %s107
    %p121 = scmp.eq.s32.totalorder %s15, 3
    %p122 = por %p120, %p121
    %p124 = scmp.ne.s32.totalorder %s107, %s123
    %p125 = scmp.eq.s32.totalorder %s15, 0
    %p126 = por %p124, %p125
    %p127 = scmp.le.s32.totalorder 1, %s9
    %p128 = scmp.lt.s32.totalorder %s9, 5
    %p129 = pnand %p127, %p128
    %p130 = pneg %p129
    // Predicated region
    $region9: #{basic_block_dubn.5} parent=5 // pred_check
      _
    $region10: #{basic_block_dubn.5} parent=5 // pred_check_branch
      %132 = sbr.rel (%p129) target = $region12
    $region11: #{basic_block_dubn.5} parent=5 // pred_region
      %s133 = ssub.s32 %s9, 1
      // Predicated region
      $region13: #{basic_block_dubn.5} parent=11 // pred_check
        %p134 = pneg %p70
      $region14: #{basic_block_dubn.5} parent=11 // pred_check_branch
        %136 = sbr.rel (%p134) target = $region16
      $region15: #{basic_block_dubn.5} parent=11 // pred_region
        _
      $region16: #{basic_block_dubn.5} parent=11 // pred_fallthru
        _
      // Predicated region
      $region17: #{basic_block_dubn.5} parent=11 // pred_check
        %p137 = pneg %p91
      $region18: #{basic_block_dubn.5} parent=11 // pred_check_branch
        %139 = sbr.rel (%p137) target = $region20
      $region19: #{basic_block_dubn.5} parent=11 // pred_region
        _
      $region20: #{basic_block_dubn.5} parent=11 // pred_fallthru
        _
    $region12: #{basic_block_dubn.5} parent=5 // pred_fallthru
      _
    %p140 = scmp.lt.s32.totalorder %s9, 4
    // Predicated region
    $region21: #{basic_block_dubn.5} parent=5 // pred_check
      %p141 = pneg %p140
    $region22: #{basic_block_dubn.5} parent=5 // pred_check_branch
      %143 = sbr.rel (%p141) target = $region24
    $region23: #{basic_block_dubn.5} parent=5 // pred_region
      // Predicated region
      $region25: #{basic_block_dubn.5} parent=23 // pred_check
        %p144 = pneg %p43
      $region26: #{basic_block_dubn.5} parent=23 // pred_check_branch
        %146 = sbr.rel (%p144) target = $region28
      $region27: #{basic_block_dubn.5} parent=23 // pred_region
        %s147 = smul.u32 4, %s17
        %p148 = scmp.lt.s32.totalorder %s16, 1
        %s149 = scalar_select %p148, %s16, 1
        %p150 = scmp.lt.s32.totalorder %s147, 7
        %s151 = scalar_select %p150, %s147, 7
        %s152 = smul.addr %s149, 8
        %s153 = sadd.s32 %s151, %s152
        %s154 = smul.addr %s153, 8
        %s155 = scalar_lea.vmem %s0, %s154
        %s156 = smul.u32 4, %s17
      $region28: #{basic_block_dubn.5} parent=23 // pred_fallthru
        _
    $region24: #{basic_block_dubn.5} parent=5 // pred_fallthru
      _
    %p157 = scmp.le.s32.totalorder 1, %s9
    %p158 = scmp.lt.s32.totalorder %s9, 5
    %p159 = pnand %p157, %p158
    %p160 = pneg %p159
    // Predicated region
    $region29: #{basic_block_dubn.5} parent=5 // pred_check
      _
    $region30: #{basic_block_dubn.5} parent=5 // pred_check_branch
      %162 = sbr.rel (%p159) target = $region32
    $region31: #{basic_block_dubn.5} parent=5 // pred_region
      %s163 = ssub.s32 %s9, 1
      %s164 = smul.u32 4, %s19
      %p165 = scmp.lt.s32.totalorder %s18, 1
      %s166 = scalar_select %p165, %s18, 1
      %p167 = scmp.lt.s32.totalorder %s164, 7
      %s168 = scalar_select %p167, %s164, 7
      %s169 = smul.addr %s166, 8
      %s170 = sadd.s32 %s168, %s169
      %s171 = smul.addr %s170, 8
      %s172 = scalar_lea.vmem %s0, %s171
      %p173 = pneg %p49
      %p174 = pneg %p46
      %p175 = pneg %p70
      %p176 = pneg %p67
      %p177 = pneg %p91
      %p178 = pneg %p88
      %p179 = pneg %p119
      %p180 = pneg %p116
      %s181 = smul.u32 4, %s19
      %p182 = scmp.lt.s32.totalorder %s18, 1
      %s183 = scalar_select %p182, %s18, 1
      %p184 = scmp.lt.s32.totalorder %s181, 7
      %s185 = scalar_select %p184, %s181, 7
      %s186 = smul.addr %s183, 8
      %s187 = sadd.s32 %s185, %s186
      %s188 = smul.addr %s187, 4
      %s189 = scalar_lea.vmem %s3, %s188
      %s190 = smul.u32 4, %s19
      %p191 = scmp.lt.s32.totalorder %s18, 1
      %s192 = scalar_select %p191, %s18, 1
      %p193 = scmp.lt.s32.totalorder %s190, 7
      %s194 = scalar_select %p193, %s190, 7
      %s195 = smul.addr %s192, 8
      %s196 = sadd.s32 %s194, %s195
      %s197 = smul.addr %s196, 8
      %s198 = scalar_lea.vmem %s0, %s197
      %s199 = smul.u32 4, %s19
      %s200 = smul.u32 4, %s19
      %p201 = scmp.lt.s32.totalorder %s18, 1
      %s202 = scalar_select %p201, %s18, 1
      %p203 = scmp.lt.s32.totalorder %s200, 7
      %s204 = scalar_select %p203, %s200, 7
      %s205 = smul.addr %s202, 8
      %s206 = sadd.s32 %s204, %s205
      %s207 = smul.addr %s206, 4
      %s208 = scalar_lea.vmem %s3, %s207
      %s209 = smul.u32 4, %s19
      %v210 = vld [vmem:[%s198] sm:$0xff]
      %v211 = vld [vmem:[%s198 + $0x8] sm:$0xff]
      %v212 = vld [vmem:[%s198 + $0x10] sm:$0xff]
      %v213 = vld [vmem:[%s198 + $0x18] sm:$0xff]
      %v214 = vld [vmem:[%s1] sm:$0x1]
      %v216 = vlaneseq
      %v217 = vshrl.u32 %v216, 7
      %v218 = vsub.s32 0, %v217
      %v219 = vrot.slane %v214, %v218
      %v221 = vmul.f32 %v210, %v219
      %v222 = vmul.f32 %v211, %v219
      %v223 = vmul.f32 %v212, %v219
      %v224 = vmul.f32 %v213, %v219
      %v225 = vld [vmem:[%s2] sm:$0x1]
      %v227 = vlaneseq
      %v228 = vshrl.u32 %v227, 7
      %v229 = vsub.s32 0, %v228
      %v230 = vrot.slane %v225, %v229
      %v232 = vadd.f32 %v221, %v230
      %v233 = vadd.f32 %v222, %v230
      %v234 = vadd.f32 %v223, %v230
      %v235 = vadd.f32 %v224, %v230
      %v236 = vmax.f32 %v232, 0.0
      %v237 = vmax.f32 %v233, 0.0
      %v238 = vmax.f32 %v234, 0.0
      %v239 = vmax.f32 %v235, 0.0
      %v240 = vpack.c.bf16 %v236, %v236
      %v241 = vpack.c.bf16 %v237, %v237
      %v242 = vpack.c.bf16 %v238, %v238
      %v243 = vpack.c.bf16 %v239, %v239
      %244 = vst [vmem:[%s208] sm:$0xf] %v240
      %245 = vst [vmem:[%s208 + $0x4] sm:$0xf] %v241
      %246 = vst [vmem:[%s208 + $0x8] sm:$0xf] %v242
      %247 = vst [vmem:[%s208 + $0xc] sm:$0xf] %v243
      %s248 = smul.u32 4, %s19
      %p249 = scmp.lt.s32.totalorder %s18, 1
      %s250 = scalar_select %p249, %s18, 1
      %p251 = scmp.lt.s32.totalorder %s248, 7
      %s252 = scalar_select %p251, %s248, 7
      %s253 = smul.addr %s250, 8
      %s254 = sadd.s32 %s252, %s253
      %s255 = smul.addr %s254, 4
      %s256 = scalar_lea.vmem %s3, %s255
      // Predicated region
      $region33: #{basic_block_dubn.5} parent=31 // pred_check
        %p257 = pneg %p116
      $region34: #{basic_block_dubn.5} parent=31 // pred_check_branch
        %259 = sbr.rel (%p257) target = $region36
      $region35: #{basic_block_dubn.5} parent=31 // pred_region
        %s260 = smul.u32 4, %s19
      $region36: #{basic_block_dubn.5} parent=31 // pred_fallthru
        _
    $region32: #{basic_block_dubn.5} parent=5 // pred_fallthru
      _
    %p261 = scmp.le.s32.totalorder 2, %s9
    // Predicated region
    $region37: #{basic_block_dubn.5} parent=5 // pred_check
      %p262 = pneg %p261
    $region38: #{basic_block_dubn.5} parent=5 // pred_check_branch
      %264 = sbr.rel (%p262) target = $region40
    $region39: #{basic_block_dubn.5} parent=5 // pred_region
      %s265 = ssub.s32 %s9, 2
      // Predicated region
      $region41: #{basic_block_dubn.5} parent=39 // pred_check
        %p266 = pneg %p122
      $region42: #{basic_block_dubn.5} parent=39 // pred_check_branch
        %268 = sbr.rel (%p266) target = $region44
      $region43: #{basic_block_dubn.5} parent=39 // pred_region
        %s269 = smul.u32 4, %s21
        %p270 = scmp.lt.s32.totalorder %s20, 1
        %s271 = scalar_select %p270, %s20, 1
        %p272 = scmp.lt.s32.totalorder %s269, 7
        %s273 = scalar_select %p272, %s269, 7
        %s274 = smul.addr %s271, 8
        %s275 = sadd.s32 %s273, %s274
        %s276 = smul.addr %s275, 4
        %s277 = scalar_lea.vmem %s3, %s276
      $region44: #{basic_block_dubn.5} parent=39 // pred_fallthru
        _
    $region40: #{basic_block_dubn.5} parent=5 // pred_fallthru
      _
  $region6: #{basic_block_dubn.5} parent=0 // loop_footer
    %s13 = sadd.s32 1, %s9
  $region7: #{basic_block_dubn.5} parent=0 // loop_footer_branch
    %8 = sbr.rel target = $region3
  $region8: #{basic_block_dubn.5} parent=0 // loop_exit
    _

// kernel: basic_block_dubn.7
$region0: #{basic_block_dubn.7}
  #allocation0 [shape = 'u32[]', space=smem, size = 0x4, offset = 0x4, fixed_abs, tag = 'smem constant byte address 0x4 - core index']
  #allocation1 [shape = 'u32[144,128]{1,0:T(1,128)}', space=vmem, size = 0x12000, scoped, tag = 'internal scratch']
  %s0 = inlined_call_operand.vmem [shape: f32[2,8,8,128], index: 0, kind: input, shape index: {}]
  %s1 = inlined_call_operand.vmem [shape: f32[2,8,8,128], index: 1, kind: input, shape index: {}]
  %s2 = inlined_call_operand.vmem [shape: f32[1,128], index: 2, kind: input, shape index: {}]
  %s3 = inlined_call_operand.vmem [shape: f32[1,128], index: 3, kind: input, shape index: {}]
  %s4 = inlined_call_operand.vmem [shape: f32[1,128], index: 4, kind: input, shape index: {}]
  %s5 = inlined_call_operand.vmem [shape: f32[1,128], index: 5, kind: input, shape index: {}]
  %s6 = inlined_call_operand.vmem [shape: f32[2,8,8,128], index: 6, kind: output, shape index: {}]
  %s7 = sld [smem:[#allocation0]]
  $region57: #{basic_block_dubn.7} parent=0
    _
  %s9 = ssub.s32 1, %s7
  %s10 = scalar_select 0, %s9, %s7
  loop: start=0, step=1, limit=6
  $region2: #{basic_block_dubn.7} parent=0 // loop_pre_header
    _
  $region3: #{basic_block_dubn.7} parent=0 // loop_header
    %s12 = sphi 0, %s16
    %p13 = scmp.ge.s32.totalorder %s12, 6
    %s19 = sphi 0, %s31
    %s20 = sphi 0, %s27
    %s21 = sphi 0, %s19
    %s22 = sphi 0, %s20
    %s23 = sphi 0, %s21
    %s24 = sphi 0, %s22
    %s36 = sphi 0, %s38
    %s39 = sphi 0, %s36
    %s40 = sphi 0, %s39
    %s56 = sphi 0, %s40
    %s64 = sphi 0, %s66
    %s67 = sphi 0, %s64
    %s68 = sphi 0, %s67
    %s84 = sphi 0, %s68
    %s88 = sphi 0, %s88
    %s90 = sphi 0, %s88
    %s91 = sphi 0, %s90
    %s105 = sphi 0, %s91
    %s109 = sphi 0, %s109
    %s111 = sphi 0, %s109
    %s112 = sphi 0, %s111
    %s126 = sphi 0, %s112
    %s130 = sphi 0, %s130
    %s132 = sphi 0, %s130
    %s133 = sphi 0, %s132
    %s147 = sphi 0, %s133
    %s151 = sphi 0, %s151
    %s153 = sphi 0, %s151
    %s154 = sphi 0, %s153
    %s168 = sphi 0, %s154
    %s176 = sphi 0, %s178
    %s179 = sphi 0, %s176
    %s180 = sphi 0, %s179
    %s196 = sphi 0, %s180
  $region4: #{basic_block_dubn.7} parent=0 // loop_header_branch
    %15 = sbr.rel (%p13) target = $region8
  $region5: #{basic_block_dubn.7} parent=0 // loop_body
    %s17 = ssub.s32 %s12, 1
    %s18 = ssub.s32 %s12, 2
    %s25 = sadd.s32 1, %s20
    %p26 = scmp.ge.s32.totalorder %s25, 2
    %s27 = scalar_select %p26, 0, %s25
    %s28 = sadd.s32 1, %s19
    %s29 = scalar_select %p26, %s28, %s19
    %p30 = scmp.ge.s32.totalorder %s29, 2
    %s31 = scalar_select %p30, 0, %s29
    %s32 = ssub.s32 %s19, %s31
    %s33 = ssub.s32 %s20, %s27
    %s34 = sor.u32 %s32, %s33
    %p35 = scmp.eq.s32.totalorder %s34, 0
    %s37 = sadd.s32 %s36, 1
    %s38 = scalar_select %p35, %s36, %s37
    %p41 = pneg %p35
    %p42 = scmp.eq.s32.totalorder %s12, 3
    %p43 = por %p41, %p42
    %p44 = scmp.ne.s32.totalorder %s36, %s39
    %p45 = scmp.eq.s32.totalorder %s12, 0
    %p46 = por %p44, %p45
    %p47 = scmp.ne.s32.totalorder %s36, %s39
    %p48 = scmp.eq.s32.totalorder %s17, 3
    %p49 = por %p47, %p48
    %p50 = scmp.ne.s32.totalorder %s39, %s40
    %p51 = scmp.eq.s32.totalorder %s17, 0
    %p52 = por %p50, %p51
    %p53 = scmp.ne.s32.totalorder %s39, %s40
    %p54 = scmp.eq.s32.totalorder %s18, 3
    %p55 = por %p53, %p54
    %p57 = scmp.ne.s32.totalorder %s40, %s56
    %p58 = scmp.eq.s32.totalorder %s18, 0
    %p59 = por %p57, %p58
    %s60 = ssub.s32 %s19, %s31
    %s61 = ssub.s32 %s20, %s27
    %s62 = sor.u32 %s60, %s61
    %p63 = scmp.eq.s32.totalorder %s62, 0
    %s65 = sadd.s32 %s64, 1
    %s66 = scalar_select %p63, %s64, %s65
    %p69 = pneg %p63
    %p70 = scmp.eq.s32.totalorder %s12, 3
    %p71 = por %p69, %p70
    %p72 = scmp.ne.s32.totalorder %s64, %s67
    %p73 = scmp.eq.s32.totalorder %s12, 0
    %p74 = por %p72, %p73
    %p75 = scmp.ne.s32.totalorder %s64, %s67
    %p76 = scmp.eq.s32.totalorder %s17, 3
    %p77 = por %p75, %p76
    %p78 = scmp.ne.s32.totalorder %s67, %s68
    %p79 = scmp.eq.s32.totalorder %s17, 0
    %p80 = por %p78, %p79
    %p81 = scmp.ne.s32.totalorder %s67, %s68
    %p82 = scmp.eq.s32.totalorder %s18, 3
    %p83 = por %p81, %p82
    %p85 = scmp.ne.s32.totalorder %s68, %s84
    %p86 = scmp.eq.s32.totalorder %s18, 0
    %p87 = por %p85, %p86
    %s89 = sadd.s32 %s88, 1
    %p92 = scmp.eq.s32.totalorder %s12, 3
    %p93 = scmp.ne.s32.totalorder %s88, %s90
    %p94 = scmp.eq.s32.totalorder %s12, 0
    %p95 = por %p93, %p94
    %p96 = scmp.ne.s32.totalorder %s88, %s90
    %p97 = scmp.eq.s32.totalorder %s17, 3
    %p98 = por %p96, %p97
    %p99 = scmp.ne.s32.totalorder %s90, %s91
    %p100 = scmp.eq.s32.totalorder %s17, 0
    %p101 = por %p99, %p100
    %p102 = scmp.ne.s32.totalorder %s90, %s91
    %p103 = scmp.eq.s32.totalorder %s18, 3
    %p104 = por %p102, %p103
    %p106 = scmp.ne.s32.totalorder %s91, %s105
    %p107 = scmp.eq.s32.totalorder %s18, 0
    %p108 = por %p106, %p107
    %s110 = sadd.s32 %s109, 1
    %p113 = scmp.eq.s32.totalorder %s12, 3
    %p114 = scmp.ne.s32.totalorder %s109, %s111
    %p115 = scmp.eq.s32.totalorder %s12, 0
    %p116 = por %p114, %p115
    %p117 = scmp.ne.s32.totalorder %s109, %s111
    %p118 = scmp.eq.s32.totalorder %s17, 3
    %p119 = por %p117, %p118
    %p120 = scmp.ne.s32.totalorder %s111, %s112
    %p121 = scmp.eq.s32.totalorder %s17, 0
    %p122 = por %p120, %p121
    %p123 = scmp.ne.s32.totalorder %s111, %s112
    %p124 = scmp.eq.s32.totalorder %s18, 3
    %p125 = por %p123, %p124
    %p127 = scmp.ne.s32.totalorder %s112, %s126
    %p128 = scmp.eq.s32.totalorder %s18, 0
    %p129 = por %p127, %p128
    %s131 = sadd.s32 %s130, 1
    %p134 = scmp.eq.s32.totalorder %s12, 3
    %p135 = scmp.ne.s32.totalorder %s130, %s132
    %p136 = scmp.eq.s32.totalorder %s12, 0
    %p137 = por %p135, %p136
    %p138 = scmp.ne.s32.totalorder %s130, %s132
    %p139 = scmp.eq.s32.totalorder %s17, 3
    %p140 = por %p138, %p139
    %p141 = scmp.ne.s32.totalorder %s132, %s133
    %p142 = scmp.eq.s32.totalorder %s17, 0
    %p143 = por %p141, %p142
    %p144 = scmp.ne.s32.totalorder %s132, %s133
    %p145 = scmp.eq.s32.totalorder %s18, 3
    %p146 = por %p144, %p145
    %p148 = scmp.ne.s32.totalorder %s133, %s147
    %p149 = scmp.eq.s32.totalorder %s18, 0
    %p150 = por %p148, %p149
    %s152 = sadd.s32 %s151, 1
    %p155 = scmp.eq.s32.totalorder %s12, 3
    %p156 = scmp.ne.s32.totalorder %s151, %s153
    %p157 = scmp.eq.s32.totalorder %s12, 0
    %p158 = por %p156, %p157
    %p159 = scmp.ne.s32.totalorder %s151, %s153
    %p160 = scmp.eq.s32.totalorder %s17, 3
    %p161 = por %p159, %p160
    %p162 = scmp.ne.s32.totalorder %s153, %s154
    %p163 = scmp.eq.s32.totalorder %s17, 0
    %p164 = por %p162, %p163
    %p165 = scmp.ne.s32.totalorder %s153, %s154
    %p166 = scmp.eq.s32.totalorder %s18, 3
    %p167 = por %p165, %p166
    %p169 = scmp.ne.s32.totalorder %s154, %s168
    %p170 = scmp.eq.s32.totalorder %s18, 0
    %p171 = por %p169, %p170
    %s172 = ssub.s32 %s19, %s31
    %s173 = ssub.s32 %s20, %s27
    %s174 = sor.u32 %s172, %s173
    %p175 = scmp.eq.s32.totalorder %s174, 0
    %s177 = sadd.s32 %s176, 1
    %s178 = scalar_select %p175, %s176, %s177
    %p181 = pneg %p175
    %p182 = scmp.eq.s32.totalorder %s12, 3
    %p183 = por %p181, %p182
    %p184 = scmp.ne.s32.totalorder %s176, %s179
    %p185 = scmp.eq.s32.totalorder %s12, 0
    %p186 = por %p184, %p185
    %p187 = scmp.ne.s32.totalorder %s176, %s179
    %p188 = scmp.eq.s32.totalorder %s17, 3
    %p189 = por %p187, %p188
    %p190 = scmp.ne.s32.totalorder %s179, %s180
    %p191 = scmp.eq.s32.totalorder %s17, 0
    %p192 = por %p190, %p191
    %p193 = scmp.ne.s32.totalorder %s179, %s180
    %p194 = scmp.eq.s32.totalorder %s18, 3
    %p195 = por %p193, %p194
    %p197 = scmp.ne.s32.totalorder %s180, %s196
    %p198 = scmp.eq.s32.totalorder %s18, 0
    %p199 = por %p197, %p198
    %p200 = scmp.le.s32.totalorder 1, %s12
    %p201 = scmp.lt.s32.totalorder %s12, 5
    %p202 = pnand %p200, %p201
    %p203 = pneg %p202
    // Predicated region
    $region9: #{basic_block_dubn.7} parent=5 // pred_check
      _
    $region10: #{basic_block_dubn.7} parent=5 // pred_check_branch
      %205 = sbr.rel (%p202) target = $region12
    $region11: #{basic_block_dubn.7} parent=5 // pred_region
      %s206 = ssub.s32 %s12, 1
      // Predicated region
      $region13: #{basic_block_dubn.7} parent=11 // pred_check
        %p207 = pneg %p101
      $region14: #{basic_block_dubn.7} parent=11 // pred_check_branch
        %209 = sbr.rel (%p207) target = $region16
      $region15: #{basic_block_dubn.7} parent=11 // pred_region
        _
      $region16: #{basic_block_dubn.7} parent=11 // pred_fallthru
        _
      // Predicated region
      $region17: #{basic_block_dubn.7} parent=11 // pred_check
        %p210 = pneg %p122
      $region18: #{basic_block_dubn.7} parent=11 // pred_check_branch
        %212 = sbr.rel (%p210) target = $region20
      $region19: #{basic_block_dubn.7} parent=11 // pred_region
        _
      $region20: #{basic_block_dubn.7} parent=11 // pred_fallthru
        _
      // Predicated region
      $region21: #{basic_block_dubn.7} parent=11 // pred_check
        %p213 = pneg %p143
      $region22: #{basic_block_dubn.7} parent=11 // pred_check_branch
        %215 = sbr.rel (%p213) target = $region24
      $region23: #{basic_block_dubn.7} parent=11 // pred_region
        _
      $region24: #{basic_block_dubn.7} parent=11 // pred_fallthru
        _
      // Predicated region
      $region25: #{basic_block_dubn.7} parent=11 // pred_check
        %p216 = pneg %p164
      $region26: #{basic_block_dubn.7} parent=11 // pred_check_branch
        %218 = sbr.rel (%p216) target = $region28
      $region27: #{basic_block_dubn.7} parent=11 // pred_region
        _
      $region28: #{basic_block_dubn.7} parent=11 // pred_fallthru
        _
    $region12: #{basic_block_dubn.7} parent=5 // pred_fallthru
      _
    %p219 = scmp.lt.s32.totalorder %s12, 4
    // Predicated region
    $region29: #{basic_block_dubn.7} parent=5 // pred_check
      %p220 = pneg %p219
    $region30: #{basic_block_dubn.7} parent=5 // pred_check_branch
      %222 = sbr.rel (%p220) target = $region32
    $region31: #{basic_block_dubn.7} parent=5 // pred_region
      // Predicated region
      $region33: #{basic_block_dubn.7} parent=31 // pred_check
        %p223 = pneg %p46
      $region34: #{basic_block_dubn.7} parent=31 // pred_check_branch
        %225 = sbr.rel (%p223) target = $region36
      $region35: #{basic_block_dubn.7} parent=31 // pred_region
        %s226 = smul.u32 4, %s20
        %p227 = scmp.lt.s32.totalorder %s19, 1
        %s228 = scalar_select %p227, %s19, 1
        %p229 = scmp.lt.s32.totalorder %s226, 7
        %s230 = scalar_select %p229, %s226, 7
        %s231 = smul.addr %s228, 8
        %s232 = sadd.s32 %s230, %s231
        %s233 = smul.addr %s232, 8
        %s234 = scalar_lea.vmem %s0, %s233
        %s235 = smul.u32 4, %s20
      $region36: #{basic_block_dubn.7} parent=31 // pred_fallthru
        _
      // Predicated region
      $region37: #{basic_block_dubn.7} parent=31 // pred_check
        %p236 = pneg %p74
      $region38: #{basic_block_dubn.7} parent=31 // pred_check_branch
        %238 = sbr.rel (%p236) target = $region40
      $region39: #{basic_block_dubn.7} parent=31 // pred_region
        %s239 = smul.u32 4, %s20
        %p240 = scmp.lt.s32.totalorder %s19, 1
        %s241 = scalar_select %p240, %s19, 1
        %p242 = scmp.lt.s32.totalorder %s239, 7
        %s243 = scalar_select %p242, %s239, 7
        %s244 = smul.addr %s241, 8
        %s245 = sadd.s32 %s243, %s244
        %s246 = smul.addr %s245, 8
        %s247 = scalar_lea.vmem %s1, %s246
        %s248 = smul.u32 4, %s20
      $region40: #{basic_block_dubn.7} parent=31 // pred_fallthru
        _
    $region32: #{basic_block_dubn.7} parent=5 // pred_fallthru
      _
    %p249 = scmp.le.s32.totalorder 1, %s12
    %p250 = scmp.lt.s32.totalorder %s12, 5
    %p251 = pnand %p249, %p250
    %p252 = pneg %p251
    // Predicated region
    $region41: #{basic_block_dubn.7} parent=5 // pred_check
      _
    $region42: #{basic_block_dubn.7} parent=5 // pred_check_branch
      %254 = sbr.rel (%p251) target = $region44
    $region43: #{basic_block_dubn.7} parent=5 // pred_region
      %s255 = ssub.s32 %s12, 1
      %s256 = smul.u32 4, %s22
      %p257 = scmp.lt.s32.totalorder %s21, 1
      %s258 = scalar_select %p257, %s21, 1
      %p259 = scmp.lt.s32.totalorder %s256, 7
      %s260 = scalar_select %p259, %s256, 7
      %s261 = smul.addr %s258, 8
      %s262 = sadd.s32 %s260, %s261
      %s263 = smul.addr %s262, 8
      %s264 = scalar_lea.vmem %s0, %s263
      %p265 = pneg %p52
      %p266 = pneg %p49
      %s267 = smul.u32 4, %s22
      %p268 = scmp.lt.s32.totalorder %s21, 1
      %s269 = scalar_select %p268, %s21, 1
      %p270 = scmp.lt.s32.totalorder %s267, 7
      %s271 = scalar_select %p270, %s267, 7
      %s272 = smul.addr %s269, 8
      %s273 = sadd.s32 %s271, %s272
      %s274 = smul.addr %s273, 8
      %s275 = scalar_lea.vmem %s1, %s274
      %p276 = pneg %p80
      %p277 = pneg %p77
      %p278 = pneg %p101
      %p279 = pneg %p98
      %p280 = pneg %p122
      %p281 = pneg %p119
      %p282 = pneg %p143
      %p283 = pneg %p140
      %p284 = pneg %p164
      %p285 = pneg %p161
      %p286 = pneg %p192
      %p287 = pneg %p189
      %s288 = smul.u32 4, %s22
      %p289 = scmp.lt.s32.totalorder %s21, 1
      %s290 = scalar_select %p289, %s21, 1
      %p291 = scmp.lt.s32.totalorder %s288, 7
      %s292 = scalar_select %p291, %s288, 7
      %s293 = smul.addr %s290, 8
      %s294 = sadd.s32 %s292, %s293
      %s295 = smul.addr %s294, 8
      %s296 = scalar_lea.vmem %s6, %s295
      %s297 = smul.u32 4, %s22
      %p298 = scmp.lt.s32.totalorder %s21, 1
      %s299 = scalar_select %p298, %s21, 1
      %p300 = scmp.lt.s32.totalorder %s297, 7
      %s301 = scalar_select %p300, %s297, 7
      %s302 = smul.addr %s299, 8
      %s303 = sadd.s32 %s301, %s302
      %s304 = smul.addr %s303, 8
      %s305 = scalar_lea.vmem %s0, %s304
      %s306 = smul.u32 4, %s22
      %s307 = smul.u32 4, %s22
      %p308 = scmp.lt.s32.totalorder %s21, 1
      %s309 = scalar_select %p308, %s21, 1
      %p310 = scmp.lt.s32.totalorder %s307, 7
      %s311 = scalar_select %p310, %s307, 7
      %s312 = smul.addr %s309, 8
      %s313 = sadd.s32 %s311, %s312
      %s314 = smul.addr %s313, 8
      %s315 = scalar_lea.vmem %s1, %s314
      %s316 = smul.u32 4, %s22
      %s317 = smul.u32 4, %s22
      %p318 = scmp.lt.s32.totalorder %s21, 1
      %s319 = scalar_select %p318, %s21, 1
      %p320 = scmp.lt.s32.totalorder %s317, 7
      %s321 = scalar_select %p320, %s317, 7
      %s322 = smul.addr %s319, 8
      %s323 = sadd.s32 %s321, %s322
      %s324 = smul.addr %s323, 8
      %s325 = scalar_lea.vmem %s6, %s324
      %s326 = smul.u32 4, %s22
      %v327 = vld [vmem:[%s305] sm:$0xff]
      %v328 = vld [vmem:[%s305 + $0x8] sm:$0xff]
      %v329 = vld [vmem:[%s305 + $0x10] sm:$0xff]
      %v330 = vld [vmem:[%s305 + $0x18] sm:$0xff]
      %v331 = vld [vmem:[%s2] sm:$0x1]
      %v333 = vlaneseq
      %v334 = vshrl.u32 %v333, 7
      %v335 = vsub.s32 0, %v334
      %v336 = vrot.slane %v331, %v335
      %v338 = vmul.f32 %v327, %v336
      %v339 = vmul.f32 %v328, %v336
      %v340 = vmul.f32 %v329, %v336
      %v341 = vmul.f32 %v330, %v336
      %v342 = vld [vmem:[%s3] sm:$0x1]
      %v344 = vlaneseq
      %v345 = vshrl.u32 %v344, 7
      %v346 = vsub.s32 0, %v345
      %v347 = vrot.slane %v342, %v346
      %v349 = vadd.f32 %v338, %v347
      %v350 = vadd.f32 %v339, %v347
      %v351 = vadd.f32 %v340, %v347
      %v352 = vadd.f32 %v341, %v347
      %v353 = vld [vmem:[%s315] sm:$0xff]
      %v354 = vld [vmem:[%s315 + $0x8] sm:$0xff]
      %v355 = vld [vmem:[%s315 + $0x10] sm:$0xff]
      %v356 = vld [vmem:[%s315 + $0x18] sm:$0xff]
      %v357 = vld [vmem:[%s4] sm:$0x1]
      %v359 = vlaneseq
      %v360 = vshrl.u32 %v359, 7
      %v361 = vsub.s32 0, %v360
      %v362 = vrot.slane %v357, %v361
      %v364 = vmul.f32 %v353, %v362
      %v365 = vmul.f32 %v354, %v362
      %v366 = vmul.f32 %v355, %v362
      %v367 = vmul.f32 %v356, %v362
      %v368 = vadd.f32 %v349, %v364
      %v369 = vadd.f32 %v350, %v365
      %v370 = vadd.f32 %v351, %v366
      %v371 = vadd.f32 %v352, %v367
      %v372 = vld [vmem:[%s5] sm:$0x1]
      %v374 = vlaneseq
      %v375 = vshrl.u32 %v374, 7
      %v376 = vsub.s32 0, %v375
      %v377 = vrot.slane %v372, %v376
      %v379 = vadd.f32 %v368, %v377
      %v380 = vadd.f32 %v369, %v377
      %v381 = vadd.f32 %v370, %v377
      %v382 = vadd.f32 %v371, %v377
      %v383 = vmax.f32 %v379, 0.0
      %v384 = vmax.f32 %v380, 0.0
      %v385 = vmax.f32 %v381, 0.0
      %v386 = vmax.f32 %v382, 0.0
      %387 = vst [vmem:[%s325] sm:$0xff] %v383
      %388 = vst [vmem:[%s325 + $0x8] sm:$0xff] %v384
      %389 = vst [vmem:[%s325 + $0x10] sm:$0xff] %v385
      %390 = vst [vmem:[%s325 + $0x18] sm:$0xff] %v386
      %s391 = smul.u32 4, %s22
      %p392 = scmp.lt.s32.totalorder %s21, 1
      %s393 = scalar_select %p392, %s21, 1
      %p394 = scmp.lt.s32.totalorder %s391, 7
      %s395 = scalar_select %p394, %s391, 7
      %s396 = smul.addr %s393, 8
      %s397 = sadd.s32 %s395, %s396
      %s398 = smul.addr %s397, 8
      %s399 = scalar_lea.vmem %s6, %s398
      // Predicated region
      $region45: #{basic_block_dubn.7} parent=43 // pred_check
        %p400 = pneg %p189
      $region46: #{basic_block_dubn.7} parent=43 // pred_check_branch
        %402 = sbr.rel (%p400) target = $region48
      $region47: #{basic_block_dubn.7} parent=43 // pred_region
        %s403 = smul.u32 4, %s22
      $region48: #{basic_block_dubn.7} parent=43 // pred_fallthru
        _
    $region44: #{basic_block_dubn.7} parent=5 // pred_fallthru
      _
    %p404 = scmp.le.s32.totalorder 2, %s12
    // Predicated region
    $region49: #{basic_block_dubn.7} parent=5 // pred_check
      %p405 = pneg %p404
    $region50: #{basic_block_dubn.7} parent=5 // pred_check_branch
      %407 = sbr.rel (%p405) target = $region52
    $region51: #{basic_block_dubn.7} parent=5 // pred_region
      %s408 = ssub.s32 %s12, 2
      // Predicated region
      $region53: #{basic_block_dubn.7} parent=51 // pred_check
        %p409 = pneg %p195
      $region54: #{basic_block_dubn.7} parent=51 // pred_check_branch
        %411 = sbr.rel (%p409) target = $region56
      $region55: #{basic_block_dubn.7} parent=51 // pred_region
        %s412 = smul.u32 4, %s24
        %p413 = scmp.lt.s32.totalorder %s23, 1
        %s414 = scalar_select %p413, %s23, 1
        %p415 = scmp.lt.s32.totalorder %s412, 7
        %s416 = scalar_select %p415, %s412, 7
        %s417 = smul.addr %s414, 8
        %s418 = sadd.s32 %s416, %s417
        %s419 = smul.addr %s418, 8
        %s420 = scalar_lea.vmem %s6, %s419
      $region56: #{basic_block_dubn.7} parent=51 // pred_fallthru
        _
    $region52: #{basic_block_dubn.7} parent=5 // pred_fallthru
      _
  $region6: #{basic_block_dubn.7} parent=0 // loop_footer
    %s16 = sadd.s32 1, %s12
  $region7: #{basic_block_dubn.7} parent=0 // loop_footer_branch
    %11 = sbr.rel target = $region3
  $region8: #{basic_block_dubn.7} parent=0 // loop_exit
    _

// kernel: basic_block_dubn.6
$region0: #{basic_block_dubn.6}
  #allocation0 [shape = 'u32[]', space=smem, size = 0x4, offset = 0x4, fixed_abs, tag = 'smem constant byte address 0x4 - core index']
  #allocation1 [shape = 'u32[144,128]{1,0:T(1,128)}', space=vmem, size = 0x12000, scoped, tag = 'internal scratch']
  %s0 = inlined_call_operand.vmem [shape: bf16[2,10,10,128], index: 0, kind: input, shape index: {}]
  %s1 = inlined_call_operand.vmem [shape: bf16[3,3,128,128], index: 1, kind: input, shape index: {}]
  %s2 = inlined_call_operand.vmem [shape: f32[2,8,8,128], index: 2, kind: output, shape index: {0}]
  %s3 = inlined_call_operand.vmem [shape: f32[2,2,8,128], index: 3, kind: output, shape index: {1}]
  %4 = xla_tuple %s2, %s3
  %s5 = sld [smem:[#allocation0]]
  $region49: #{basic_block_dubn.6} parent=0
    _
  %s7 = ssub.s32 1, %s5
  %s8 = scalar_select 0, %s7, %s5
  loop: start=0, step=1, limit=6
  $region2: #{basic_block_dubn.6} parent=0 // loop_pre_header
    _
  $region3: #{basic_block_dubn.6} parent=0 // loop_header
    %s10 = sphi 0, %s14
    %p11 = scmp.ge.s32.totalorder %s10, 6
    %s17 = sphi 0, %s29
    %s18 = sphi 0, %s25
    %s19 = sphi 0, %s17
    %s20 = sphi 0, %s18
    %s21 = sphi 0, %s19
    %s22 = sphi 0, %s20
    %s32 = sphi 0, %s34
    %s35 = sphi 0, %s32
    %s36 = sphi 0, %s35
    %s52 = sphi 0, %s36
    %s56 = sphi 0, %s56
    %s58 = sphi 0, %s56
    %s59 = sphi 0, %s58
    %s73 = sphi 0, %s59
    %s81 = sphi 0, %s83
    %s84 = sphi 0, %s81
    %s85 = sphi 0, %s84
    %s101 = sphi 0, %s85
    %s109 = sphi 0, %s111
    %s112 = sphi 0, %s109
    %s113 = sphi 0, %s112
    %s129 = sphi 0, %s113
  $region4: #{basic_block_dubn.6} parent=0 // loop_header_branch
    %13 = sbr.rel (%p11) target = $region8
  $region5: #{basic_block_dubn.6} parent=0 // loop_body
    %s15 = ssub.s32 %s10, 1
    %s16 = ssub.s32 %s10, 2
    %s23 = sadd.s32 1, %s18
    %p24 = scmp.ge.s32.totalorder %s23, 2
    %s25 = scalar_select %p24, 0, %s23
    %s26 = sadd.s32 1, %s17
    %s27 = scalar_select %p24, %s26, %s17
    %p28 = scmp.ge.s32.totalorder %s27, 2
    %s29 = scalar_select %p28, 0, %s27
    %s30 = ssub.s32 %s17, %s29
    %p31 = scmp.eq.s32.totalorder %s30, 0
    %s33 = sadd.s32 %s32, 1
    %s34 = scalar_select %p31, %s32, %s33
    %p37 = pneg %p31
    %p38 = scmp.eq.s32.totalorder %s10, 3
    %p39 = por %p37, %p38
    %p40 = scmp.ne.s32.totalorder %s32, %s35
    %p41 = scmp.eq.s32.totalorder %s10, 0
    %p42 = por %p40, %p41
    %p43 = scmp.ne.s32.totalorder %s32, %s35
    %p44 = scmp.eq.s32.totalorder %s15, 3
    %p45 = por %p43, %p44
    %p46 = scmp.ne.s32.totalorder %s35, %s36
    %p47 = scmp.eq.s32.totalorder %s15, 0
    %p48 = por %p46, %p47
    %p49 = scmp.ne.s32.totalorder %s35, %s36
    %p50 = scmp.eq.s32.totalorder %s16, 3
    %p51 = por %p49, %p50
    %p53 = scmp.ne.s32.totalorder %s36, %s52
    %p54 = scmp.eq.s32.totalorder %s16, 0
    %p55 = por %p53, %p54
    %s57 = sadd.s32 %s56, 1
    %p60 = scmp.eq.s32.totalorder %s10, 3
    %p61 = scmp.ne.s32.totalorder %s56, %s58
    %p62 = scmp.eq.s32.totalorder %s10, 0
    %p63 = por %p61, %p62
    %p64 = scmp.ne.s32.totalorder %s56, %s58
    %p65 = scmp.eq.s32.totalorder %s15, 3
    %p66 = por %p64, %p65
    %p67 = scmp.ne.s32.totalorder %s58, %s59
    %p68 = scmp.eq.s32.totalorder %s15, 0
    %p69 = por %p67, %p68
    %p70 = scmp.ne.s32.totalorder %s58, %s59
    %p71 = scmp.eq.s32.totalorder %s16, 3
    %p72 = por %p70, %p71
    %p74 = scmp.ne.s32.totalorder %s59, %s73
    %p75 = scmp.eq.s32.totalorder %s16, 0
    %p76 = por %p74, %p75
    %s77 = ssub.s32 %s17, %s29
    %s78 = ssub.s32 %s18, %s25
    %s79 = sor.u32 %s77, %s78
    %p80 = scmp.eq.s32.totalorder %s79, 0
    %s82 = sadd.s32 %s81, 1
    %s83 = scalar_select %p80, %s81, %s82
    %p86 = pneg %p80
    %p87 = scmp.eq.s32.totalorder %s10, 3
    %p88 = por %p86, %p87
    %p89 = scmp.ne.s32.totalorder %s81, %s84
    %p90 = scmp.eq.s32.totalorder %s10, 0
    %p91 = por %p89, %p90
    %p92 = scmp.ne.s32.totalorder %s81, %s84
    %p93 = scmp.eq.s32.totalorder %s15, 3
    %p94 = por %p92, %p93
    %p95 = scmp.ne.s32.totalorder %s84, %s85
    %p96 = scmp.eq.s32.totalorder %s15, 0
    %p97 = por %p95, %p96
    %p98 = scmp.ne.s32.totalorder %s84, %s85
    %p99 = scmp.eq.s32.totalorder %s16, 3
    %p100 = por %p98, %p99
    %p102 = scmp.ne.s32.totalorder %s85, %s101
    %p103 = scmp.eq.s32.totalorder %s16, 0
    %p104 = por %p102, %p103
    %s105 = ssub.s32 %s17, %s29
    %s106 = ssub.s32 %s18, %s25
    %s107 = sor.u32 %s105, %s106
    %p108 = scmp.eq.s32.totalorder %s107, 0
    %s110 = sadd.s32 %s109, 1
    %s111 = scalar_select %p108, %s109, %s110
    %p114 = pneg %p108
    %p115 = scmp.eq.s32.totalorder %s10, 3
    %p116 = por %p114, %p115
    %p117 = scmp.ne.s32.totalorder %s109, %s112
    %p118 = scmp.eq.s32.totalorder %s10, 0
    %p119 = por %p117, %p118
    %p120 = scmp.ne.s32.totalorder %s109, %s112
    %p121 = scmp.eq.s32.totalorder %s15, 3
    %p122 = por %p120, %p121
    %p123 = scmp.ne.s32.totalorder %s112, %s113
    %p124 = scmp.eq.s32.totalorder %s15, 0
    %p125 = por %p123, %p124
    %p126 = scmp.ne.s32.totalorder %s112, %s113
    %p127 = scmp.eq.s32.totalorder %s16, 3
    %p128 = por %p126, %p127
    %p130 = scmp.ne.s32.totalorder %s113, %s129
    %p131 = scmp.eq.s32.totalorder %s16, 0
    %p132 = por %p130, %p131
    %p133 = scmp.le.s32.totalorder 1, %s10
    %p134 = scmp.lt.s32.totalorder %s10, 5
    %p135 = pnand %p133, %p134
    %p136 = pneg %p135
    // Predicated region
    $region9: #{basic_block_dubn.6} parent=5 // pred_check
      _
    $region10: #{basic_block_dubn.6} parent=5 // pred_check_branch
      %138 = sbr.rel (%p135) target = $region12
    $region11: #{basic_block_dubn.6} parent=5 // pred_region
      %s139 = ssub.s32 %s10, 1
      // Predicated region
      $region13: #{basic_block_dubn.6} parent=11 // pred_check
        %p140 = pneg %p69
      $region14: #{basic_block_dubn.6} parent=11 // pred_check_branch
        %142 = sbr.rel (%p140) target = $region16
      $region15: #{basic_block_dubn.6} parent=11 // pred_region
        _
      $region16: #{basic_block_dubn.6} parent=11 // pred_fallthru
        _
    $region12: #{basic_block_dubn.6} parent=5 // pred_fallthru
      _
    %p143 = scmp.lt.s32.totalorder %s10, 4
    // Predicated region
    $region17: #{basic_block_dubn.6} parent=5 // pred_check
      %p144 = pneg %p143
    $region18: #{basic_block_dubn.6} parent=5 // pred_check_branch
      %146 = sbr.rel (%p144) target = $region20
    $region19: #{basic_block_dubn.6} parent=5 // pred_region
      // Predicated region
      $region21: #{basic_block_dubn.6} parent=19 // pred_check
        %p147 = pneg %p42
      $region22: #{basic_block_dubn.6} parent=19 // pred_check_branch
        %149 = sbr.rel (%p147) target = $region24
      $region23: #{basic_block_dubn.6} parent=19 // pred_region
        %p150 = scmp.lt.s32.totalorder %s17, 1
        %s151 = scalar_select %p150, %s17, 1
        %s152 = smul.addr %s151, 20
        %s153 = smul.addr %s152, 4
        %s154 = scalar_lea.vmem %s0, %s153
      $region24: #{basic_block_dubn.6} parent=19 // pred_fallthru
        _
    $region20: #{basic_block_dubn.6} parent=5 // pred_fallthru
      _
    %p155 = scmp.le.s32.totalorder 1, %s10
    %p156 = scmp.lt.s32.totalorder %s10, 5
    %p157 = pnand %p155, %p156
    %p158 = pneg %p157
    // Predicated region
    $region25: #{basic_block_dubn.6} parent=5 // pred_check
      _
    $region26: #{basic_block_dubn.6} parent=5 // pred_check_branch
      %160 = sbr.rel (%p157) target = $region28
    $region27: #{basic_block_dubn.6} parent=5 // pred_region
      %s161 = ssub.s32 %s10, 1
      %p162 = scmp.lt.s32.totalorder %s19, 1
      %s163 = scalar_select %p162, %s19, 1
      %s164 = smul.addr %s163, 20
      %s165 = smul.addr %s164, 4
      %s166 = scalar_lea.vmem %s0, %s165
      %p167 = pneg %p48
      %p168 = pneg %p45
      %p169 = pneg %p69
      %p170 = pneg %p66
      %p171 = pneg %p97
      %p172 = pneg %p94
      %s173 = smul.u32 4, %s20
      %p174 = scmp.lt.s32.totalorder %s19, 1
      %s175 = scalar_select %p174, %s19, 1
      %p176 = scmp.lt.s32.totalorder %s173, 7
      %s177 = scalar_select %p176, %s173, 7
      %s178 = smul.addr %s175, 8
      %s179 = sadd.s32 %s177, %s178
      %s180 = smul.addr %s179, 8
      %s181 = scalar_lea.vmem %s2, %s180
      %p182 = pneg %p125
      %p183 = pneg %p122
      %p184 = scmp.lt.s32.totalorder %s19, 1
      %s185 = scalar_select %p184, %s19, 1
      %p186 = scmp.lt.s32.totalorder %s20, 1
      %s187 = scalar_select %p186, %s20, 1
      %s188 = smul.addr %s185, 2
      %s189 = sadd.s32 %s187, %s188
      %s190 = smul.addr %s189, 8
      %s191 = scalar_lea.vmem %s3, %s190
      %p192 = scmp.lt.s32.totalorder %s19, 1
      %s193 = scalar_select %p192, %s19, 1
      %s194 = smul.addr %s193, 20
      %s195 = smul.addr %s194, 4
      %s196 = scalar_lea.vmem %s0, %s195
      %s197 = smul.u32 4, %s20
      %p198 = scmp.lt.s32.totalorder %s19, 1
      %s199 = scalar_select %p198, %s19, 1
      %p200 = scmp.lt.s32.totalorder %s197, 7
      %s201 = scalar_select %p200, %s197, 7
      %s202 = smul.addr %s199, 8
      %s203 = sadd.s32 %s201, %s202
      %s204 = smul.addr %s203, 8
      %s205 = scalar_lea.vmem %s2, %s204
      %s206 = smul.u32 4, %s20
      %p207 = scmp.lt.s32.totalorder %s19, 1
      %s208 = scalar_select %p207, %s19, 1
      %p209 = scmp.lt.s32.totalorder %s20, 1
      %s210 = scalar_select %p209, %s20, 1
      %s211 = smul.addr %s208, 2
      %s212 = sadd.s32 %s210, %s211
      %s213 = smul.addr %s212, 8
      %s214 = scalar_lea.vmem %s3, %s213
      %s216 = smul.u32 %s20, 4
      %s217 = smul.u32 %s216, 2
      %s218 = smul.addr %s217, 4
      %s219 = scalar_lea.vmem %s196, %s218
      %v220 = vld [vmem:[%s219] sm:$0xf]
      %v221 = vld [vmem:[%s219 + $0x8] sm:$0xf]
      %v222 = vld [vmem:[%s219 + $0x10] sm:$0xf]
      %v223 = vld [vmem:[%s219 + $0x18] sm:$0xf]
      %v224 = vld [vmem:[%s1] sm:$0xf]
      %v225 = vld [vmem:[%s1 + $0x4] sm:$0xf]
      %v226 = vld [vmem:[%s1 + $0x8] sm:$0xf]
      %v227 = vld [vmem:[%s1 + $0xc] sm:$0xf]
      %v228 = vld [vmem:[%s1 + $0x10] sm:$0xf]
      %v229 = vld [vmem:[%s1 + $0x14] sm:$0xf]
      %v230 = vld [vmem:[%s1 + $0x18] sm:$0xf]
      %v231 = vld [vmem:[%s1 + $0x1c] sm:$0xf]
      %v232 = vld [vmem:[%s1 + $0x20] sm:$0xf]
      %v233 = vld [vmem:[%s1 + $0x24] sm:$0xf]
      %v234 = vld [vmem:[%s1 + $0x28] sm:$0xf]
      %v235 = vld [vmem:[%s1 + $0x2c] sm:$0xf]
      %v236 = vld [vmem:[%s1 + $0x30] sm:$0xf]
      %v237 = vld [vmem:[%s1 + $0x34] sm:$0xf]
      %v238 = vld [vmem:[%s1 + $0x38] sm:$0xf]
      %v239 = vld [vmem:[%s1 + $0x3c] sm:$0xf]
      %v240 = vld [vmem:[%s219 + $0x4] sm:$0x1]
      %v241 = vld [vmem:[%s219 + $0xc] sm:$0x1]
      %v242 = vld [vmem:[%s219 + $0x14] sm:$0x1]
      %v243 = vld [vmem:[%s219 + $0x1c] sm:$0x1]
      %vm244 = vsmask.f32 3328
      %vm245 = vsmask.f32 7440
      %vm246 = vmor %vm244, %vm245
      %v248 = vshrl.u32 %v220, 16
      %v250 = vrot.slane %v248, 4
      %v251 = vshll.u32 %v220, 16
      %v253 = vrot.slane %v251, 5
      %v254 = vor.u32 %v250, %v253
      %v255 = vrot.slane %v254, 4
      %v257 = vshll.u32 %v240, 16
      %v259 = vrot.slane %v257, 5
      %v260 = vsel %vm246, %v255, %v259
      %v262 = vshrl.u32 %v221, 16
      %v264 = vrot.slane %v262, 4
      %v265 = vshll.u32 %v221, 16
      %v267 = vrot.slane %v265, 5
      %v268 = vor.u32 %v264, %v267
      %v269 = vrot.slane %v268, 4
      %v271 = vshll.u32 %v241, 16
      %v273 = vrot.slane %v271, 5
      %v274 = vsel %vm246, %v269, %v273
      %v276 = vshrl.u32 %v222, 16
      %v278 = vrot.slane %v276, 4
      %v279 = vshll.u32 %v222, 16
      %v281 = vrot.slane %v279, 5
      %v282 = vor.u32 %v278, %v281
      %v283 = vrot.slane %v282, 4
      %v285 = vshll.u32 %v242, 16
      %v287 = vrot.slane %v285, 5
      %v288 = vsel %vm246, %v283, %v287
      %v290 = vshrl.u32 %v223, 16
      %v292 = vrot.slane %v290, 4
      %v293 = vshll.u32 %v223, 16
      %v295 = vrot.slane %v293, 5
      %v296 = vor.u32 %v292, %v295
      %v297 = vrot.slane %v296, 4
      %v299 = vshll.u32 %v243, 16
      %v301 = vrot.slane %v299, 5
      %v302 = vsel %vm246, %v297, %v301
      %s303 = scalar_lea.vmem %s1, 64
      %v304 = vld [vmem:[%s303] sm:$0xf]
      %v305 = vld [vmem:[%s303 + $0x4] sm:$0xf]
      %v306 = vld [vmem:[%s303 + $0x8] sm:$0xf]
      %v307 = vld [vmem:[%s303 + $0xc] sm:$0xf]
      %v308 = vld [vmem:[%s303 + $0x10] sm:$0xf]
      %v309 = vld [vmem:[%s303 + $0x14] sm:$0xf]
      %v310 = vld [vmem:[%s303 + $0x18] sm:$0xf]
      %v311 = vld [vmem:[%s303 + $0x1c] sm:$0xf]
      %v312 = vld [vmem:[%s303 + $0x20] sm:$0xf]
      %v313 = vld [vmem:[%s303 + $0x24] sm:$0xf]
      %v314 = vld [vmem:[%s303 + $0x28] sm:$0xf]
      %v315 = vld [vmem:[%s303 + $0x2c] sm:$0xf]
      %v316 = vld [vmem:[%s303 + $0x30] sm:$0xf]
      %v317 = vld [vmem:[%s303 + $0x34] sm:$0xf]
      %v318 = vld [vmem:[%s303 + $0x38] sm:$0xf]
      %v319 = vld [vmem:[%s303 + $0x3c] sm:$0xf]
      %v320 = vunpack.c.l.b16 %v260
      %v321 = vunpack.c.l.b16 %v274
      %v322 = vunpack.c.l.b16 %v288
      %v323 = vunpack.c.l.b16 %v302
      %v324 = vpack.c.b16 %v321, %v320
      %v325 = vpack.c.b16 %v323, %v322
      %v344 = vunpack.c.l.b16 %v304
      %v345 = vunpack.c.l.b16 %v305
      %v346 = vunpack.c.l.b16 %v306
      %v347 = vunpack.c.l.b16 %v307
      %v348 = vunpack.c.l.b16 %v308
      %v349 = vunpack.c.l.b16 %v309
      %v350 = vunpack.c.l.b16 %v310
      %v351 = vunpack.c.l.b16 %v311
      %v352 = vunpack.c.l.b16 %v312
      %v353 = vunpack.c.l.b16 %v313
      %v354 = vunpack.c.l.b16 %v314
      %v355 = vunpack.c.l.b16 %v315
      %v356 = vunpack.c.l.b16 %v316
      %v357 = vunpack.c.l.b16 %v317
      %v358 = vunpack.c.l.b16 %v318
      %v359 = vunpack.c.l.b16 %v319
      %v360 = vpack.c.b16 %v345, %v344
      %v361 = vpack.c.b16 %v347, %v346
      %v362 = vpack.c.b16 %v349, %v348
      %v363 = vpack.c.b16 %v351, %v350
      %v364 = vpack.c.b16 %v353, %v352
      %v365 = vpack.c.b16 %v355, %v354
      %v366 = vpack.c.b16 %v357, %v356
      %v367 = vpack.c.b16 %v359, %v358
      %376 = vmatprep.subr.bf16.mxu0 0
      %377 = vmatpush1.bf16.msra.mxu0 %v360
      %378 = vmatprep.subr.bf16.mxu0 0
      %379 = vmatpush1.bf16.msra.mxu0 %v361
      %380 = vmatprep.subr.bf16.mxu0 0
      %381 = vmatpush1.bf16.msra.mxu0 %v362
      %382 = vmatprep.subr.bf16.mxu0 0
      %383 = vmatpush1.bf16.msra.mxu0 %v363
      %384 = vmatprep.subr.bf16.mxu0 0
      %385 = vmatpush1.bf16.msra.mxu0 %v364
      %386 = vmatprep.subr.bf16.mxu0 0
      %387 = vmatpush1.bf16.msra.mxu0 %v365
      %388 = vmatprep.subr.bf16.mxu0 0
      %389 = vmatpush1.bf16.msra.mxu0 %v366
      %390 = vmatprep.subr.bf16.mxu0 0
      %391 = vmatpush1.bf16.msra.mxu0 %v367
      %392 = vmatprep.subr.bf16.mxu0 0
      %393 = vmatpush1.bf16.msra.mxu0 0
      %394 = vmatprep.subr.bf16.mxu0 0
      %395 = vmatpush1.bf16.msra.mxu0 0
      %396 = vmatprep.subr.bf16.mxu0 0
      %397 = vmatpush1.bf16.msra.mxu0 0
      %398 = vmatprep.subr.bf16.mxu0 0
      %399 = vmatpush1.bf16.msra.mxu0 0
      %400 = vmatprep.subr.bf16.mxu0 0
      %401 = vmatpush1.bf16.msra.mxu0 0
      %402 = vmatprep.subr.bf16.mxu0 0
      %403 = vmatpush1.bf16.msra.mxu0 0
      %404 = vmatprep.subr.bf16.mxu0 0
      %405 = vmatpush1.bf16.msra.mxu0 0
      %406 = vmatprep.subr.bf16.mxu0 0
      %407 = vmatpush1.bf16.msra.mxu0 0
      %408 = vmatprep.mubr.bf16.mxu0 0
      %409 = vmatmul.mubr.bf16.gmra.mrb[0].mxu0 %v324
      %v410 = vpop.f32.mrb[0].mxu0
      %v411 = vadd.f32 0.0, %v410
      %v412 = vpop.f32.mrb[0].mxu0
      %v413 = vpop.f32.mrb[0].mxu0
      %v414 = vadd.f32 0.0, %v413
      %v415 = vpop.f32.mrb[0].mxu0
      %416 = vmatprep.mubr.bf16.mxu0 0
      %417 = vmatmul.mubr.bf16.gmra.mrb[0].mxu0 %v325
      %v418 = vpop.f32.mrb[0].mxu0
      %v419 = vadd.f32 0.0, %v418
      %v420 = vpop.f32.mrb[0].mxu0
      %v421 = vpop.f32.mrb[0].mxu0
      %v422 = vadd.f32 0.0, %v421
      %v423 = vpop.f32.mrb[0].mxu0
      %424 = vdwg.mxu0
      %v429 = vunpack.c.l.b16 %v220
      %v430 = vunpack.c.l.b16 %v221
      %v431 = vunpack.c.l.b16 %v222
      %v432 = vunpack.c.l.b16 %v223
      %v433 = vpack.c.b16 %v430, %v429
      %v434 = vpack.c.b16 %v432, %v431
      %v453 = vunpack.c.l.b16 %v224
      %v454 = vunpack.c.l.b16 %v225
      %v455 = vunpack.c.l.b16 %v226
      %v456 = vunpack.c.l.b16 %v227
      %v457 = vunpack.c.l.b16 %v228
      %v458 = vunpack.c.l.b16 %v229
      %v459 = vunpack.c.l.b16 %v230
      %v460 = vunpack.c.l.b16 %v231
      %v461 = vunpack.c.l.b16 %v232
      %v462 = vunpack.c.l.b16 %v233
      %v463 = vunpack.c.l.b16 %v234
      %v464 = vunpack.c.l.b16 %v235
      %v465 = vunpack.c.l.b16 %v236
      %v466 = vunpack.c.l.b16 %v237
      %v467 = vunpack.c.l.b16 %v238
      %v468 = vunpack.c.l.b16 %v239
      %v469 = vpack.c.b16 %v454, %v453
      %v470 = vpack.c.b16 %v456, %v455
      %v471 = vpack.c.b16 %v458, %v457
      %v472 = vpack.c.b16 %v460, %v459
      %v473 = vpack.c.b16 %v462, %v461
      %v474 = vpack.c.b16 %v464, %v463
      %v475 = vpack.c.b16 %v466, %v465
      %v476 = vpack.c.b16 %v468, %v467
      %485 = vmatprep.subr.bf16.mxu0 0
      %486 = vmatpush1.bf16.msra.mxu0 %v469
      %487 = vmatprep.subr.bf16.mxu0 0
      %488 = vmatpush1.bf16.msra.mxu0 %v470
      %489 = vmatprep.subr.bf16.mxu0 0
      %490 = vmatpush1.bf16.msra.mxu0 %v471
      %491 = vmatprep.subr.bf16.mxu0 0
      %492 = vmatpush1.bf16.msra.mxu0 %v472
      %493 = vmatprep.subr.bf16.mxu0 0
      %494 = vmatpush1.bf16.msra.mxu0 %v473
      %495 = vmatprep.subr.bf16.mxu0 0
      %496 = vmatpush1.bf16.msra.mxu0 %v474
      %497 = vmatprep.subr.bf16.mxu0 0
      %498 = vmatpush1.bf16.msra.mxu0 %v475
      %499 = vmatprep.subr.bf16.mxu0 0
      %500 = vmatpush1.bf16.msra.mxu0 %v476
      %501 = vmatprep.subr.bf16.mxu0 0
      %502 = vmatpush1.bf16.msra.mxu0 0
      %503 = vmatprep.subr.bf16.mxu0 0
      %504 = vmatpush1.bf16.msra.mxu0 0
      %505 = vmatprep.subr.bf16.mxu0 0
      %506 = vmatpush1.bf16.msra.mxu0 0
      %507 = vmatprep.subr.bf16.mxu0 0
      %508 = vmatpush1.bf16.msra.mxu0 0
      %509 = vmatprep.subr.bf16.mxu0 0
      %510 = vmatpush1.bf16.msra.mxu0 0
      %511 = vmatprep.subr.bf16.mxu0 0
      %512 = vmatpush1.bf16.msra.mxu0 0
      %513 = vmatprep.subr.bf16.mxu0 0
      %514 = vmatpush1.bf16.msra.mxu0 0
      %515 = vmatprep.subr.bf16.mxu0 0
      %516 = vmatpush1.bf16.msra.mxu0 0
      %517 = vmatprep.mubr.bf16.mxu0 0
      %518 = vmatmul.mubr.bf16.gmra.mrb[0].mxu0 %v433
      %v519 = vpop.f32.mrb[0].mxu0
      %v520 = vadd.f32 %v411, %v519
      %v521 = vpop.f32.mrb[0].mxu0
      %v522 = vpop.f32.mrb[0].mxu0
      %v523 = vadd.f32 %v414, %v522
      %v524 = vpop.f32.mrb[0].mxu0
      %525 = vmatprep.mubr.bf16.mxu0 0
      %526 = vmatmul.mubr.bf16.gmra.mrb[0].mxu0 %v434
      %v527 = vpop.f32.mrb[0].mxu0
      %v528 = vadd.f32 %v419, %v527
      %v529 = vpop.f32.mrb[0].mxu0
      %v530 = vpop.f32.mrb[0].mxu0
      %v531 = vadd.f32 %v422, %v530
      %v532 = vpop.f32.mrb[0].mxu0
      %533 = vdwg.mxu0
      %v534 = vld [vmem:[%s219] sm:$0xe]
      %v535 = vld [vmem:[%s219 + $0x8] sm:$0xe]
      %v536 = vld [vmem:[%s219 + $0x10] sm:$0xe]
      %v537 = vld [vmem:[%s219 + $0x18] sm:$0xe]
      %vm546 = vcmask 1042432
      %vm547 = vcmask 1046532
      %vm548 = vmor %vm546, %vm547
      %v549 = vrot.slane %v534, 5
      %v550 = vrot.slane %v549, 4
      %v551 = vrot.slane %v240, 5
      %v552 = vsel %vm548, %v550, %v551
      %v553 = vrot.slane %v535, 5
      %v554 = vrot.slane %v553, 4
      %v555 = vrot.slane %v241, 5
      %v556 = vsel %vm548, %v554, %v555
      %v557 = vrot.slane %v536, 5
      %v558 = vrot.slane %v557, 4
      %v559 = vrot.slane %v242, 5
      %v560 = vsel %vm548, %v558, %v559
      %v561 = vrot.slane %v537, 5
      %v562 = vrot.slane %v561, 4
      %v563 = vrot.slane %v243, 5
      %v564 = vsel %vm548, %v562, %v563
      %s565 = scalar_lea.vmem %s1, 128
      %v566 = vld [vmem:[%s565] sm:$0xf]
      %v567 = vld [vmem:[%s565 + $0x4] sm:$0xf]
      %v568 = vld [vmem:[%s565 + $0x8] sm:$0xf]
      %v569 = vld [vmem:[%s565 + $0xc] sm:$0xf]
      %v570 = vld [vmem:[%s565 + $0x10] sm:$0xf]
      %v571 = vld [vmem:[%s565 + $0x14] sm:$0xf]
      %v572 = vld [vmem:[%s565 + $0x18] sm:$0xf]
      %v573 = vld [vmem:[%s565 + $0x1c] sm:$0xf]
      %v574 = vld [vmem:[%s565 + $0x20] sm:$0xf]
      %v575 = vld [vmem:[%s565 + $0x24] sm:$0xf]
      %v576 = vld [vmem:[%s565 + $0x28] sm:$0xf]
      %v577 = vld [vmem:[%s565 + $0x2c] sm:$0xf]
      %v578 = vld [vmem:[%s565 + $0x30] sm:$0xf]
      %v579 = vld [vmem:[%s565 + $0x34] sm:$0xf]
      %v580 = vld [vmem:[%s565 + $0x38] sm:$0xf]
      %v581 = vld [vmem:[%s565 + $0x3c] sm:$0xf]
      %v582 = vunpack.c.l.b16 %v552
      %v583 = vunpack.c.l.b16 %v556
      %v584 = vunpack.c.l.b16 %v560
      %v585 = vunpack.c.l.b16 %v564
      %v586 = vpack.c.b16 %v583, %v582
      %v587 = vpack.c.b16 %v585, %v584
      %v606 = vunpack.c.l.b16 %v566
      %v607 = vunpack.c.l.b16 %v567
      %v608 = vunpack.c.l.b16 %v568
      %v609 = vunpack.c.l.b16 %v569
      %v610 = vunpack.c.l.b16 %v570
      %v611 = vunpack.c.l.b16 %v571
      %v612 = vunpack.c.l.b16 %v572
      %v613 = vunpack.c.l.b16 %v573
      %v614 = vunpack.c.l.b16 %v574
      %v615 = vunpack.c.l.b16 %v575
      %v616 = vunpack.c.l.b16 %v576
      %v617 = vunpack.c.l.b16 %v577
      %v618 = vunpack.c.l.b16 %v578
      %v619 = vunpack.c.l.b16 %v579
      %v620 = vunpack.c.l.b16 %v580
      %v621 = vunpack.c.l.b16 %v581
      %v622 = vpack.c.b16 %v607, %v606
      %v623 = vpack.c.b16 %v609, %v608
      %v624 = vpack.c.b16 %v611, %v610
      %v625 = vpack.c.b16 %v613, %v612
      %v626 = vpack.c.b16 %v615, %v614
      %v627 = vpack.c.b16 %v617, %v616
      %v628 = vpack.c.b16 %v619, %v618
      %v629 = vpack.c.b16 %v621, %v620
      %638 = vmatprep.subr.bf16.mxu0 0
      %639 = vmatpush1.bf16.msra.mxu0 %v622
      %640 = vmatprep.subr.bf16.mxu0 0
      %641 = vmatpush1.bf16.msra.mxu0 %v623
      %642 = vmatprep.subr.bf16.mxu0 0
      %643 = vmatpush1.bf16.msra.mxu0 %v624
      %644 = vmatprep.subr.bf16.mxu0 0
      %645 = vmatpush1.bf16.msra.mxu0 %v625
      %646 = vmatprep.subr.bf16.mxu0 0
      %647 = vmatpush1.bf16.msra.mxu0 %v626
      %648 = vmatprep.subr.bf16.mxu0 0
      %649 = vmatpush1.bf16.msra.mxu0 %v627
      %650 = vmatprep.subr.bf16.mxu0 0
      %651 = vmatpush1.bf16.msra.mxu0 %v628
      %652 = vmatprep.subr.bf16.mxu0 0
      %653 = vmatpush1.bf16.msra.mxu0 %v629
      %654 = vmatprep.subr.bf16.mxu0 0
      %655 = vmatpush1.bf16.msra.mxu0 0
      %656 = vmatprep.subr.bf16.mxu0 0
      %657 = vmatpush1.bf16.msra.mxu0 0
      %658 = vmatprep.subr.bf16.mxu0 0
      %659 = vmatpush1.bf16.msra.mxu0 0
      %660 = vmatprep.subr.bf16.mxu0 0
      %661 = vmatpush1.bf16.msra.mxu0 0
      %662 = vmatprep.subr.bf16.mxu0 0
      %663 = vmatpush1.bf16.msra.mxu0 0
      %664 = vmatprep.subr.bf16.mxu0 0
      %665 = vmatpush1.bf16.msra.mxu0 0
      %666 = vmatprep.subr.bf16.mxu0 0
      %667 = vmatpush1.bf16.msra.mxu0 0
      %668 = vmatprep.subr.bf16.mxu0 0
      %669 = vmatpush1.bf16.msra.mxu0 0
      %670 = vmatprep.mubr.bf16.mxu0 0
      %671 = vmatmul.mubr.bf16.gmra.mrb[0].mxu0 %v586
      %v672 = vpop.f32.mrb[0].mxu0
      %v673 = vadd.f32 0.0, %v672
      %v674 = vpop.f32.mrb[0].mxu0
      %v675 = vpop.f32.mrb[0].mxu0
      %v676 = vadd.f32 0.0, %v675
      %v677 = vpop.f32.mrb[0].mxu0
      %678 = vmatprep.mubr.bf16.mxu0 0
      %679 = vmatmul.mubr.bf16.gmra.mrb[0].mxu0 %v587
      %v680 = vpop.f32.mrb[0].mxu0
      %v681 = vadd.f32 0.0, %v680
      %v682 = vpop.f32.mrb[0].mxu0
      %v683 = vpop.f32.mrb[0].mxu0
      %v684 = vadd.f32 0.0, %v683
      %v685 = vpop.f32.mrb[0].mxu0
      %686 = vdwg.mxu0
      %v687 = vadd.f32 %v520, %v673
      %v688 = vadd.f32 %v523, %v676
      %v689 = vadd.f32 %v528, %v681
      %v690 = vadd.f32 %v531, %v684
      %s691 = sadd.s32 %s216, 1
      %s692 = smul.u32 %s691, 2
      %s693 = smul.addr %s692, 4
      %s694 = scalar_lea.vmem %s196, %s693
      %v695 = vld [vmem:[%s694] sm:$0xf]
      %v696 = vld [vmem:[%s694 + $0x8] sm:$0xf]
      %v697 = vld [vmem:[%s694 + $0x10] sm:$0xf]
      %v698 = vld [vmem:[%s694 + $0x18] sm:$0xf]
      %s699 = scalar_lea.vmem %s1, 192
      %v700 = vld [vmem:[%s699] sm:$0xf]
      %v701 = vld [vmem:[%s699 + $0x4] sm:$0xf]
      %v702 = vld [vmem:[%s699 + $0x8] sm:$0xf]
      %v703 = vld [vmem:[%s699 + $0xc] sm:$0xf]
      %v704 = vld [vmem:[%s699 + $0x10] sm:$0xf]
      %v705 = vld [vmem:[%s699 + $0x14] sm:$0xf]
      %v706 = vld [vmem:[%s699 + $0x18] sm:$0xf]
      %v707 = vld [vmem:[%s699 + $0x1c] sm:$0xf]
      %v708 = vld [vmem:[%s699 + $0x20] sm:$0xf]
      %v709 = vld [vmem:[%s699 + $0x24] sm:$0xf]
      %v710 = vld [vmem:[%s699 + $0x28] sm:$0xf]
      %v711 = vld [vmem:[%s699 + $0x2c] sm:$0xf]
      %v712 = vld [vmem:[%s699 + $0x30] sm:$0xf]
      %v713 = vld [vmem:[%s699 + $0x34] sm:$0xf]
      %v714 = vld [vmem:[%s699 + $0x38] sm:$0xf]
      %v715 = vld [vmem:[%s699 + $0x3c] sm:$0xf]
      %v720 = vunpack.c.l.b16 %v695
      %v721 = vunpack.c.l.b16 %v696
      %v722 = vunpack.c.l.b16 %v697
      %v723 = vunpack.c.l.b16 %v698
      %v724 = vpack.c.b16 %v721, %v720
      %v725 = vpack.c.b16 %v723, %v722
      %v744 = vunpack.c.l.b16 %v700
      %v745 = vunpack.c.l.b16 %v701
      %v746 = vunpack.c.l.b16 %v702
      %v747 = vunpack.c.l.b16 %v703
      %v748 = vunpack.c.l.b16 %v704
      %v749 = vunpack.c.l.b16 %v705
      %v750 = vunpack.c.l.b16 %v706
      %v751 = vunpack.c.l.b16 %v707
      %v752 = vunpack.c.l.b16 %v708
      %v753 = vunpack.c.l.b16 %v709
      %v754 = vunpack.c.l.b16 %v710
      %v755 = vunpack.c.l.b16 %v711
      %v756 = vunpack.c.l.b16 %v712
      %v757 = vunpack.c.l.b16 %v713
      %v758 = vunpack.c.l.b16 %v714
      %v759 = vunpack.c.l.b16 %v715
      %v760 = vpack.c.b16 %v745, %v744
      %v761 = vpack.c.b16 %v747, %v746
      %v762 = vpack.c.b16 %v749, %v748
      %v763 = vpack.c.b16 %v751, %v750
      %v764 = vpack.c.b16 %v753, %v752
      %v765 = vpack.c.b16 %v755, %v754
      %v766 = vpack.c.b16 %v757, %v756
      %v767 = vpack.c.b16 %v759, %v758
      %776 = vmatprep.subr.bf16.mxu0 0
      %777 = vmatpush1.bf16.msra.mxu0 %v760
      %778 = vmatprep.subr.bf16.mxu0 0
      %779 = vmatpush1.bf16.msra.mxu0 %v761
      %780 = vmatprep.subr.bf16.mxu0 0
      %781 = vmatpush1.bf16.msra.mxu0 %v762
      %782 = vmatprep.subr.bf16.mxu0 0
      %783 = vmatpush1.bf16.msra.mxu0 %v763
      %784 = vmatprep.subr.bf16.mxu0 0
      %785 = vmatpush1.bf16.msra.mxu0 %v764
      %786 = vmatprep.subr.bf16.mxu0 0
      %787 = vmatpush1.bf16.msra.mxu0 %v765
      %788 = vmatprep.subr.bf16.mxu0 0
      %789 = vmatpush1.bf16.msra.mxu0 %v766
      %790 = vmatprep.subr.bf16.mxu0 0
      %791 = vmatpush1.bf16.msra.mxu0 %v767
      %792 = vmatprep.subr.bf16.mxu0 0
      %793 = vmatpush1.bf16.msra.mxu0 0
      %794 = vmatprep.subr.bf16.mxu0 0
      %795 = vmatpush1.bf16.msra.mxu0 0
      %796 = vmatprep.subr.bf16.mxu0 0
      %797 = vmatpush1.bf16.msra.mxu0 0
      %798 = vmatprep.subr.bf16.mxu0 0
      %799 = vmatpush1.bf16.msra.mxu0 0
      %800 = vmatprep.subr.bf16.mxu0 0
      %801 = vmatpush1.bf16.msra.mxu0 0
      %802 = vmatprep.subr.bf16.mxu0 0
      %803 = vmatpush1.bf16.msra.mxu0 0
      %804 = vmatprep.subr.bf16.mxu0 0
      %805 = vmatpush1.bf16.msra.mxu0 0
      %806 = vmatprep.subr.bf16.mxu0 0
      %807 = vmatpush1.bf16.msra.mxu0 0
      %808 = vmatprep.mubr.bf16.mxu0 0
      %809 = vmatmul.mubr.bf16.gmra.mrb[0].mxu0 %v724
      %v810 = vpop.f32.mrb[0].mxu0
      %v811 = vadd.f32 0.0, %v810
      %v812 = vpop.f32.mrb[0].mxu0
      %v813 = vpop.f32.mrb[0].mxu0
      %v814 = vadd.f32 0.0, %v813
      %v815 = vpop.f32.mrb[0].mxu0
      %816 = vmatprep.mubr.bf16.mxu0 0
      %817 = vmatmul.mubr.bf16.gmra.mrb[0].mxu0 %v725
      %v818 = vpop.f32.mrb[0].mxu0
      %v819 = vadd.f32 0.0, %v818
      %v820 = vpop.f32.mrb[0].mxu0
      %v821 = vpop.f32.mrb[0].mxu0
      %v822 = vadd.f32 0.0, %v821
      %v823 = vpop.f32.mrb[0].mxu0
      %824 = vdwg.mxu0
      %v825 = vadd.f32 %v687, %v811
      %v826 = vadd.f32 %v688, %v814
      %v827 = vadd.f32 %v689, %v819
      %v828 = vadd.f32 %v690, %v822
      %v829 = vld [vmem:[%s694] sm:$0xf]
      %v830 = vld [vmem:[%s694 + $0x4] sm:$0x1]
      %v831 = vld [vmem:[%s694 + $0x8] sm:$0xf]
      %v832 = vld [vmem:[%s694 + $0xc] sm:$0x1]
      %v833 = vld [vmem:[%s694 + $0x10] sm:$0xf]
      %v834 = vld [vmem:[%s694 + $0x14] sm:$0x1]
      %v835 = vld [vmem:[%s694 + $0x18] sm:$0xf]
      %v836 = vld [vmem:[%s694 + $0x1c] sm:$0x1]
      %v838 = vshrl.u32 %v829, 16
      %v840 = vrot.slane %v838, 4
      %v841 = vshll.u32 %v829, 16
      %v843 = vrot.slane %v841, 5
      %v844 = vor.u32 %v840, %v843
      %v845 = vrot.slane %v844, 4
      %v847 = vshll.u32 %v830, 16
      %v849 = vrot.slane %v847, 5
      %v850 = vsel %vm246, %v845, %v849
      %v852 = vshrl.u32 %v831, 16
      %v854 = vrot.slane %v852, 4
      %v855 = vshll.u32 %v831, 16
      %v857 = vrot.slane %v855, 5
      %v858 = vor.u32 %v854, %v857
      %v859 = vrot.slane %v858, 4
      %v861 = vshll.u32 %v832, 16
      %v863 = vrot.slane %v861, 5
      %v864 = vsel %vm246, %v859, %v863
      %v866 = vshrl.u32 %v833, 16
      %v868 = vrot.slane %v866, 4
      %v869 = vshll.u32 %v833, 16
      %v871 = vrot.slane %v869, 5
      %v872 = vor.u32 %v868, %v871
      %v873 = vrot.slane %v872, 4
      %v875 = vshll.u32 %v834, 16
      %v877 = vrot.slane %v875, 5
      %v878 = vsel %vm246, %v873, %v877
      %v880 = vshrl.u32 %v835, 16
      %v882 = vrot.slane %v880, 4
      %v883 = vshll.u32 %v835, 16
      %v885 = vrot.slane %v883, 5
      %v886 = vor.u32 %v882, %v885
      %v887 = vrot.slane %v886, 4
      %v889 = vshll.u32 %v836, 16
      %v891 = vrot.slane %v889, 5
      %v892 = vsel %vm246, %v887, %v891
      %s893 = scalar_lea.vmem %s1, 256
      %v894 = vld [vmem:[%s893] sm:$0xf]
      %v895 = vld [vmem:[%s893 + $0x4] sm:$0xf]
      %v896 = vld [vmem:[%s893 + $0x8] sm:$0xf]
      %v897 = vld [vmem:[%s893 + $0xc] sm:$0xf]
      %v898 = vld [vmem:[%s893 + $0x10] sm:$0xf]
      %v899 = vld [vmem:[%s893 + $0x14] sm:$0xf]
      %v900 = vld [vmem:[%s893 + $0x18] sm:$0xf]
      %v901 = vld [vmem:[%s893 + $0x1c] sm:$0xf]
      %v902 = vld [vmem:[%s893 + $0x20] sm:$0xf]
      %v903 = vld [vmem:[%s893 + $0x24] sm:$0xf]
      %v904 = vld [vmem:[%s893 + $0x28] sm:$0xf]
      %v905 = vld [vmem:[%s893 + $0x2c] sm:$0xf]
      %v906 = vld [vmem:[%s893 + $0x30] sm:$0xf]
      %v907 = vld [vmem:[%s893 + $0x34] sm:$0xf]
      %v908 = vld [vmem:[%s893 + $0x38] sm:$0xf]
      %v909 = vld [vmem:[%s893 + $0x3c] sm:$0xf]
      %v910 = vunpack.c.l.b16 %v850
      %v911 = vunpack.c.l.b16 %v864
      %v912 = vunpack.c.l.b16 %v878
      %v913 = vunpack.c.l.b16 %v892
      %v914 = vpack.c.b16 %v911, %v910
      %v915 = vpack.c.b16 %v913, %v912
      %v934 = vunpack.c.l.b16 %v894
      %v935 = vunpack.c.l.b16 %v895
      %v936 = vunpack.c.l.b16 %v896
      %v937 = vunpack.c.l.b16 %v897
      %v938 = vunpack.c.l.b16 %v898
      %v939 = vunpack.c.l.b16 %v899
      %v940 = vunpack.c.l.b16 %v900
      %v941 = vunpack.c.l.b16 %v901
      %v942 = vunpack.c.l.b16 %v902
      %v943 = vunpack.c.l.b16 %v903
      %v944 = vunpack.c.l.b16 %v904
      %v945 = vunpack.c.l.b16 %v905
      %v946 = vunpack.c.l.b16 %v906
      %v947 = vunpack.c.l.b16 %v907
      %v948 = vunpack.c.l.b16 %v908
      %v949 = vunpack.c.l.b16 %v909
      %v950 = vpack.c.b16 %v935, %v934
      %v951 = vpack.c.b16 %v937, %v936
      %v952 = vpack.c.b16 %v939, %v938
      %v953 = vpack.c.b16 %v941, %v940
      %v954 = vpack.c.b16 %v943, %v942
      %v955 = vpack.c.b16 %v945, %v944
      %v956 = vpack.c.b16 %v947, %v946
      %v957 = vpack.c.b16 %v949, %v948
      %966 = vmatprep.subr.bf16.mxu0 0
      %967 = vmatpush1.bf16.msra.mxu0 %v950
      %968 = vmatprep.subr.bf16.mxu0 0
      %969 = vmatpush1.bf16.msra.mxu0 %v951
      %970 = vmatprep.subr.bf16.mxu0 0
      %971 = vmatpush1.bf16.msra.mxu0 %v952
      %972 = vmatprep.subr.bf16.mxu0 0
      %973 = vmatpush1.bf16.msra.mxu0 %v953
      %974 = vmatprep.subr.bf16.mxu0 0
      %975 = vmatpush1.bf16.msra.mxu0 %v954
      %976 = vmatprep.subr.bf16.mxu0 0
      %977 = vmatpush1.bf16.msra.mxu0 %v955
      %978 = vmatprep.subr.bf16.mxu0 0
      %979 = vmatpush1.bf16.msra.mxu0 %v956
      %980 = vmatprep.subr.bf16.mxu0 0
      %981 = vmatpush1.bf16.msra.mxu0 %v957
      %982 = vmatprep.subr.bf16.mxu0 0
      %983 = vmatpush1.bf16.msra.mxu0 0
      %984 = vmatprep.subr.bf16.mxu0 0
      %985 = vmatpush1.bf16.msra.mxu0 0
      %986 = vmatprep.subr.bf16.mxu0 0
      %987 = vmatpush1.bf16.msra.mxu0 0
      %988 = vmatprep.subr.bf16.mxu0 0
      %989 = vmatpush1.bf16.msra.mxu0 0
      %990 = vmatprep.subr.bf16.mxu0 0
      %991 = vmatpush1.bf16.msra.mxu0 0
      %992 = vmatprep.subr.bf16.mxu0 0
      %993 = vmatpush1.bf16.msra.mxu0 0
      %994 = vmatprep.subr.bf16.mxu0 0
      %995 = vmatpush1.bf16.msra.mxu0 0
      %996 = vmatprep.subr.bf16.mxu0 0
      %997 = vmatpush1.bf16.msra.mxu0 0
      %998 = vmatprep.mubr.bf16.mxu0 0
      %999 = vmatmul.mubr.bf16.gmra.mrb[0].mxu0 %v914
      %v1000 = vpop.f32.mrb[0].mxu0
      %v1001 = vadd.f32 0.0, %v1000
      %v1002 = vpop.f32.mrb[0].mxu0
      %v1003 = vpop.f32.mrb[0].mxu0
      %v1004 = vadd.f32 0.0, %v1003
      %v1005 = vpop.f32.mrb[0].mxu0
      %1006 = vmatprep.mubr.bf16.mxu0 0
      %1007 = vmatmul.mubr.bf16.gmra.mrb[0].mxu0 %v915
      %v1008 = vpop.f32.mrb[0].mxu0
      %v1009 = vadd.f32 0.0, %v1008
      %v1010 = vpop.f32.mrb[0].mxu0
      %v1011 = vpop.f32.mrb[0].mxu0
      %v1012 = vadd.f32 0.0, %v1011
      %v1013 = vpop.f32.mrb[0].mxu0
      %1014 = vdwg.mxu0
      %v1015 = vadd.f32 %v825, %v1001
      %v1016 = vadd.f32 %v826, %v1004
      %v1017 = vadd.f32 %v827, %v1009
      %v1018 = vadd.f32 %v828, %v1012
      %v1019 = vld [vmem:[%s694] sm:$0xe]
      %v1020 = vld [vmem:[%s694 + $0x8] sm:$0xe]
      %v1021 = vld [vmem:[%s694 + $0x10] sm:$0xe]
      %v1022 = vld [vmem:[%s694 + $0x18] sm:$0xe]
      %v1031 = vrot.slane %v1019, 5
      %v1032 = vrot.slane %v1031, 4
      %v1033 = vrot.slane %v830, 5
      %v1034 = vsel %vm548, %v1032, %v1033
      %v1035 = vrot.slane %v1020, 5
      %v1036 = vrot.slane %v1035, 4
      %v1037 = vrot.slane %v832, 5
      %v1038 = vsel %vm548, %v1036, %v1037
      %v1039 = vrot.slane %v1021, 5
      %v1040 = vrot.slane %v1039, 4
      %v1041 = vrot.slane %v834, 5
      %v1042 = vsel %vm548, %v1040, %v1041
      %v1043 = vrot.slane %v1022, 5
      %v1044 = vrot.slane %v1043, 4
      %v1045 = vrot.slane %v836, 5
      %v1046 = vsel %vm548, %v1044, %v1045
      %s1047 = scalar_lea.vmem %s1, 320
      %v1048 = vld [vmem:[%s1047] sm:$0xf]
      %v1049 = vld [vmem:[%s1047 + $0x4] sm:$0xf]
      %v1050 = vld [vmem:[%s1047 + $0x8] sm:$0xf]
      %v1051 = vld [vmem:[%s1047 + $0xc] sm:$0xf]
      %v1052 = vld [vmem:[%s1047 + $0x10] sm:$0xf]
      %v1053 = vld [vmem:[%s1047 + $0x14] sm:$0xf]
      %v1054 = vld [vmem:[%s1047 + $0x18] sm:$0xf]
      %v1055 = vld [vmem:[%s1047 + $0x1c] sm:$0xf]
      %v1056 = vld [vmem:[%s1047 + $0x20] sm:$0xf]
      %v1057 = vld [vmem:[%s1047 + $0x24] sm:$0xf]
      %v1058 = vld [vmem:[%s1047 + $0x28] sm:$0xf]
      %v1059 = vld [vmem:[%s1047 + $0x2c] sm:$0xf]
      %v1060 = vld [vmem:[%s1047 + $0x30] sm:$0xf]
      %v1061 = vld [vmem:[%s1047 + $0x34] sm:$0xf]
      %v1062 = vld [vmem:[%s1047 + $0x38] sm:$0xf]
      %v1063 = vld [vmem:[%s1047 + $0x3c] sm:$0xf]
      %v1064 = vunpack.c.l.b16 %v1034
      %v1065 = vunpack.c.l.b16 %v1038
      %v1066 = vunpack.c.l.b16 %v1042
      %v1067 = vunpack.c.l.b16 %v1046
      %v1068 = vpack.c.b16 %v1065, %v1064
      %v1069 = vpack.c.b16 %v1067, %v1066
      %v1088 = vunpack.c.l.b16 %v1048
      %v1089 = vunpack.c.l.b16 %v1049
      %v1090 = vunpack.c.l.b16 %v1050
      %v1091 = vunpack.c.l.b16 %v1051
      %v1092 = vunpack.c.l.b16 %v1052
      %v1093 = vunpack.c.l.b16 %v1053
      %v1094 = vunpack.c.l.b16 %v1054
      %v1095 = vunpack.c.l.b16 %v1055
      %v1096 = vunpack.c.l.b16 %v1056
      %v1097 = vunpack.c.l.b16 %v1057
      %v1098 = vunpack.c.l.b16 %v1058
      %v1099 = vunpack.c.l.b16 %v1059
      %v1100 = vunpack.c.l.b16 %v1060
      %v1101 = vunpack.c.l.b16 %v1061
      %v1102 = vunpack.c.l.b16 %v1062
      %v1103 = vunpack.c.l.b16 %v1063
      %v1104 = vpack.c.b16 %v1089, %v1088
      %v1105 = vpack.c.b16 %v1091, %v1090
      %v1106 = vpack.c.b16 %v1093, %v1092
      %v1107 = vpack.c.b16 %v1095, %v1094
      %v1108 = vpack.c.b16 %v1097, %v1096
      %v1109 = vpack.c.b16 %v1099, %v1098
      %v1110 = vpack.c.b16 %v1101, %v1100
      %v1111 = vpack.c.b16 %v1103, %v1102
      %1120 = vmatprep.subr.bf16.mxu0 0
      %1121 = vmatpush1.bf16.msra.mxu0 %v1104
      %1122 = vmatprep.subr.bf16.mxu0 0
      %1123 = vmatpush1.bf16.msra.mxu0 %v1105
      %1124 = vmatprep.subr.bf16.mxu0 0
      %1125 = vmatpush1.bf16.msra.mxu0 %v1106
      %1126 = vmatprep.subr.bf16.mxu0 0
      %1127 = vmatpush1.bf16.msra.mxu0 %v1107
      %1128 = vmatprep.subr.bf16.mxu0 0
      %1129 = vmatpush1.bf16.msra.mxu0 %v1108
      %1130 = vmatprep.subr.bf16.mxu0 0
      %1131 = vmatpush1.bf16.msra.mxu0 %v1109
      %1132 = vmatprep.subr.bf16.mxu0 0
      %1133 = vmatpush1.bf16.msra.mxu0 %v1110
      %1134 = vmatprep.subr.bf16.mxu0 0
      %1135 = vmatpush1.bf16.msra.mxu0 %v1111
      %1136 = vmatprep.subr.bf16.mxu0 0
      %1137 = vmatpush1.bf16.msra.mxu0 0
      %1138 = vmatprep.subr.bf16.mxu0 0
      %1139 = vmatpush1.bf16.msra.mxu0 0
      %1140 = vmatprep.subr.bf16.mxu0 0
      %1141 = vmatpush1.bf16.msra.mxu0 0
      %1142 = vmatprep.subr.bf16.mxu0 0
      %1143 = vmatpush1.bf16.msra.mxu0 0
      %1144 = vmatprep.subr.bf16.mxu0 0
      %1145 = vmatpush1.bf16.msra.mxu0 0
      %1146 = vmatprep.subr.bf16.mxu0 0
      %1147 = vmatpush1.bf16.msra.mxu0 0
      %1148 = vmatprep.subr.bf16.mxu0 0
      %1149 = vmatpush1.bf16.msra.mxu0 0
      %1150 = vmatprep.subr.bf16.mxu0 0
      %1151 = vmatpush1.bf16.msra.mxu0 0
      %1152 = vmatprep.mubr.bf16.mxu0 0
      %1153 = vmatmul.mubr.bf16.gmra.mrb[0].mxu0 %v1068
      %v1154 = vpop.f32.mrb[0].mxu0
      %v1155 = vadd.f32 0.0, %v1154
      %v1156 = vpop.f32.mrb[0].mxu0
      %v1157 = vpop.f32.mrb[0].mxu0
      %v1158 = vadd.f32 0.0, %v1157
      %v1159 = vpop.f32.mrb[0].mxu0
      %1160 = vmatprep.mubr.bf16.mxu0 0
      %1161 = vmatmul.mubr.bf16.gmra.mrb[0].mxu0 %v1069
      %v1162 = vpop.f32.mrb[0].mxu0
      %v1163 = vadd.f32 0.0, %v1162
      %v1164 = vpop.f32.mrb[0].mxu0
      %v1165 = vpop.f32.mrb[0].mxu0
      %v1166 = vadd.f32 0.0, %v1165
      %v1167 = vpop.f32.mrb[0].mxu0
      %1168 = vdwg.mxu0
      %v1169 = vadd.f32 %v1015, %v1155
      %v1170 = vadd.f32 %v1016, %v1158
      %v1171 = vadd.f32 %v1017, %v1163
      %v1172 = vadd.f32 %v1018, %v1166
      %s1173 = sadd.s32 %s216, 2
      %s1174 = smul.u32 %s1173, 2
      %s1175 = smul.addr %s1174, 4
      %s1176 = scalar_lea.vmem %s196, %s1175
      %v1177 = vld [vmem:[%s1176] sm:$0xf]
      %v1178 = vld [vmem:[%s1176 + $0x8] sm:$0xf]
      %v1179 = vld [vmem:[%s1176 + $0x10] sm:$0xf]
      %v1180 = vld [vmem:[%s1176 + $0x18] sm:$0xf]
      %s1181 = scalar_lea.vmem %s1, 384
      %v1182 = vld [vmem:[%s1181] sm:$0xf]
      %v1183 = vld [vmem:[%s1181 + $0x4] sm:$0xf]
      %v1184 = vld [vmem:[%s1181 + $0x8] sm:$0xf]
      %v1185 = vld [vmem:[%s1181 + $0xc] sm:$0xf]
      %v1186 = vld [vmem:[%s1181 + $0x10] sm:$0xf]
      %v1187 = vld [vmem:[%s1181 + $0x14] sm:$0xf]
      %v1188 = vld [vmem:[%s1181 + $0x18] sm:$0xf]
      %v1189 = vld [vmem:[%s1181 + $0x1c] sm:$0xf]
      %v1190 = vld [vmem:[%s1181 + $0x20] sm:$0xf]
      %v1191 = vld [vmem:[%s1181 + $0x24] sm:$0xf]
      %v1192 = vld [vmem:[%s1181 + $0x28] sm:$0xf]
      %v1193 = vld [vmem:[%s1181 + $0x2c] sm:$0xf]
      %v1194 = vld [vmem:[%s1181 + $0x30] sm:$0xf]
      %v1195 = vld [vmem:[%s1181 + $0x34] sm:$0xf]
      %v1196 = vld [vmem:[%s1181 + $0x38] sm:$0xf]
      %v1197 = vld [vmem:[%s1181 + $0x3c] sm:$0xf]
      %v1202 = vunpack.c.l.b16 %v1177
      %v1203 = vunpack.c.l.b16 %v1178
      %v1204 = vunpack.c.l.b16 %v1179
      %v1205 = vunpack.c.l.b16 %v1180
      %v1206 = vpack.c.b16 %v1203, %v1202
      %v1207 = vpack.c.b16 %v1205, %v1204
      %v1226 = vunpack.c.l.b16 %v1182
      %v1227 = vunpack.c.l.b16 %v1183
      %v1228 = vunpack.c.l.b16 %v1184
      %v1229 = vunpack.c.l.b16 %v1185
      %v1230 = vunpack.c.l.b16 %v1186
      %v1231 = vunpack.c.l.b16 %v1187
      %v1232 = vunpack.c.l.b16 %v1188
      %v1233 = vunpack.c.l.b16 %v1189
      %v1234 = vunpack.c.l.b16 %v1190
      %v1235 = vunpack.c.l.b16 %v1191
      %v1236 = vunpack.c.l.b16 %v1192
      %v1237 = vunpack.c.l.b16 %v1193
      %v1238 = vunpack.c.l.b16 %v1194
      %v1239 = vunpack.c.l.b16 %v1195
      %v1240 = vunpack.c.l.b16 %v1196
      %v1241 = vunpack.c.l.b16 %v1197
      %v1242 = vpack.c.b16 %v1227, %v1226
      %v1243 = vpack.c.b16 %v1229, %v1228
      %v1244 = vpack.c.b16 %v1231, %v1230
      %v1245 = vpack.c.b16 %v1233, %v1232
      %v1246 = vpack.c.b16 %v1235, %v1234
      %v1247 = vpack.c.b16 %v1237, %v1236
      %v1248 = vpack.c.b16 %v1239, %v1238
      %v1249 = vpack.c.b16 %v1241, %v1240
      %1258 = vmatprep.subr.bf16.mxu0 0
      %1259 = vmatpush1.bf16.msra.mxu0 %v1242
      %1260 = vmatprep.subr.bf16.mxu0 0
      %1261 = vmatpush1.bf16.msra.mxu0 %v1243
      %1262 = vmatprep.subr.bf16.mxu0 0
      %1263 = vmatpush1.bf16.msra.mxu0 %v1244
      %1264 = vmatprep.subr.bf16.mxu0 0
      %1265 = vmatpush1.bf16.msra.mxu0 %v1245
      %1266 = vmatprep.subr.bf16.mxu0 0
      %1267 = vmatpush1.bf16.msra.mxu0 %v1246
      %1268 = vmatprep.subr.bf16.mxu0 0
      %1269 = vmatpush1.bf16.msra.mxu0 %v1247
      %1270 = vmatprep.subr.bf16.mxu0 0
      %1271 = vmatpush1.bf16.msra.mxu0 %v1248
      %1272 = vmatprep.subr.bf16.mxu0 0
      %1273 = vmatpush1.bf16.msra.mxu0 %v1249
      %1274 = vmatprep.subr.bf16.mxu0 0
      %1275 = vmatpush1.bf16.msra.mxu0 0
      %1276 = vmatprep.subr.bf16.mxu0 0
      %1277 = vmatpush1.bf16.msra.mxu0 0
      %1278 = vmatprep.subr.bf16.mxu0 0
      %1279 = vmatpush1.bf16.msra.mxu0 0
      %1280 = vmatprep.subr.bf16.mxu0 0
      %1281 = vmatpush1.bf16.msra.mxu0 0
      %1282 = vmatprep.subr.bf16.mxu0 0
      %1283 = vmatpush1.bf16.msra.mxu0 0
      %1284 = vmatprep.subr.bf16.mxu0 0
      %1285 = vmatpush1.bf16.msra.mxu0 0
      %1286 = vmatprep.subr.bf16.mxu0 0
      %1287 = vmatpush1.bf16.msra.mxu0 0
      %1288 = vmatprep.subr.bf16.mxu0 0
      %1289 = vmatpush1.bf16.msra.mxu0 0
      %1290 = vmatprep.mubr.bf16.mxu0 0
      %1291 = vmatmul.mubr.bf16.gmra.mrb[0].mxu0 %v1206
      %v1292 = vpop.f32.mrb[0].mxu0
      %v1293 = vadd.f32 0.0, %v1292
      %v1294 = vpop.f32.mrb[0].mxu0
      %v1295 = vpop.f32.mrb[0].mxu0
      %v1296 = vadd.f32 0.0, %v1295
      %v1297 = vpop.f32.mrb[0].mxu0
      %1298 = vmatprep.mubr.bf16.mxu0 0
      %1299 = vmatmul.mubr.bf16.gmra.mrb[0].mxu0 %v1207
      %v1300 = vpop.f32.mrb[0].mxu0
      %v1301 = vadd.f32 0.0, %v1300
      %v1302 = vpop.f32.mrb[0].mxu0
      %v1303 = vpop.f32.mrb[0].mxu0
      %v1304 = vadd.f32 0.0, %v1303
      %v1305 = vpop.f32.mrb[0].mxu0
      %1306 = vdwg.mxu0
      %v1307 = vadd.f32 %v1169, %v1293
      %v1308 = vadd.f32 %v1170, %v1296
      %v1309 = vadd.f32 %v1171, %v1301
      %v1310 = vadd.f32 %v1172, %v1304
      %v1311 = vld [vmem:[%s1176] sm:$0xf]
      %v1312 = vld [vmem:[%s1176 + $0x4] sm:$0x1]
      %v1313 = vld [vmem:[%s1176 + $0x8] sm:$0xf]
      %v1314 = vld [vmem:[%s1176 + $0xc] sm:$0x1]
      %v1315 = vld [vmem:[%s1176 + $0x10] sm:$0xf]
      %v1316 = vld [vmem:[%s1176 + $0x14] sm:$0x1]
      %v1317 = vld [vmem:[%s1176 + $0x18] sm:$0xf]
      %v1318 = vld [vmem:[%s1176 + $0x1c] sm:$0x1]
      %v1320 = vshrl.u32 %v1311, 16
      %v1322 = vrot.slane %v1320, 4
      %v1323 = vshll.u32 %v1311, 16
      %v1325 = vrot.slane %v1323, 5
      %v1326 = vor.u32 %v1322, %v1325
      %v1327 = vrot.slane %v1326, 4
      %v1329 = vshll.u32 %v1312, 16
      %v1331 = vrot.slane %v1329, 5
      %v1332 = vsel %vm246, %v1327, %v1331
      %v1334 = vshrl.u32 %v1313, 16
      %v1336 = vrot.slane %v1334, 4
      %v1337 = vshll.u32 %v1313, 16
      %v1339 = vrot.slane %v1337, 5
      %v1340 = vor.u32 %v1336, %v1339
      %v1341 = vrot.slane %v1340, 4
      %v1343 = vshll.u32 %v1314, 16
      %v1345 = vrot.slane %v1343, 5
      %v1346 = vsel %vm246, %v1341, %v1345
      %v1348 = vshrl.u32 %v1315, 16
      %v1350 = vrot.slane %v1348, 4
      %v1351 = vshll.u32 %v1315, 16
      %v1353 = vrot.slane %v1351, 5
      %v1354 = vor.u32 %v1350, %v1353
      %v1355 = vrot.slane %v1354, 4
      %v1357 = vshll.u32 %v1316, 16
      %v1359 = vrot.slane %v1357, 5
      %v1360 = vsel %vm246, %v1355, %v1359
      %v1362 = vshrl.u32 %v1317, 16
      %v1364 = vrot.slane %v1362, 4
      %v1365 = vshll.u32 %v1317, 16
      %v1367 = vrot.slane %v1365, 5
      %v1368 = vor.u32 %v1364, %v1367
      %v1369 = vrot.slane %v1368, 4
      %v1371 = vshll.u32 %v1318, 16
      %v1373 = vrot.slane %v1371, 5
      %v1374 = vsel %vm246, %v1369, %v1373
      %s1375 = scalar_lea.vmem %s1, 448
      %v1376 = vld [vmem:[%s1375] sm:$0xf]
      %v1377 = vld [vmem:[%s1375 + $0x4] sm:$0xf]
      %v1378 = vld [vmem:[%s1375 + $0x8] sm:$0xf]
      %v1379 = vld [vmem:[%s1375 + $0xc] sm:$0xf]
      %v1380 = vld [vmem:[%s1375 + $0x10] sm:$0xf]
      %v1381 = vld [vmem:[%s1375 + $0x14] sm:$0xf]
      %v1382 = vld [vmem:[%s1375 + $0x18] sm:$0xf]
      %v1383 = vld [vmem:[%s1375 + $0x1c] sm:$0xf]
      %v1384 = vld [vmem:[%s1375 + $0x20] sm:$0xf]
      %v1385 = vld [vmem:[%s1375 + $0x24] sm:$0xf]
      %v1386 = vld [vmem:[%s1375 + $0x28] sm:$0xf]
      %v1387 = vld [vmem:[%s1375 + $0x2c] sm:$0xf]
      %v1388 = vld [vmem:[%s1375 + $0x30] sm:$0xf]
      %v1389 = vld [vmem:[%s1375 + $0x34] sm:$0xf]
      %v1390 = vld [vmem:[%s1375 + $0x38] sm:$0xf]
      %v1391 = vld [vmem:[%s1375 + $0x3c] sm:$0xf]
      %v1392 = vunpack.c.l.b16 %v1332
      %v1393 = vunpack.c.l.b16 %v1346
      %v1394 = vunpack.c.l.b16 %v1360
      %v1395 = vunpack.c.l.b16 %v1374
      %v1396 = vpack.c.b16 %v1393, %v1392
      %v1397 = vpack.c.b16 %v1395, %v1394
      %v1416 = vunpack.c.l.b16 %v1376
      %v1417 = vunpack.c.l.b16 %v1377
      %v1418 = vunpack.c.l.b16 %v1378
      %v1419 = vunpack.c.l.b16 %v1379
      %v1420 = vunpack.c.l.b16 %v1380
      %v1421 = vunpack.c.l.b16 %v1381
      %v1422 = vunpack.c.l.b16 %v1382
      %v1423 = vunpack.c.l.b16 %v1383
      %v1424 = vunpack.c.l.b16 %v1384
      %v1425 = vunpack.c.l.b16 %v1385
      %v1426 = vunpack.c.l.b16 %v1386
      %v1427 = vunpack.c.l.b16 %v1387
      %v1428 = vunpack.c.l.b16 %v1388
      %v1429 = vunpack.c.l.b16 %v1389
      %v1430 = vunpack.c.l.b16 %v1390
      %v1431 = vunpack.c.l.b16 %v1391
      %v1432 = vpack.c.b16 %v1417, %v1416
      %v1433 = vpack.c.b16 %v1419, %v1418
      %v1434 = vpack.c.b16 %v1421, %v1420
      %v1435 = vpack.c.b16 %v1423, %v1422
      %v1436 = vpack.c.b16 %v1425, %v1424
      %v1437 = vpack.c.b16 %v1427, %v1426
      %v1438 = vpack.c.b16 %v1429, %v1428
      %v1439 = vpack.c.b16 %v1431, %v1430
      %1448 = vmatprep.subr.bf16.mxu0 0
      %1449 = vmatpush1.bf16.msra.mxu0 %v1432
      %1450 = vmatprep.subr.bf16.mxu0 0
      %1451 = vmatpush1.bf16.msra.mxu0 %v1433
      %1452 = vmatprep.subr.bf16.mxu0 0
      %1453 = vmatpush1.bf16.msra.mxu0 %v1434
      %1454 = vmatprep.subr.bf16.mxu0 0
      %1455 = vmatpush1.bf16.msra.mxu0 %v1435
      %1456 = vmatprep.subr.bf16.mxu0 0
      %1457 = vmatpush1.bf16.msra.mxu0 %v1436
      %1458 = vmatprep.subr.bf16.mxu0 0
      %1459 = vmatpush1.bf16.msra.mxu0 %v1437
      %1460 = vmatprep.subr.bf16.mxu0 0
      %1461 = vmatpush1.bf16.msra.mxu0 %v1438
      %1462 = vmatprep.subr.bf16.mxu0 0
      %1463 = vmatpush1.bf16.msra.mxu0 %v1439
      %1464 = vmatprep.subr.bf16.mxu0 0
      %1465 = vmatpush1.bf16.msra.mxu0 0
      %1466 = vmatprep.subr.bf16.mxu0 0
      %1467 = vmatpush1.bf16.msra.mxu0 0
      %1468 = vmatprep.subr.bf16.mxu0 0
      %1469 = vmatpush1.bf16.msra.mxu0 0
      %1470 = vmatprep.subr.bf16.mxu0 0
      %1471 = vmatpush1.bf16.msra.mxu0 0
      %1472 = vmatprep.subr.bf16.mxu0 0
      %1473 = vmatpush1.bf16.msra.mxu0 0
      %1474 = vmatprep.subr.bf16.mxu0 0
      %1475 = vmatpush1.bf16.msra.mxu0 0
      %1476 = vmatprep.subr.bf16.mxu0 0
      %1477 = vmatpush1.bf16.msra.mxu0 0
      %1478 = vmatprep.subr.bf16.mxu0 0
      %1479 = vmatpush1.bf16.msra.mxu0 0
      %1480 = vmatprep.mubr.bf16.mxu0 0
      %1481 = vmatmul.mubr.bf16.gmra.mrb[0].mxu0 %v1396
      %v1482 = vpop.f32.mrb[0].mxu0
      %v1483 = vadd.f32 0.0, %v1482
      %v1484 = vpop.f32.mrb[0].mxu0
      %v1485 = vpop.f32.mrb[0].mxu0
      %v1486 = vadd.f32 0.0, %v1485
      %v1487 = vpop.f32.mrb[0].mxu0
      %1488 = vmatprep.mubr.bf16.mxu0 0
      %1489 = vmatmul.mubr.bf16.gmra.mrb[0].mxu0 %v1397
      %v1490 = vpop.f32.mrb[0].mxu0
      %v1491 = vadd.f32 0.0, %v1490
      %v1492 = vpop.f32.mrb[0].mxu0
      %v1493 = vpop.f32.mrb[0].mxu0
      %v1494 = vadd.f32 0.0, %v1493
      %v1495 = vpop.f32.mrb[0].mxu0
      %1496 = vdwg.mxu0
      %v1497 = vadd.f32 %v1307, %v1483
      %v1498 = vadd.f32 %v1308, %v1486
      %v1499 = vadd.f32 %v1309, %v1491
      %v1500 = vadd.f32 %v1310, %v1494
      %v1501 = vld [vmem:[%s1176] sm:$0xe]
      %v1502 = vld [vmem:[%s1176 + $0x8] sm:$0xe]
      %v1503 = vld [vmem:[%s1176 + $0x10] sm:$0xe]
      %v1504 = vld [vmem:[%s1176 + $0x18] sm:$0xe]
      %v1513 = vrot.slane %v1501, 5
      %v1514 = vrot.slane %v1513, 4
      %v1515 = vrot.slane %v1312, 5
      %v1516 = vsel %vm548, %v1514, %v1515
      %v1517 = vrot.slane %v1502, 5
      %v1518 = vrot.slane %v1517, 4
      %v1519 = vrot.slane %v1314, 5
      %v1520 = vsel %vm548, %v1518, %v1519
      %v1521 = vrot.slane %v1503, 5
      %v1522 = vrot.slane %v1521, 4
      %v1523 = vrot.slane %v1316, 5
      %v1524 = vsel %vm548, %v1522, %v1523
      %v1525 = vrot.slane %v1504, 5
      %v1526 = vrot.slane %v1525, 4
      %v1527 = vrot.slane %v1318, 5
      %v1528 = vsel %vm548, %v1526, %v1527
      %s1529 = scalar_lea.vmem %s1, 512
      %v1530 = vld [vmem:[%s1529] sm:$0xf]
      %v1531 = vld [vmem:[%s1529 + $0x4] sm:$0xf]
      %v1532 = vld [vmem:[%s1529 + $0x8] sm:$0xf]
      %v1533 = vld [vmem:[%s1529 + $0xc] sm:$0xf]
      %v1534 = vld [vmem:[%s1529 + $0x10] sm:$0xf]
      %v1535 = vld [vmem:[%s1529 + $0x14] sm:$0xf]
      %v1536 = vld [vmem:[%s1529 + $0x18] sm:$0xf]
      %v1537 = vld [vmem:[%s1529 + $0x1c] sm:$0xf]
      %v1538 = vld [vmem:[%s1529 + $0x20] sm:$0xf]
      %v1539 = vld [vmem:[%s1529 + $0x24] sm:$0xf]
      %v1540 = vld [vmem:[%s1529 + $0x28] sm:$0xf]
      %v1541 = vld [vmem:[%s1529 + $0x2c] sm:$0xf]
      %v1542 = vld [vmem:[%s1529 + $0x30] sm:$0xf]
      %v1543 = vld [vmem:[%s1529 + $0x34] sm:$0xf]
      %v1544 = vld [vmem:[%s1529 + $0x38] sm:$0xf]
      %v1545 = vld [vmem:[%s1529 + $0x3c] sm:$0xf]
      %v1546 = vunpack.c.l.b16 %v1516
      %v1547 = vunpack.c.l.b16 %v1520
      %v1548 = vunpack.c.l.b16 %v1524
      %v1549 = vunpack.c.l.b16 %v1528
      %v1550 = vpack.c.b16 %v1547, %v1546
      %v1551 = vpack.c.b16 %v1549, %v1548
      %v1570 = vunpack.c.l.b16 %v1530
      %v1571 = vunpack.c.l.b16 %v1531
      %v1572 = vunpack.c.l.b16 %v1532
      %v1573 = vunpack.c.l.b16 %v1533
      %v1574 = vunpack.c.l.b16 %v1534
      %v1575 = vunpack.c.l.b16 %v1535
      %v1576 = vunpack.c.l.b16 %v1536
      %v1577 = vunpack.c.l.b16 %v1537
      %v1578 = vunpack.c.l.b16 %v1538
      %v1579 = vunpack.c.l.b16 %v1539
      %v1580 = vunpack.c.l.b16 %v1540
      %v1581 = vunpack.c.l.b16 %v1541
      %v1582 = vunpack.c.l.b16 %v1542
      %v1583 = vunpack.c.l.b16 %v1543
      %v1584 = vunpack.c.l.b16 %v1544
      %v1585 = vunpack.c.l.b16 %v1545
      %v1586 = vpack.c.b16 %v1571, %v1570
      %v1587 = vpack.c.b16 %v1573, %v1572
      %v1588 = vpack.c.b16 %v1575, %v1574
      %v1589 = vpack.c.b16 %v1577, %v1576
      %v1590 = vpack.c.b16 %v1579, %v1578
      %v1591 = vpack.c.b16 %v1581, %v1580
      %v1592 = vpack.c.b16 %v1583, %v1582
      %v1593 = vpack.c.b16 %v1585, %v1584
      %1602 = vmatprep.subr.bf16.mxu0 0
      %1603 = vmatpush1.bf16.msra.mxu0 %v1586
      %1604 = vmatprep.subr.bf16.mxu0 0
      %1605 = vmatpush1.bf16.msra.mxu0 %v1587
      %1606 = vmatprep.subr.bf16.mxu0 0
      %1607 = vmatpush1.bf16.msra.mxu0 %v1588
      %1608 = vmatprep.subr.bf16.mxu0 0
      %1609 = vmatpush1.bf16.msra.mxu0 %v1589
      %1610 = vmatprep.subr.bf16.mxu0 0
      %1611 = vmatpush1.bf16.msra.mxu0 %v1590
      %1612 = vmatprep.subr.bf16.mxu0 0
      %1613 = vmatpush1.bf16.msra.mxu0 %v1591
      %1614 = vmatprep.subr.bf16.mxu0 0
      %1615 = vmatpush1.bf16.msra.mxu0 %v1592
      %1616 = vmatprep.subr.bf16.mxu0 0
      %1617 = vmatpush1.bf16.msra.mxu0 %v1593
      %1618 = vmatprep.subr.bf16.mxu0 0
      %1619 = vmatpush1.bf16.msra.mxu0 0
      %1620 = vmatprep.subr.bf16.mxu0 0
      %1621 = vmatpush1.bf16.msra.mxu0 0
      %1622 = vmatprep.subr.bf16.mxu0 0
      %1623 = vmatpush1.bf16.msra.mxu0 0
      %1624 = vmatprep.subr.bf16.mxu0 0
      %1625 = vmatpush1.bf16.msra.mxu0 0
      %1626 = vmatprep.subr.bf16.mxu0 0
      %1627 = vmatpush1.bf16.msra.mxu0 0
      %1628 = vmatprep.subr.bf16.mxu0 0
      %1629 = vmatpush1.bf16.msra.mxu0 0
      %1630 = vmatprep.subr.bf16.mxu0 0
      %1631 = vmatpush1.bf16.msra.mxu0 0
      %1632 = vmatprep.subr.bf16.mxu0 0
      %1633 = vmatpush1.bf16.msra.mxu0 0
      %1634 = vmatprep.mubr.bf16.mxu0 0
      %1635 = vmatmul.mubr.bf16.gmra.mrb[0].mxu0 %v1550
      %v1636 = vpop.f32.mrb[0].mxu0
      %v1637 = vadd.f32 0.0, %v1636
      %v1638 = vpop.f32.mrb[0].mxu0
      %v1639 = vpop.f32.mrb[0].mxu0
      %v1640 = vadd.f32 0.0, %v1639
      %v1641 = vpop.f32.mrb[0].mxu0
      %1642 = vmatprep.mubr.bf16.mxu0 0
      %1643 = vmatmul.mubr.bf16.gmra.mrb[0].mxu0 %v1551
      %v1644 = vpop.f32.mrb[0].mxu0
      %v1645 = vadd.f32 0.0, %v1644
      %v1646 = vpop.f32.mrb[0].mxu0
      %v1647 = vpop.f32.mrb[0].mxu0
      %v1648 = vadd.f32 0.0, %v1647
      %v1649 = vpop.f32.mrb[0].mxu0
      %1650 = vdwg.mxu0
      %v1651 = vadd.f32 %v1497, %v1637
      %v1652 = vadd.f32 %v1498, %v1640
      %v1653 = vadd.f32 %v1499, %v1645
      %v1654 = vadd.f32 %v1500, %v1648
      %1655 = vst [vmem:[%s205] sm:$0xff] %v1651
      %1656 = vst [vmem:[%s205 + $0x8] sm:$0xff] %v1652
      %1657 = vst [vmem:[%s205 + $0x10] sm:$0xff] %v1653
      %1658 = vst [vmem:[%s205 + $0x18] sm:$0xff] %v1654
      %v1659 = vadd.f32 %v1651, %v1652
      %v1660 = vadd.f32 %v1659, %v1653
      %v1661 = vadd.f32 %v1660, %v1654
      %v1662 = vrot.slane %v1661, 4
      %v1663 = vadd.f32 %v1661, %v1662
      %v1664 = vrot.slane %v1663, 2
      %v1665 = vadd.f32 %v1663, %v1664
      %v1666 = vrot.slane %v1665, 1
      %v1667 = vadd.f32 %v1665, %v1666
      %v1668 = vmul.f32 %v1651, %v1651
      %v1669 = vmul.f32 %v1652, %v1652
      %v1670 = vmul.f32 %v1653, %v1653
      %v1671 = vmul.f32 %v1654, %v1654
      %v1672 = vadd.f32 %v1668, %v1669
      %v1673 = vadd.f32 %v1672, %v1670
      %v1674 = vadd.f32 %v1673, %v1671
      %v1675 = vrot.slane %v1674, 4
      %v1676 = vadd.f32 %v1674, %v1675
      %v1677 = vrot.slane %v1676, 2
      %v1678 = vadd.f32 %v1676, %v1677
      %v1679 = vrot.slane %v1678, 1
      %v1680 = vadd.f32 %v1678, %v1679
      %vm1681 = vcmask 1040384
      %v1682 = vsel %vm1681, %v1667, %v1680
      %vm1683 = vcmask 1041408
      %v1684 = vsel %vm1683, %v1682, 0.0
      %1685 = vst [vmem:[%s214] sm:$0xff] %v1684
      %s1686 = smul.u32 4, %s20
      %p1687 = scmp.lt.s32.totalorder %s19, 1
      %s1688 = scalar_select %p1687, %s19, 1
      %p1689 = scmp.lt.s32.totalorder %s1686, 7
      %s1690 = scalar_select %p1689, %s1686, 7
      %s1691 = smul.addr %s1688, 8
      %s1692 = sadd.s32 %s1690, %s1691
      %s1693 = smul.addr %s1692, 8
      %s1694 = scalar_lea.vmem %s2, %s1693
      %p1695 = scmp.lt.s32.totalorder %s19, 1
      %s1696 = scalar_select %p1695, %s19, 1
      %p1697 = scmp.lt.s32.totalorder %s20, 1
      %s1698 = scalar_select %p1697, %s20, 1
      %s1699 = smul.addr %s1696, 2
      %s1700 = sadd.s32 %s1698, %s1699
      %s1701 = smul.addr %s1700, 8
      %s1702 = scalar_lea.vmem %s3, %s1701
      // Predicated region
      $region29: #{basic_block_dubn.6} parent=27 // pred_check
        %p1703 = pneg %p94
      $region30: #{basic_block_dubn.6} parent=27 // pred_check_branch
        %1705 = sbr.rel (%p1703) target = $region32
      $region31: #{basic_block_dubn.6} parent=27 // pred_region
        %s1706 = smul.u32 4, %s20
      $region32: #{basic_block_dubn.6} parent=27 // pred_fallthru
        _
      // Predicated region
      $region33: #{basic_block_dubn.6} parent=27 // pred_check
        %p1707 = pneg %p122
      $region34: #{basic_block_dubn.6} parent=27 // pred_check_branch
        %1709 = sbr.rel (%p1707) target = $region36
      $region35: #{basic_block_dubn.6} parent=27 // pred_region
        _
      $region36: #{basic_block_dubn.6} parent=27 // pred_fallthru
        _
    $region28: #{basic_block_dubn.6} parent=5 // pred_fallthru
      _
    %p1710 = scmp.le.s32.totalorder 2, %s10
    // Predicated region
    $region37: #{basic_block_dubn.6} parent=5 // pred_check
      %p1711 = pneg %p1710
    $region38: #{basic_block_dubn.6} parent=5 // pred_check_branch
      %1713 = sbr.rel (%p1711) target = $region40
    $region39: #{basic_block_dubn.6} parent=5 // pred_region
      %s1714 = ssub.s32 %s10, 2
      // Predicated region
      $region41: #{basic_block_dubn.6} parent=39 // pred_check
        %p1715 = pneg %p100
      $region42: #{basic_block_dubn.6} parent=39 // pred_check_branch
        %1717 = sbr.rel (%p1715) target = $region44
      $region43: #{basic_block_dubn.6} parent=39 // pred_region
        %s1718 = smul.u32 4, %s22
        %p1719 = scmp.lt.s32.totalorder %s21, 1
        %s1720 = scalar_select %p1719, %s21, 1
        %p1721 = scmp.lt.s32.totalorder %s1718, 7
        %s1722 = scalar_select %p1721, %s1718, 7
        %s1723 = smul.addr %s1720, 8
        %s1724 = sadd.s32 %s1722, %s1723
        %s1725 = smul.addr %s1724, 8
        %s1726 = scalar_lea.vmem %s2, %s1725
      $region44: #{basic_block_dubn.6} parent=39 // pred_fallthru
        _
      // Predicated region
      $region45: #{basic_block_dubn.6} parent=39 // pred_check
        %p1727 = pneg %p128
      $region46: #{basic_block_dubn.6} parent=39 // pred_check_branch
        %1729 = sbr.rel (%p1727) target = $region48
      $region47: #{basic_block_dubn.6} parent=39 // pred_region
        %p1730 = scmp.lt.s32.totalorder %s21, 1
        %s1731 = scalar_select %p1730, %s21, 1
        %p1732 = scmp.lt.s32.totalorder %s22, 1
        %s1733 = scalar_select %p1732, %s22, 1
        %s1734 = smul.addr %s1731, 2
        %s1735 = sadd.s32 %s1733, %s1734
        %s1736 = smul.addr %s1735, 8
        %s1737 = scalar_lea.vmem %s3, %s1736
      $region48: #{basic_block_dubn.6} parent=39 // pred_fallthru
        _
    $region40: #{basic_block_dubn.6} parent=5 // pred_fallthru
      _
  $region6: #{basic_block_dubn.6} parent=0 // loop_footer
    %s14 = sadd.s32 1, %s10
  $region7: #{basic_block_dubn.6} parent=0 // loop_footer_branch
    %9 = sbr.rel target = $region3
  $region8: #{basic_block_dubn.6} parent=0 // loop_exit
    _

// kernel: basic_block_dubn.4
$region0: #{basic_block_dubn.4}
  #allocation0 [shape = 'u32[]', space=smem, size = 0x4, offset = 0x4, fixed_abs, tag = 'smem constant byte address 0x4 - core index']
  #allocation1 [shape = 'u32[144,128]{1,0:T(1,128)}', space=vmem, size = 0x12000, scoped, tag = 'internal scratch']
  %s0 = inlined_call_operand.vmem [shape: bf16[2,9,9,128], index: 0, kind: input, shape index: {}]
  %s1 = inlined_call_operand.vmem [shape: bf16[2,9,9,128], index: 1, kind: input, shape index: {}]
  %s2 = inlined_call_operand.vmem [shape: bf16[2,9,9,128], index: 2, kind: input, shape index: {}]
  %s3 = inlined_call_operand.vmem [shape: bf16[2,9,9,128], index: 3, kind: input, shape index: {}]
  %s4 = inlined_call_operand.vmem [shape: bf16[3,3,128,128], index: 4, kind: input, shape index: {}]
  %s5 = inlined_call_operand.vmem [shape: bf16[128,128], index: 5, kind: input, shape index: {}]
  %s6 = inlined_call_operand.vmem [shape: f32[2,8,8,128], index: 6, kind: output, shape index: {0}]
  %s7 = inlined_call_operand.vmem [shape: f32[2,2,8,128], index: 7, kind: output, shape index: {1}]
  %s8 = inlined_call_operand.vmem [shape: f32[2,8,8,128], index: 8, kind: output, shape index: {2}]
  %s9 = inlined_call_operand.vmem [shape: f32[2,2,8,128], index: 9, kind: output, shape index: {3}]
  %10 = xla_tuple %s6, %s7, %s8, %s9
  %s11 = sld [smem:[#allocation0]]
  $region81: #{basic_block_dubn.4} parent=0
    _
  %s13 = ssub.s32 1, %s11
  %s14 = scalar_select 0, %s13, %s11
  loop: start=0, step=1, limit=6
  $region2: #{basic_block_dubn.4} parent=0 // loop_pre_header
    _
  $region3: #{basic_block_dubn.4} parent=0 // loop_header
    %s16 = sphi 0, %s20
    %p17 = scmp.ge.s32.totalorder %s16, 6
    %s23 = sphi 0, %s35
    %s24 = sphi 0, %s31
    %s25 = sphi 0, %s23
    %s26 = sphi 0, %s24
    %s27 = sphi 0, %s25
    %s28 = sphi 0, %s26
    %s38 = sphi 0, %s40
    %s41 = sphi 0, %s38
    %s42 = sphi 0, %s41
    %s58 = sphi 0, %s42
    %s64 = sphi 0, %s66
    %s67 = sphi 0, %s64
    %s68 = sphi 0, %s67
    %s84 = sphi 0, %s68
    %s90 = sphi 0, %s92
    %s93 = sphi 0, %s90
    %s94 = sphi 0, %s93
    %s110 = sphi 0, %s94
    %s116 = sphi 0, %s118
    %s119 = sphi 0, %s116
    %s120 = sphi 0, %s119
    %s136 = sphi 0, %s120
    %s140 = sphi 0, %s140
    %s142 = sphi 0, %s140
    %s143 = sphi 0, %s142
    %s157 = sphi 0, %s143
    %s161 = sphi 0, %s161
    %s163 = sphi 0, %s161
    %s164 = sphi 0, %s163
    %s178 = sphi 0, %s164
    %s186 = sphi 0, %s188
    %s189 = sphi 0, %s186
    %s190 = sphi 0, %s189
    %s206 = sphi 0, %s190
    %s214 = sphi 0, %s216
    %s217 = sphi 0, %s214
    %s218 = sphi 0, %s217
    %s234 = sphi 0, %s218
    %s242 = sphi 0, %s244
    %s245 = sphi 0, %s242
    %s246 = sphi 0, %s245
    %s262 = sphi 0, %s246
    %s270 = sphi 0, %s272
    %s273 = sphi 0, %s270
    %s274 = sphi 0, %s273
    %s290 = sphi 0, %s274
  $region4: #{basic_block_dubn.4} parent=0 // loop_header_branch
    %19 = sbr.rel (%p17) target = $region8
  $region5: #{basic_block_dubn.4} parent=0 // loop_body
    %s21 = ssub.s32 %s16, 1
    %s22 = ssub.s32 %s16, 2
    %s29 = sadd.s32 1, %s24
    %p30 = scmp.ge.s32.totalorder %s29, 2
    %s31 = scalar_select %p30, 0, %s29
    %s32 = sadd.s32 1, %s23
    %s33 = scalar_select %p30, %s32, %s23
    %p34 = scmp.ge.s32.totalorder %s33, 2
    %s35 = scalar_select %p34, 0, %s33
    %s36 = ssub.s32 %s23, %s35
    %p37 = scmp.eq.s32.totalorder %s36, 0
    %s39 = sadd.s32 %s38, 1
    %s40 = scalar_select %p37, %s38, %s39
    %p43 = pneg %p37
    %p44 = scmp.eq.s32.totalorder %s16, 3
    %p45 = por %p43, %p44
    %p46 = scmp.ne.s32.totalorder %s38, %s41
    %p47 = scmp.eq.s32.totalorder %s16, 0
    %p48 = por %p46, %p47
    %p49 = scmp.ne.s32.totalorder %s38, %s41
    %p50 = scmp.eq.s32.totalorder %s21, 3
    %p51 = por %p49, %p50
    %p52 = scmp.ne.s32.totalorder %s41, %s42
    %p53 = scmp.eq.s32.totalorder %s21, 0
    %p54 = por %p52, %p53
    %p55 = scmp.ne.s32.totalorder %s41, %s42
    %p56 = scmp.eq.s32.totalorder %s22, 3
    %p57 = por %p55, %p56
    %p59 = scmp.ne.s32.totalorder %s42, %s58
    %p60 = scmp.eq.s32.totalorder %s22, 0
    %p61 = por %p59, %p60
    %s62 = ssub.s32 %s23, %s35
    %p63 = scmp.eq.s32.totalorder %s62, 0
    %s65 = sadd.s32 %s64, 1
    %s66 = scalar_select %p63, %s64, %s65
    %p69 = pneg %p63
    %p70 = scmp.eq.s32.totalorder %s16, 3
    %p71 = por %p69, %p70
    %p72 = scmp.ne.s32.totalorder %s64, %s67
    %p73 = scmp.eq.s32.totalorder %s16, 0
    %p74 = por %p72, %p73
    %p75 = scmp.ne.s32.totalorder %s64, %s67
    %p76 = scmp.eq.s32.totalorder %s21, 3
    %p77 = por %p75, %p76
    %p78 = scmp.ne.s32.totalorder %s67, %s68
    %p79 = scmp.eq.s32.totalorder %s21, 0
    %p80 = por %p78, %p79
    %p81 = scmp.ne.s32.totalorder %s67, %s68
    %p82 = scmp.eq.s32.totalorder %s22, 3
    %p83 = por %p81, %p82
    %p85 = scmp.ne.s32.totalorder %s68, %s84
    %p86 = scmp.eq.s32.totalorder %s22, 0
    %p87 = por %p85, %p86
    %s88 = ssub.s32 %s23, %s35
    %p89 = scmp.eq.s32.totalorder %s88, 0
    %s91 = sadd.s32 %s90, 1
    %s92 = scalar_select %p89, %s90, %s91
    %p95 = pneg %p89
    %p96 = scmp.eq.s32.totalorder %s16, 3
    %p97 = por %p95, %p96
    %p98 = scmp.ne.s32.totalorder %s90, %s93
    %p99 = scmp.eq.s32.totalorder %s16, 0
    %p100 = por %p98, %p99
    %p101 = scmp.ne.s32.totalorder %s90, %s93
    %p102 = scmp.eq.s32.totalorder %s21, 3
    %p103 = por %p101, %p102
    %p104 = scmp.ne.s32.totalorder %s93, %s94
    %p105 = scmp.eq.s32.totalorder %s21, 0
    %p106 = por %p104, %p105
    %p107 = scmp.ne.s32.totalorder %s93, %s94
    %p108 = scmp.eq.s32.totalorder %s22, 3
    %p109 = por %p107, %p108
    %p111 = scmp.ne.s32.totalorder %s94, %s110
    %p112 = scmp.eq.s32.totalorder %s22, 0
    %p113 = por %p111, %p112
    %s114 = ssub.s32 %s23, %s35
    %p115 = scmp.eq.s32.totalorder %s114, 0
    %s117 = sadd.s32 %s116, 1
    %s118 = scalar_select %p115, %s116, %s117
    %p121 = pneg %p115
    %p122 = scmp.eq.s32.totalorder %s16, 3
    %p123 = por %p121, %p122
    %p124 = scmp.ne.s32.totalorder %s116, %s119
    %p125 = scmp.eq.s32.totalorder %s16, 0
    %p126 = por %p124, %p125
    %p127 = scmp.ne.s32.totalorder %s116, %s119
    %p128 = scmp.eq.s32.totalorder %s21, 3
    %p129 = por %p127, %p128
    %p130 = scmp.ne.s32.totalorder %s119, %s120
    %p131 = scmp.eq.s32.totalorder %s21, 0
    %p132 = por %p130, %p131
    %p133 = scmp.ne.s32.totalorder %s119, %s120
    %p134 = scmp.eq.s32.totalorder %s22, 3
    %p135 = por %p133, %p134
    %p137 = scmp.ne.s32.totalorder %s120, %s136
    %p138 = scmp.eq.s32.totalorder %s22, 0
    %p139 = por %p137, %p138
    %s141 = sadd.s32 %s140, 1
    %p144 = scmp.eq.s32.totalorder %s16, 3
    %p145 = scmp.ne.s32.totalorder %s140, %s142
    %p146 = scmp.eq.s32.totalorder %s16, 0
    %p147 = por %p145, %p146
    %p148 = scmp.ne.s32.totalorder %s140, %s142
    %p149 = scmp.eq.s32.totalorder %s21, 3
    %p150 = por %p148, %p149
    %p151 = scmp.ne.s32.totalorder %s142, %s143
    %p152 = scmp.eq.s32.totalorder %s21, 0
    %p153 = por %p151, %p152
    %p154 = scmp.ne.s32.totalorder %s142, %s143
    %p155 = scmp.eq.s32.totalorder %s22, 3
    %p156 = por %p154, %p155
    %p158 = scmp.ne.s32.totalorder %s143, %s157
    %p159 = scmp.eq.s32.totalorder %s22, 0
    %p160 = por %p158, %p159
    %s162 = sadd.s32 %s161, 1
    %p165 = scmp.eq.s32.totalorder %s16, 3
    %p166 = scmp.ne.s32.totalorder %s161, %s163
    %p167 = scmp.eq.s32.totalorder %s16, 0
    %p168 = por %p166, %p167
    %p169 = scmp.ne.s32.totalorder %s161, %s163
    %p170 = scmp.eq.s32.totalorder %s21, 3
    %p171 = por %p169, %p170
    %p172 = scmp.ne.s32.totalorder %s163, %s164
    %p173 = scmp.eq.s32.totalorder %s21, 0
    %p174 = por %p172, %p173
    %p175 = scmp.ne.s32.totalorder %s163, %s164
    %p176 = scmp.eq.s32.totalorder %s22, 3
    %p177 = por %p175, %p176
    %p179 = scmp.ne.s32.totalorder %s164, %s178
    %p180 = scmp.eq.s32.totalorder %s22, 0
    %p181 = por %p179, %p180
    %s182 = ssub.s32 %s23, %s35
    %s183 = ssub.s32 %s24, %s31
    %s184 = sor.u32 %s182, %s183
    %p185 = scmp.eq.s32.totalorder %s184, 0
    %s187 = sadd.s32 %s186, 1
    %s188 = scalar_select %p185, %s186, %s187
    %p191 = pneg %p185
    %p192 = scmp.eq.s32.totalorder %s16, 3
    %p193 = por %p191, %p192
    %p194 = scmp.ne.s32.totalorder %s186, %s189
    %p195 = scmp.eq.s32.totalorder %s16, 0
    %p196 = por %p194, %p195
    %p197 = scmp.ne.s32.totalorder %s186, %s189
    %p198 = scmp.eq.s32.totalorder %s21, 3
    %p199 = por %p197, %p198
    %p200 = scmp.ne.s32.totalorder %s189, %s190
    %p201 = scmp.eq.s32.totalorder %s21, 0
    %p202 = por %p200, %p201
    %p203 = scmp.ne.s32.totalorder %s189, %s190
    %p204 = scmp.eq.s32.totalorder %s22, 3
    %p205 = por %p203, %p204
    %p207 = scmp.ne.s32.totalorder %s190, %s206
    %p208 = scmp.eq.s32.totalorder %s22, 0
    %p209 = por %p207, %p208
    %s210 = ssub.s32 %s23, %s35
    %s211 = ssub.s32 %s24, %s31
    %s212 = sor.u32 %s210, %s211
    %p213 = scmp.eq.s32.totalorder %s212, 0
    %s215 = sadd.s32 %s214, 1
    %s216 = scalar_select %p213, %s214, %s215
    %p219 = pneg %p213
    %p220 = scmp.eq.s32.totalorder %s16, 3
    %p221 = por %p219, %p220
    %p222 = scmp.ne.s32.totalorder %s214, %s217
    %p223 = scmp.eq.s32.totalorder %s16, 0
    %p224 = por %p222, %p223
    %p225 = scmp.ne.s32.totalorder %s214, %s217
    %p226 = scmp.eq.s32.totalorder %s21, 3
    %p227 = por %p225, %p226
    %p228 = scmp.ne.s32.totalorder %s217, %s218
    %p229 = scmp.eq.s32.totalorder %s21, 0
    %p230 = por %p228, %p229
    %p231 = scmp.ne.s32.totalorder %s217, %s218
    %p232 = scmp.eq.s32.totalorder %s22, 3
    %p233 = por %p231, %p232
    %p235 = scmp.ne.s32.totalorder %s218, %s234
    %p236 = scmp.eq.s32.totalorder %s22, 0
    %p237 = por %p235, %p236
    %s238 = ssub.s32 %s23, %s35
    %s239 = ssub.s32 %s24, %s31
    %s240 = sor.u32 %s238, %s239
    %p241 = scmp.eq.s32.totalorder %s240, 0
    %s243 = sadd.s32 %s242, 1
    %s244 = scalar_select %p241, %s242, %s243
    %p247 = pneg %p241
    %p248 = scmp.eq.s32.totalorder %s16, 3
    %p249 = por %p247, %p248
    %p250 = scmp.ne.s32.totalorder %s242, %s245
    %p251 = scmp.eq.s32.totalorder %s16, 0
    %p252 = por %p250, %p251
    %p253 = scmp.ne.s32.totalorder %s242, %s245
    %p254 = scmp.eq.s32.totalorder %s21, 3
    %p255 = por %p253, %p254
    %p256 = scmp.ne.s32.totalorder %s245, %s246
    %p257 = scmp.eq.s32.totalorder %s21, 0
    %p258 = por %p256, %p257
    %p259 = scmp.ne.s32.totalorder %s245, %s246
    %p260 = scmp.eq.s32.totalorder %s22, 3
    %p261 = por %p259, %p260
    %p263 = scmp.ne.s32.totalorder %s246, %s262
    %p264 = scmp.eq.s32.totalorder %s22, 0
    %p265 = por %p263, %p264
    %s266 = ssub.s32 %s23, %s35
    %s267 = ssub.s32 %s24, %s31
    %s268 = sor.u32 %s266, %s267
    %p269 = scmp.eq.s32.totalorder %s268, 0
    %s271 = sadd.s32 %s270, 1
    %s272 = scalar_select %p269, %s270, %s271
    %p275 = pneg %p269
    %p276 = scmp.eq.s32.totalorder %s16, 3
    %p277 = por %p275, %p276
    %p278 = scmp.ne.s32.totalorder %s270, %s273
    %p279 = scmp.eq.s32.totalorder %s16, 0
    %p280 = por %p278, %p279
    %p281 = scmp.ne.s32.totalorder %s270, %s273
    %p282 = scmp.eq.s32.totalorder %s21, 3
    %p283 = por %p281, %p282
    %p284 = scmp.ne.s32.totalorder %s273, %s274
    %p285 = scmp.eq.s32.totalorder %s21, 0
    %p286 = por %p284, %p285
    %p287 = scmp.ne.s32.totalorder %s273, %s274
    %p288 = scmp.eq.s32.totalorder %s22, 3
    %p289 = por %p287, %p288
    %p291 = scmp.ne.s32.totalorder %s274, %s290
    %p292 = scmp.eq.s32.totalorder %s22, 0
    %p293 = por %p291, %p292
    %p294 = scmp.le.s32.totalorder 1, %s16
    %p295 = scmp.lt.s32.totalorder %s16, 5
    %p296 = pnand %p294, %p295
    %p297 = pneg %p296
    // Predicated region
    $region9: #{basic_block_dubn.4} parent=5 // pred_check
      _
    $region10: #{basic_block_dubn.4} parent=5 // pred_check_branch
      %299 = sbr.rel (%p296) target = $region12
    $region11: #{basic_block_dubn.4} parent=5 // pred_region
      %s300 = ssub.s32 %s16, 1
      // Predicated region
      $region13: #{basic_block_dubn.4} parent=11 // pred_check
        %p301 = pneg %p153
      $region14: #{basic_block_dubn.4} parent=11 // pred_check_branch
        %303 = sbr.rel (%p301) target = $region16
      $region15: #{basic_block_dubn.4} parent=11 // pred_region
        _
      $region16: #{basic_block_dubn.4} parent=11 // pred_fallthru
        _
      // Predicated region
      $region17: #{basic_block_dubn.4} parent=11 // pred_check
        %p304 = pneg %p174
      $region18: #{basic_block_dubn.4} parent=11 // pred_check_branch
        %306 = sbr.rel (%p304) target = $region20
      $region19: #{basic_block_dubn.4} parent=11 // pred_region
        _
      $region20: #{basic_block_dubn.4} parent=11 // pred_fallthru
        _
    $region12: #{basic_block_dubn.4} parent=5 // pred_fallthru
      _
    %p307 = scmp.lt.s32.totalorder %s16, 4
    // Predicated region
    $region21: #{basic_block_dubn.4} parent=5 // pred_check
      %p308 = pneg %p307
    $region22: #{basic_block_dubn.4} parent=5 // pred_check_branch
      %310 = sbr.rel (%p308) target = $region24
    $region23: #{basic_block_dubn.4} parent=5 // pred_region
      // Predicated region
      $region25: #{basic_block_dubn.4} parent=23 // pred_check
        %p311 = pneg %p48
      $region26: #{basic_block_dubn.4} parent=23 // pred_check_branch
        %313 = sbr.rel (%p311) target = $region28
      $region27: #{basic_block_dubn.4} parent=23 // pred_region
        %p314 = scmp.lt.s32.totalorder %s23, 1
        %s315 = scalar_select %p314, %s23, 1
        %s316 = smul.addr %s315, 18
        %s317 = smul.addr %s316, 4
        %s318 = scalar_lea.vmem %s0, %s317
      $region28: #{basic_block_dubn.4} parent=23 // pred_fallthru
        _
      // Predicated region
      $region29: #{basic_block_dubn.4} parent=23 // pred_check
        %p319 = pneg %p74
      $region30: #{basic_block_dubn.4} parent=23 // pred_check_branch
        %321 = sbr.rel (%p319) target = $region32
      $region31: #{basic_block_dubn.4} parent=23 // pred_region
        %p322 = scmp.lt.s32.totalorder %s23, 1
        %s323 = scalar_select %p322, %s23, 1
        %s324 = smul.addr %s323, 18
        %s325 = smul.addr %s324, 4
        %s326 = scalar_lea.vmem %s1, %s325
      $region32: #{basic_block_dubn.4} parent=23 // pred_fallthru
        _
      // Predicated region
      $region33: #{basic_block_dubn.4} parent=23 // pred_check
        %p327 = pneg %p100
      $region34: #{basic_block_dubn.4} parent=23 // pred_check_branch
        %329 = sbr.rel (%p327) target = $region36
      $region35: #{basic_block_dubn.4} parent=23 // pred_region
        %p330 = scmp.lt.s32.totalorder %s23, 1
        %s331 = scalar_select %p330, %s23, 1
        %s332 = smul.addr %s331, 18
        %s333 = smul.addr %s332, 4
        %s334 = scalar_lea.vmem %s2, %s333
      $region36: #{basic_block_dubn.4} parent=23 // pred_fallthru
        _
      // Predicated region
      $region37: #{basic_block_dubn.4} parent=23 // pred_check
        %p335 = pneg %p126
      $region38: #{basic_block_dubn.4} parent=23 // pred_check_branch
        %337 = sbr.rel (%p335) target = $region40
      $region39: #{basic_block_dubn.4} parent=23 // pred_region
        %p338 = scmp.lt.s32.totalorder %s23, 1
        %s339 = scalar_select %p338, %s23, 1
        %s340 = smul.addr %s339, 18
        %s341 = smul.addr %s340, 4
        %s342 = scalar_lea.vmem %s3, %s341
      $region40: #{basic_block_dubn.4} parent=23 // pred_fallthru
        _
    $region24: #{basic_block_dubn.4} parent=5 // pred_fallthru
      _
    %p343 = scmp.le.s32.totalorder 1, %s16
    %p344 = scmp.lt.s32.totalorder %s16, 5
    %p345 = pnand %p343, %p344
    %p346 = pneg %p345
    // Predicated region
    $region41: #{basic_block_dubn.4} parent=5 // pred_check
      _
    $region42: #{basic_block_dubn.4} parent=5 // pred_check_branch
      %348 = sbr.rel (%p345) target = $region44
    $region43: #{basic_block_dubn.4} parent=5 // pred_region
      %s349 = ssub.s32 %s16, 1
      %p350 = scmp.lt.s32.totalorder %s25, 1
      %s351 = scalar_select %p350, %s25, 1
      %s352 = smul.addr %s351, 18
      %s353 = smul.addr %s352, 4
      %s354 = scalar_lea.vmem %s0, %s353
      %p355 = pneg %p54
      %p356 = pneg %p51
      %p357 = scmp.lt.s32.totalorder %s25, 1
      %s358 = scalar_select %p357, %s25, 1
      %s359 = smul.addr %s358, 18
      %s360 = smul.addr %s359, 4
      %s361 = scalar_lea.vmem %s1, %s360
      %p362 = pneg %p80
      %p363 = pneg %p77
      %p364 = scmp.lt.s32.totalorder %s25, 1
      %s365 = scalar_select %p364, %s25, 1
      %s366 = smul.addr %s365, 18
      %s367 = smul.addr %s366, 4
      %s368 = scalar_lea.vmem %s2, %s367
      %p369 = pneg %p106
      %p370 = pneg %p103
      %p371 = scmp.lt.s32.totalorder %s25, 1
      %s372 = scalar_select %p371, %s25, 1
      %s373 = smul.addr %s372, 18
      %s374 = smul.addr %s373, 4
      %s375 = scalar_lea.vmem %s3, %s374
      %p376 = pneg %p132
      %p377 = pneg %p129
      %p378 = pneg %p153
      %p379 = pneg %p150
      %p380 = pneg %p174
      %p381 = pneg %p171
      %p382 = pneg %p202
      %p383 = pneg %p199
      %s384 = smul.u32 4, %s26
      %p385 = scmp.lt.s32.totalorder %s25, 1
      %s386 = scalar_select %p385, %s25, 1
      %p387 = scmp.lt.s32.totalorder %s384, 7
      %s388 = scalar_select %p387, %s384, 7
      %s389 = smul.addr %s386, 8
      %s390 = sadd.s32 %s388, %s389
      %s391 = smul.addr %s390, 8
      %s392 = scalar_lea.vmem %s6, %s391
      %p393 = pneg %p230
      %p394 = pneg %p227
      %p395 = scmp.lt.s32.totalorder %s25, 1
      %s396 = scalar_select %p395, %s25, 1
      %p397 = scmp.lt.s32.totalorder %s26, 1
      %s398 = scalar_select %p397, %s26, 1
      %s399 = smul.addr %s396, 2
      %s400 = sadd.s32 %s398, %s399
      %s401 = smul.addr %s400, 8
      %s402 = scalar_lea.vmem %s7, %s401
      %p403 = pneg %p258
      %p404 = pneg %p255
      %s405 = smul.u32 4, %s26
      %p406 = scmp.lt.s32.totalorder %s25, 1
      %s407 = scalar_select %p406, %s25, 1
      %p408 = scmp.lt.s32.totalorder %s405, 7
      %s409 = scalar_select %p408, %s405, 7
      %s410 = smul.addr %s407, 8
      %s411 = sadd.s32 %s409, %s410
      %s412 = smul.addr %s411, 8
      %s413 = scalar_lea.vmem %s8, %s412
      %p414 = pneg %p286
      %p415 = pneg %p283
      %p416 = scmp.lt.s32.totalorder %s25, 1
      %s417 = scalar_select %p416, %s25, 1
      %p418 = scmp.lt.s32.totalorder %s26, 1
      %s419 = scalar_select %p418, %s26, 1
      %s420 = smul.addr %s417, 2
      %s421 = sadd.s32 %s419, %s420
      %s422 = smul.addr %s421, 8
      %s423 = scalar_lea.vmem %s9, %s422
      %p424 = scmp.lt.s32.totalorder %s25, 1
      %s425 = scalar_select %p424, %s25, 1
      %s426 = smul.addr %s425, 18
      %s427 = smul.addr %s426, 4
      %s428 = scalar_lea.vmem %s0, %s427
      %p429 = scmp.lt.s32.totalorder %s25, 1
      %s430 = scalar_select %p429, %s25, 1
      %s431 = smul.addr %s430, 18
      %s432 = smul.addr %s431, 4
      %s433 = scalar_lea.vmem %s1, %s432
      %p434 = scmp.lt.s32.totalorder %s25, 1
      %s435 = scalar_select %p434, %s25, 1
      %s436 = smul.addr %s435, 18
      %s437 = smul.addr %s436, 4
      %s438 = scalar_lea.vmem %s2, %s437
      %p439 = scmp.lt.s32.totalorder %s25, 1
      %s440 = scalar_select %p439, %s25, 1
      %s441 = smul.addr %s440, 18
      %s442 = smul.addr %s441, 4
      %s443 = scalar_lea.vmem %s3, %s442
      %s444 = smul.u32 4, %s26
      %p445 = scmp.lt.s32.totalorder %s25, 1
      %s446 = scalar_select %p445, %s25, 1
      %p447 = scmp.lt.s32.totalorder %s444, 7
      %s448 = scalar_select %p447, %s444, 7
      %s449 = smul.addr %s446, 8
      %s450 = sadd.s32 %s448, %s449
      %s451 = smul.addr %s450, 8
      %s452 = scalar_lea.vmem %s6, %s451
      %s453 = smul.u32 4, %s26
      %p454 = scmp.lt.s32.totalorder %s25, 1
      %s455 = scalar_select %p454, %s25, 1
      %p456 = scmp.lt.s32.totalorder %s26, 1
      %s457 = scalar_select %p456, %s26, 1
      %s458 = smul.addr %s455, 2
      %s459 = sadd.s32 %s457, %s458
      %s460 = smul.addr %s459, 8
      %s461 = scalar_lea.vmem %s7, %s460
      %s462 = smul.u32 4, %s26
      %p463 = scmp.lt.s32.totalorder %s25, 1
      %s464 = scalar_select %p463, %s25, 1
      %p465 = scmp.lt.s32.totalorder %s462, 7
      %s466 = scalar_select %p465, %s462, 7
      %s467 = smul.addr %s464, 8
      %s468 = sadd.s32 %s466, %s467
      %s469 = smul.addr %s468, 8
      %s470 = scalar_lea.vmem %s8, %s469
      %s471 = smul.u32 4, %s26
      %p472 = scmp.lt.s32.totalorder %s25, 1
      %s473 = scalar_select %p472, %s25, 1
      %p474 = scmp.lt.s32.totalorder %s26, 1
      %s475 = scalar_select %p474, %s26, 1
      %s476 = smul.addr %s473, 2
      %s477 = sadd.s32 %s475, %s476
      %s478 = smul.addr %s477, 8
      %s479 = scalar_lea.vmem %s9, %s478
      %s481 = smul.u32 %s26, 4
      %s482 = smul.u32 %s481, 2
      %s483 = smul.addr %s482, 4
      %s484 = scalar_lea.vmem %s428, %s483
      %v485 = vld [vmem:[%s484] sm:$0xf]
      %v486 = vld [vmem:[%s484 + $0x8] sm:$0xf]
      %v487 = vld [vmem:[%s484 + $0x10] sm:$0xf]
      %v488 = vld [vmem:[%s484 + $0x18] sm:$0xf]
      %v489 = vld [vmem:[%s4] sm:$0xf]
      %v490 = vld [vmem:[%s4 + $0x4] sm:$0xf]
      %v491 = vld [vmem:[%s4 + $0x8] sm:$0xf]
      %v492 = vld [vmem:[%s4 + $0xc] sm:$0xf]
      %v493 = vld [vmem:[%s4 + $0x10] sm:$0xf]
      %v494 = vld [vmem:[%s4 + $0x14] sm:$0xf]
      %v495 = vld [vmem:[%s4 + $0x18] sm:$0xf]
      %v496 = vld [vmem:[%s4 + $0x1c] sm:$0xf]
      %v497 = vld [vmem:[%s4 + $0x20] sm:$0xf]
      %v498 = vld [vmem:[%s4 + $0x24] sm:$0xf]
      %v499 = vld [vmem:[%s4 + $0x28] sm:$0xf]
      %v500 = vld [vmem:[%s4 + $0x2c] sm:$0xf]
      %v501 = vld [vmem:[%s4 + $0x30] sm:$0xf]
      %v502 = vld [vmem:[%s4 + $0x34] sm:$0xf]
      %v503 = vld [vmem:[%s4 + $0x38] sm:$0xf]
      %v504 = vld [vmem:[%s4 + $0x3c] sm:$0xf]
      %s505 = smul.addr %s482, 4
      %s506 = scalar_lea.vmem %s433, %s505
      %v507 = vld [vmem:[%s506] sm:$0xf]
      %v508 = vld [vmem:[%s506 + $0x8] sm:$0xf]
      %v509 = vld [vmem:[%s506 + $0x10] sm:$0xf]
      %v510 = vld [vmem:[%s506 + $0x18] sm:$0xf]
      %s511 = scalar_lea.vmem %s4, 64
      %v512 = vld [vmem:[%s511] sm:$0xf]
      %v513 = vld [vmem:[%s511 + $0x4] sm:$0xf]
      %v514 = vld [vmem:[%s511 + $0x8] sm:$0xf]
      %v515 = vld [vmem:[%s511 + $0xc] sm:$0xf]
      %v516 = vld [vmem:[%s511 + $0x10] sm:$0xf]
      %v517 = vld [vmem:[%s511 + $0x14] sm:$0xf]
      %v518 = vld [vmem:[%s511 + $0x18] sm:$0xf]
      %v519 = vld [vmem:[%s511 + $0x1c] sm:$0xf]
      %v520 = vld [vmem:[%s511 + $0x20] sm:$0xf]
      %v521 = vld [vmem:[%s511 + $0x24] sm:$0xf]
      %v522 = vld [vmem:[%s511 + $0x28] sm:$0xf]
      %v523 = vld [vmem:[%s511 + $0x2c] sm:$0xf]
      %v524 = vld [vmem:[%s511 + $0x30] sm:$0xf]
      %v525 = vld [vmem:[%s511 + $0x34] sm:$0xf]
      %v526 = vld [vmem:[%s511 + $0x38] sm:$0xf]
      %v527 = vld [vmem:[%s511 + $0x3c] sm:$0xf]
      %v532 = vunpack.c.l.b16 %v507
      %v533 = vunpack.c.l.b16 %v508
      %v534 = vunpack.c.l.b16 %v509
      %v535 = vunpack.c.l.b16 %v510
      %v536 = vpack.c.b16 %v533, %v532
      %v537 = vpack.c.b16 %v535, %v534
      %v556 = vunpack.c.l.b16 %v512
      %v557 = vunpack.c.l.b16 %v513
      %v558 = vunpack.c.l.b16 %v514
      %v559 = vunpack.c.l.b16 %v515
      %v560 = vunpack.c.l.b16 %v516
      %v561 = vunpack.c.l.b16 %v517
      %v562 = vunpack.c.l.b16 %v518
      %v563 = vunpack.c.l.b16 %v519
      %v564 = vunpack.c.l.b16 %v520
      %v565 = vunpack.c.l.b16 %v521
      %v566 = vunpack.c.l.b16 %v522
      %v567 = vunpack.c.l.b16 %v523
      %v568 = vunpack.c.l.b16 %v524
      %v569 = vunpack.c.l.b16 %v525
      %v570 = vunpack.c.l.b16 %v526
      %v571 = vunpack.c.l.b16 %v527
      %v572 = vpack.c.b16 %v557, %v556
      %v573 = vpack.c.b16 %v559, %v558
      %v574 = vpack.c.b16 %v561, %v560
      %v575 = vpack.c.b16 %v563, %v562
      %v576 = vpack.c.b16 %v565, %v564
      %v577 = vpack.c.b16 %v567, %v566
      %v578 = vpack.c.b16 %v569, %v568
      %v579 = vpack.c.b16 %v571, %v570
      %588 = vmatprep.subr.bf16.mxu0 0
      %589 = vmatpush1.bf16.msra.mxu0 %v572
      %590 = vmatprep.subr.bf16.mxu0 0
      %591 = vmatpush1.bf16.msra.mxu0 %v573
      %592 = vmatprep.subr.bf16.mxu0 0
      %593 = vmatpush1.bf16.msra.mxu0 %v574
      %594 = vmatprep.subr.bf16.mxu0 0
      %595 = vmatpush1.bf16.msra.mxu0 %v575
      %596 = vmatprep.subr.bf16.mxu0 0
      %597 = vmatpush1.bf16.msra.mxu0 %v576
      %598 = vmatprep.subr.bf16.mxu0 0
      %599 = vmatpush1.bf16.msra.mxu0 %v577
      %600 = vmatprep.subr.bf16.mxu0 0
      %601 = vmatpush1.bf16.msra.mxu0 %v578
      %602 = vmatprep.subr.bf16.mxu0 0
      %603 = vmatpush1.bf16.msra.mxu0 %v579
      %604 = vmatprep.subr.bf16.mxu0 0
      %605 = vmatpush1.bf16.msra.mxu0 0
      %606 = vmatprep.subr.bf16.mxu0 0
      %607 = vmatpush1.bf16.msra.mxu0 0
      %608 = vmatprep.subr.bf16.mxu0 0
      %609 = vmatpush1.bf16.msra.mxu0 0
      %610 = vmatprep.subr.bf16.mxu0 0
      %611 = vmatpush1.bf16.msra.mxu0 0
      %612 = vmatprep.subr.bf16.mxu0 0
      %613 = vmatpush1.bf16.msra.mxu0 0
      %614 = vmatprep.subr.bf16.mxu0 0
      %615 = vmatpush1.bf16.msra.mxu0 0
      %616 = vmatprep.subr.bf16.mxu0 0
      %617 = vmatpush1.bf16.msra.mxu0 0
      %618 = vmatprep.subr.bf16.mxu0 0
      %619 = vmatpush1.bf16.msra.mxu0 0
      %620 = vmatprep.mubr.bf16.mxu0 0
      %621 = vmatmul.mubr.bf16.gmra.mrb[0].mxu0 %v536
      %v622 = vpop.f32.mrb[0].mxu0
      %v623 = vadd.f32 0.0, %v622
      %v624 = vpop.f32.mrb[0].mxu0
      %v625 = vpop.f32.mrb[0].mxu0
      %v626 = vadd.f32 0.0, %v625
      %v627 = vpop.f32.mrb[0].mxu0
      %628 = vmatprep.mubr.bf16.mxu0 0
      %629 = vmatmul.mubr.bf16.gmra.mrb[0].mxu0 %v537
      %v630 = vpop.f32.mrb[0].mxu0
      %v631 = vadd.f32 0.0, %v630
      %v632 = vpop.f32.mrb[0].mxu0
      %v633 = vpop.f32.mrb[0].mxu0
      %v634 = vadd.f32 0.0, %v633
      %v635 = vpop.f32.mrb[0].mxu0
      %636 = vdwg.mxu0
      %v641 = vunpack.c.l.b16 %v485
      %v642 = vunpack.c.l.b16 %v486
      %v643 = vunpack.c.l.b16 %v487
      %v644 = vunpack.c.l.b16 %v488
      %v645 = vpack.c.b16 %v642, %v641
      %v646 = vpack.c.b16 %v644, %v643
      %v665 = vunpack.c.l.b16 %v489
      %v666 = vunpack.c.l.b16 %v490
      %v667 = vunpack.c.l.b16 %v491
      %v668 = vunpack.c.l.b16 %v492
      %v669 = vunpack.c.l.b16 %v493
      %v670 = vunpack.c.l.b16 %v494
      %v671 = vunpack.c.l.b16 %v495
      %v672 = vunpack.c.l.b16 %v496
      %v673 = vunpack.c.l.b16 %v497
      %v674 = vunpack.c.l.b16 %v498
      %v675 = vunpack.c.l.b16 %v499
      %v676 = vunpack.c.l.b16 %v500
      %v677 = vunpack.c.l.b16 %v501
      %v678 = vunpack.c.l.b16 %v502
      %v679 = vunpack.c.l.b16 %v503
      %v680 = vunpack.c.l.b16 %v504
      %v681 = vpack.c.b16 %v666, %v665
      %v682 = vpack.c.b16 %v668, %v667
      %v683 = vpack.c.b16 %v670, %v669
      %v684 = vpack.c.b16 %v672, %v671
      %v685 = vpack.c.b16 %v674, %v673
      %v686 = vpack.c.b16 %v676, %v675
      %v687 = vpack.c.b16 %v678, %v677
      %v688 = vpack.c.b16 %v680, %v679
      %697 = vmatprep.subr.bf16.mxu0 0
      %698 = vmatpush1.bf16.msra.mxu0 %v681
      %699 = vmatprep.subr.bf16.mxu0 0
      %700 = vmatpush1.bf16.msra.mxu0 %v682
      %701 = vmatprep.subr.bf16.mxu0 0
      %702 = vmatpush1.bf16.msra.mxu0 %v683
      %703 = vmatprep.subr.bf16.mxu0 0
      %704 = vmatpush1.bf16.msra.mxu0 %v684
      %705 = vmatprep.subr.bf16.mxu0 0
      %706 = vmatpush1.bf16.msra.mxu0 %v685
      %707 = vmatprep.subr.bf16.mxu0 0
      %708 = vmatpush1.bf16.msra.mxu0 %v686
      %709 = vmatprep.subr.bf16.mxu0 0
      %710 = vmatpush1.bf16.msra.mxu0 %v687
      %711 = vmatprep.subr.bf16.mxu0 0
      %712 = vmatpush1.bf16.msra.mxu0 %v688
      %713 = vmatprep.subr.bf16.mxu0 0
      %714 = vmatpush1.bf16.msra.mxu0 0
      %715 = vmatprep.subr.bf16.mxu0 0
      %716 = vmatpush1.bf16.msra.mxu0 0
      %717 = vmatprep.subr.bf16.mxu0 0
      %718 = vmatpush1.bf16.msra.mxu0 0
      %719 = vmatprep.subr.bf16.mxu0 0
      %720 = vmatpush1.bf16.msra.mxu0 0
      %721 = vmatprep.subr.bf16.mxu0 0
      %722 = vmatpush1.bf16.msra.mxu0 0
      %723 = vmatprep.subr.bf16.mxu0 0
      %724 = vmatpush1.bf16.msra.mxu0 0
      %725 = vmatprep.subr.bf16.mxu0 0
      %726 = vmatpush1.bf16.msra.mxu0 0
      %727 = vmatprep.subr.bf16.mxu0 0
      %728 = vmatpush1.bf16.msra.mxu0 0
      %729 = vmatprep.mubr.bf16.mxu0 0
      %730 = vmatmul.mubr.bf16.gmra.mrb[0].mxu0 %v645
      %v731 = vpop.f32.mrb[0].mxu0
      %v732 = vadd.f32 %v623, %v731
      %v733 = vpop.f32.mrb[0].mxu0
      %v734 = vpop.f32.mrb[0].mxu0
      %v735 = vadd.f32 %v626, %v734
      %v736 = vpop.f32.mrb[0].mxu0
      %737 = vmatprep.mubr.bf16.mxu0 0
      %738 = vmatmul.mubr.bf16.gmra.mrb[0].mxu0 %v646
      %v739 = vpop.f32.mrb[0].mxu0
      %v740 = vadd.f32 %v631, %v739
      %v741 = vpop.f32.mrb[0].mxu0
      %v742 = vpop.f32.mrb[0].mxu0
      %v743 = vadd.f32 %v634, %v742
      %v744 = vpop.f32.mrb[0].mxu0
      %745 = vdwg.mxu0
      %v746 = vld [vmem:[%s484] sm:$0xf]
      %v747 = vld [vmem:[%s484 + $0x4] sm:$0x1]
      %v748 = vld [vmem:[%s484 + $0x8] sm:$0xf]
      %v749 = vld [vmem:[%s484 + $0xc] sm:$0x1]
      %v750 = vld [vmem:[%s484 + $0x10] sm:$0xf]
      %v751 = vld [vmem:[%s484 + $0x14] sm:$0x1]
      %v752 = vld [vmem:[%s484 + $0x18] sm:$0xf]
      %v753 = vld [vmem:[%s484 + $0x1c] sm:$0x1]
      %vm754 = vsmask.f32 3328
      %vm755 = vsmask.f32 7440
      %vm756 = vmor %vm754, %vm755
      %v758 = vshrl.u32 %v746, 16
      %v760 = vrot.slane %v758, 4
      %v761 = vshll.u32 %v746, 16
      %v763 = vrot.slane %v761, 5
      %v764 = vor.u32 %v760, %v763
      %v765 = vrot.slane %v764, 4
      %v767 = vshll.u32 %v747, 16
      %v769 = vrot.slane %v767, 5
      %v770 = vsel %vm756, %v765, %v769
      %v772 = vshrl.u32 %v748, 16
      %v774 = vrot.slane %v772, 4
      %v775 = vshll.u32 %v748, 16
      %v777 = vrot.slane %v775, 5
      %v778 = vor.u32 %v774, %v777
      %v779 = vrot.slane %v778, 4
      %v781 = vshll.u32 %v749, 16
      %v783 = vrot.slane %v781, 5
      %v784 = vsel %vm756, %v779, %v783
      %v786 = vshrl.u32 %v750, 16
      %v788 = vrot.slane %v786, 4
      %v789 = vshll.u32 %v750, 16
      %v791 = vrot.slane %v789, 5
      %v792 = vor.u32 %v788, %v791
      %v793 = vrot.slane %v792, 4
      %v795 = vshll.u32 %v751, 16
      %v797 = vrot.slane %v795, 5
      %v798 = vsel %vm756, %v793, %v797
      %v800 = vshrl.u32 %v752, 16
      %v802 = vrot.slane %v800, 4
      %v803 = vshll.u32 %v752, 16
      %v805 = vrot.slane %v803, 5
      %v806 = vor.u32 %v802, %v805
      %v807 = vrot.slane %v806, 4
      %v809 = vshll.u32 %v753, 16
      %v811 = vrot.slane %v809, 5
      %v812 = vsel %vm756, %v807, %v811
      %s813 = scalar_lea.vmem %s4, 128
      %v814 = vld [vmem:[%s813] sm:$0xf]
      %v815 = vld [vmem:[%s813 + $0x4] sm:$0xf]
      %v816 = vld [vmem:[%s813 + $0x8] sm:$0xf]
      %v817 = vld [vmem:[%s813 + $0xc] sm:$0xf]
      %v818 = vld [vmem:[%s813 + $0x10] sm:$0xf]
      %v819 = vld [vmem:[%s813 + $0x14] sm:$0xf]
      %v820 = vld [vmem:[%s813 + $0x18] sm:$0xf]
      %v821 = vld [vmem:[%s813 + $0x1c] sm:$0xf]
      %v822 = vld [vmem:[%s813 + $0x20] sm:$0xf]
      %v823 = vld [vmem:[%s813 + $0x24] sm:$0xf]
      %v824 = vld [vmem:[%s813 + $0x28] sm:$0xf]
      %v825 = vld [vmem:[%s813 + $0x2c] sm:$0xf]
      %v826 = vld [vmem:[%s813 + $0x30] sm:$0xf]
      %v827 = vld [vmem:[%s813 + $0x34] sm:$0xf]
      %v828 = vld [vmem:[%s813 + $0x38] sm:$0xf]
      %v829 = vld [vmem:[%s813 + $0x3c] sm:$0xf]
      %v830 = vunpack.c.l.b16 %v770
      %v831 = vunpack.c.l.b16 %v784
      %v832 = vunpack.c.l.b16 %v798
      %v833 = vunpack.c.l.b16 %v812
      %v834 = vpack.c.b16 %v831, %v830
      %v835 = vpack.c.b16 %v833, %v832
      %v854 = vunpack.c.l.b16 %v814
      %v855 = vunpack.c.l.b16 %v815
      %v856 = vunpack.c.l.b16 %v816
      %v857 = vunpack.c.l.b16 %v817
      %v858 = vunpack.c.l.b16 %v818
      %v859 = vunpack.c.l.b16 %v819
      %v860 = vunpack.c.l.b16 %v820
      %v861 = vunpack.c.l.b16 %v821
      %v862 = vunpack.c.l.b16 %v822
      %v863 = vunpack.c.l.b16 %v823
      %v864 = vunpack.c.l.b16 %v824
      %v865 = vunpack.c.l.b16 %v825
      %v866 = vunpack.c.l.b16 %v826
      %v867 = vunpack.c.l.b16 %v827
      %v868 = vunpack.c.l.b16 %v828
      %v869 = vunpack.c.l.b16 %v829
      %v870 = vpack.c.b16 %v855, %v854
      %v871 = vpack.c.b16 %v857, %v856
      %v872 = vpack.c.b16 %v859, %v858
      %v873 = vpack.c.b16 %v861, %v860
      %v874 = vpack.c.b16 %v863, %v862
      %v875 = vpack.c.b16 %v865, %v864
      %v876 = vpack.c.b16 %v867, %v866
      %v877 = vpack.c.b16 %v869, %v868
      %886 = vmatprep.subr.bf16.mxu0 0
      %887 = vmatpush1.bf16.msra.mxu0 %v870
      %888 = vmatprep.subr.bf16.mxu0 0
      %889 = vmatpush1.bf16.msra.mxu0 %v871
      %890 = vmatprep.subr.bf16.mxu0 0
      %891 = vmatpush1.bf16.msra.mxu0 %v872
      %892 = vmatprep.subr.bf16.mxu0 0
      %893 = vmatpush1.bf16.msra.mxu0 %v873
      %894 = vmatprep.subr.bf16.mxu0 0
      %895 = vmatpush1.bf16.msra.mxu0 %v874
      %896 = vmatprep.subr.bf16.mxu0 0
      %897 = vmatpush1.bf16.msra.mxu0 %v875
      %898 = vmatprep.subr.bf16.mxu0 0
      %899 = vmatpush1.bf16.msra.mxu0 %v876
      %900 = vmatprep.subr.bf16.mxu0 0
      %901 = vmatpush1.bf16.msra.mxu0 %v877
      %902 = vmatprep.subr.bf16.mxu0 0
      %903 = vmatpush1.bf16.msra.mxu0 0
      %904 = vmatprep.subr.bf16.mxu0 0
      %905 = vmatpush1.bf16.msra.mxu0 0
      %906 = vmatprep.subr.bf16.mxu0 0
      %907 = vmatpush1.bf16.msra.mxu0 0
      %908 = vmatprep.subr.bf16.mxu0 0
      %909 = vmatpush1.bf16.msra.mxu0 0
      %910 = vmatprep.subr.bf16.mxu0 0
      %911 = vmatpush1.bf16.msra.mxu0 0
      %912 = vmatprep.subr.bf16.mxu0 0
      %913 = vmatpush1.bf16.msra.mxu0 0
      %914 = vmatprep.subr.bf16.mxu0 0
      %915 = vmatpush1.bf16.msra.mxu0 0
      %916 = vmatprep.subr.bf16.mxu0 0
      %917 = vmatpush1.bf16.msra.mxu0 0
      %918 = vmatprep.mubr.bf16.mxu0 0
      %919 = vmatmul.mubr.bf16.gmra.mrb[0].mxu0 %v834
      %v920 = vpop.f32.mrb[0].mxu0
      %v921 = vadd.f32 0.0, %v920
      %v922 = vpop.f32.mrb[0].mxu0
      %v923 = vpop.f32.mrb[0].mxu0
      %v924 = vadd.f32 0.0, %v923
      %v925 = vpop.f32.mrb[0].mxu0
      %926 = vmatprep.mubr.bf16.mxu0 0
      %927 = vmatmul.mubr.bf16.gmra.mrb[0].mxu0 %v835
      %v928 = vpop.f32.mrb[0].mxu0
      %v929 = vadd.f32 0.0, %v928
      %v930 = vpop.f32.mrb[0].mxu0
      %v931 = vpop.f32.mrb[0].mxu0
      %v932 = vadd.f32 0.0, %v931
      %v933 = vpop.f32.mrb[0].mxu0
      %934 = vdwg.mxu0
      %v935 = vadd.f32 %v732, %v921
      %v936 = vadd.f32 %v735, %v924
      %v937 = vadd.f32 %v740, %v929
      %v938 = vadd.f32 %v743, %v932
      %s939 = smul.addr %s482, 4
      %s940 = scalar_lea.vmem %s438, %s939
      %v941 = vld [vmem:[%s940] sm:$0xf]
      %v942 = vld [vmem:[%s940 + $0x8] sm:$0xf]
      %v943 = vld [vmem:[%s940 + $0x10] sm:$0xf]
      %v944 = vld [vmem:[%s940 + $0x18] sm:$0xf]
      %s945 = scalar_lea.vmem %s4, 192
      %v946 = vld [vmem:[%s945] sm:$0xf]
      %v947 = vld [vmem:[%s945 + $0x4] sm:$0xf]
      %v948 = vld [vmem:[%s945 + $0x8] sm:$0xf]
      %v949 = vld [vmem:[%s945 + $0xc] sm:$0xf]
      %v950 = vld [vmem:[%s945 + $0x10] sm:$0xf]
      %v951 = vld [vmem:[%s945 + $0x14] sm:$0xf]
      %v952 = vld [vmem:[%s945 + $0x18] sm:$0xf]
      %v953 = vld [vmem:[%s945 + $0x1c] sm:$0xf]
      %v954 = vld [vmem:[%s945 + $0x20] sm:$0xf]
      %v955 = vld [vmem:[%s945 + $0x24] sm:$0xf]
      %v956 = vld [vmem:[%s945 + $0x28] sm:$0xf]
      %v957 = vld [vmem:[%s945 + $0x2c] sm:$0xf]
      %v958 = vld [vmem:[%s945 + $0x30] sm:$0xf]
      %v959 = vld [vmem:[%s945 + $0x34] sm:$0xf]
      %v960 = vld [vmem:[%s945 + $0x38] sm:$0xf]
      %v961 = vld [vmem:[%s945 + $0x3c] sm:$0xf]
      %v966 = vunpack.c.l.b16 %v941
      %v967 = vunpack.c.l.b16 %v942
      %v968 = vunpack.c.l.b16 %v943
      %v969 = vunpack.c.l.b16 %v944
      %v970 = vpack.c.b16 %v967, %v966
      %v971 = vpack.c.b16 %v969, %v968
      %v990 = vunpack.c.l.b16 %v946
      %v991 = vunpack.c.l.b16 %v947
      %v992 = vunpack.c.l.b16 %v948
      %v993 = vunpack.c.l.b16 %v949
      %v994 = vunpack.c.l.b16 %v950
      %v995 = vunpack.c.l.b16 %v951
      %v996 = vunpack.c.l.b16 %v952
      %v997 = vunpack.c.l.b16 %v953
      %v998 = vunpack.c.l.b16 %v954
      %v999 = vunpack.c.l.b16 %v955
      %v1000 = vunpack.c.l.b16 %v956
      %v1001 = vunpack.c.l.b16 %v957
      %v1002 = vunpack.c.l.b16 %v958
      %v1003 = vunpack.c.l.b16 %v959
      %v1004 = vunpack.c.l.b16 %v960
      %v1005 = vunpack.c.l.b16 %v961
      %v1006 = vpack.c.b16 %v991, %v990
      %v1007 = vpack.c.b16 %v993, %v992
      %v1008 = vpack.c.b16 %v995, %v994
      %v1009 = vpack.c.b16 %v997, %v996
      %v1010 = vpack.c.b16 %v999, %v998
      %v1011 = vpack.c.b16 %v1001, %v1000
      %v1012 = vpack.c.b16 %v1003, %v1002
      %v1013 = vpack.c.b16 %v1005, %v1004
      %1022 = vmatprep.subr.bf16.mxu0 0
      %1023 = vmatpush1.bf16.msra.mxu0 %v1006
      %1024 = vmatprep.subr.bf16.mxu0 0
      %1025 = vmatpush1.bf16.msra.mxu0 %v1007
      %1026 = vmatprep.subr.bf16.mxu0 0
      %1027 = vmatpush1.bf16.msra.mxu0 %v1008
      %1028 = vmatprep.subr.bf16.mxu0 0
      %1029 = vmatpush1.bf16.msra.mxu0 %v1009
      %1030 = vmatprep.subr.bf16.mxu0 0
      %1031 = vmatpush1.bf16.msra.mxu0 %v1010
      %1032 = vmatprep.subr.bf16.mxu0 0
      %1033 = vmatpush1.bf16.msra.mxu0 %v1011
      %1034 = vmatprep.subr.bf16.mxu0 0
      %1035 = vmatpush1.bf16.msra.mxu0 %v1012
      %1036 = vmatprep.subr.bf16.mxu0 0
      %1037 = vmatpush1.bf16.msra.mxu0 %v1013
      %1038 = vmatprep.subr.bf16.mxu0 0
      %1039 = vmatpush1.bf16.msra.mxu0 0
      %1040 = vmatprep.subr.bf16.mxu0 0
      %1041 = vmatpush1.bf16.msra.mxu0 0
      %1042 = vmatprep.subr.bf16.mxu0 0
      %1043 = vmatpush1.bf16.msra.mxu0 0
      %1044 = vmatprep.subr.bf16.mxu0 0
      %1045 = vmatpush1.bf16.msra.mxu0 0
      %1046 = vmatprep.subr.bf16.mxu0 0
      %1047 = vmatpush1.bf16.msra.mxu0 0
      %1048 = vmatprep.subr.bf16.mxu0 0
      %1049 = vmatpush1.bf16.msra.mxu0 0
      %1050 = vmatprep.subr.bf16.mxu0 0
      %1051 = vmatpush1.bf16.msra.mxu0 0
      %1052 = vmatprep.subr.bf16.mxu0 0
      %1053 = vmatpush1.bf16.msra.mxu0 0
      %1054 = vmatprep.mubr.bf16.mxu0 0
      %1055 = vmatmul.mubr.bf16.gmra.mrb[0].mxu0 %v970
      %v1056 = vpop.f32.mrb[0].mxu0
      %v1057 = vadd.f32 0.0, %v1056
      %v1058 = vpop.f32.mrb[0].mxu0
      %v1059 = vpop.f32.mrb[0].mxu0
      %v1060 = vadd.f32 0.0, %v1059
      %v1061 = vpop.f32.mrb[0].mxu0
      %1062 = vmatprep.mubr.bf16.mxu0 0
      %1063 = vmatmul.mubr.bf16.gmra.mrb[0].mxu0 %v971
      %v1064 = vpop.f32.mrb[0].mxu0
      %v1065 = vadd.f32 0.0, %v1064
      %v1066 = vpop.f32.mrb[0].mxu0
      %v1067 = vpop.f32.mrb[0].mxu0
      %v1068 = vadd.f32 0.0, %v1067
      %v1069 = vpop.f32.mrb[0].mxu0
      %1070 = vdwg.mxu0
      %v1071 = vadd.f32 %v935, %v1057
      %v1072 = vadd.f32 %v936, %v1060
      %v1073 = vadd.f32 %v937, %v1065
      %v1074 = vadd.f32 %v938, %v1068
      %s1075 = smul.addr %s482, 4
      %s1076 = scalar_lea.vmem %s443, %s1075
      %v1077 = vld [vmem:[%s1076] sm:$0xf]
      %v1078 = vld [vmem:[%s1076 + $0x8] sm:$0xf]
      %v1079 = vld [vmem:[%s1076 + $0x10] sm:$0xf]
      %v1080 = vld [vmem:[%s1076 + $0x18] sm:$0xf]
      %s1081 = scalar_lea.vmem %s4, 256
      %v1082 = vld [vmem:[%s1081] sm:$0xf]
      %v1083 = vld [vmem:[%s1081 + $0x4] sm:$0xf]
      %v1084 = vld [vmem:[%s1081 + $0x8] sm:$0xf]
      %v1085 = vld [vmem:[%s1081 + $0xc] sm:$0xf]
      %v1086 = vld [vmem:[%s1081 + $0x10] sm:$0xf]
      %v1087 = vld [vmem:[%s1081 + $0x14] sm:$0xf]
      %v1088 = vld [vmem:[%s1081 + $0x18] sm:$0xf]
      %v1089 = vld [vmem:[%s1081 + $0x1c] sm:$0xf]
      %v1090 = vld [vmem:[%s1081 + $0x20] sm:$0xf]
      %v1091 = vld [vmem:[%s1081 + $0x24] sm:$0xf]
      %v1092 = vld [vmem:[%s1081 + $0x28] sm:$0xf]
      %v1093 = vld [vmem:[%s1081 + $0x2c] sm:$0xf]
      %v1094 = vld [vmem:[%s1081 + $0x30] sm:$0xf]
      %v1095 = vld [vmem:[%s1081 + $0x34] sm:$0xf]
      %v1096 = vld [vmem:[%s1081 + $0x38] sm:$0xf]
      %v1097 = vld [vmem:[%s1081 + $0x3c] sm:$0xf]
      %v1102 = vunpack.c.l.b16 %v1077
      %v1103 = vunpack.c.l.b16 %v1078
      %v1104 = vunpack.c.l.b16 %v1079
      %v1105 = vunpack.c.l.b16 %v1080
      %v1106 = vpack.c.b16 %v1103, %v1102
      %v1107 = vpack.c.b16 %v1105, %v1104
      %v1126 = vunpack.c.l.b16 %v1082
      %v1127 = vunpack.c.l.b16 %v1083
      %v1128 = vunpack.c.l.b16 %v1084
      %v1129 = vunpack.c.l.b16 %v1085
      %v1130 = vunpack.c.l.b16 %v1086
      %v1131 = vunpack.c.l.b16 %v1087
      %v1132 = vunpack.c.l.b16 %v1088
      %v1133 = vunpack.c.l.b16 %v1089
      %v1134 = vunpack.c.l.b16 %v1090
      %v1135 = vunpack.c.l.b16 %v1091
      %v1136 = vunpack.c.l.b16 %v1092
      %v1137 = vunpack.c.l.b16 %v1093
      %v1138 = vunpack.c.l.b16 %v1094
      %v1139 = vunpack.c.l.b16 %v1095
      %v1140 = vunpack.c.l.b16 %v1096
      %v1141 = vunpack.c.l.b16 %v1097
      %v1142 = vpack.c.b16 %v1127, %v1126
      %v1143 = vpack.c.b16 %v1129, %v1128
      %v1144 = vpack.c.b16 %v1131, %v1130
      %v1145 = vpack.c.b16 %v1133, %v1132
      %v1146 = vpack.c.b16 %v1135, %v1134
      %v1147 = vpack.c.b16 %v1137, %v1136
      %v1148 = vpack.c.b16 %v1139, %v1138
      %v1149 = vpack.c.b16 %v1141, %v1140
      %1158 = vmatprep.subr.bf16.mxu0 0
      %1159 = vmatpush1.bf16.msra.mxu0 %v1142
      %1160 = vmatprep.subr.bf16.mxu0 0
      %1161 = vmatpush1.bf16.msra.mxu0 %v1143
      %1162 = vmatprep.subr.bf16.mxu0 0
      %1163 = vmatpush1.bf16.msra.mxu0 %v1144
      %1164 = vmatprep.subr.bf16.mxu0 0
      %1165 = vmatpush1.bf16.msra.mxu0 %v1145
      %1166 = vmatprep.subr.bf16.mxu0 0
      %1167 = vmatpush1.bf16.msra.mxu0 %v1146
      %1168 = vmatprep.subr.bf16.mxu0 0
      %1169 = vmatpush1.bf16.msra.mxu0 %v1147
      %1170 = vmatprep.subr.bf16.mxu0 0
      %1171 = vmatpush1.bf16.msra.mxu0 %v1148
      %1172 = vmatprep.subr.bf16.mxu0 0
      %1173 = vmatpush1.bf16.msra.mxu0 %v1149
      %1174 = vmatprep.subr.bf16.mxu0 0
      %1175 = vmatpush1.bf16.msra.mxu0 0
      %1176 = vmatprep.subr.bf16.mxu0 0
      %1177 = vmatpush1.bf16.msra.mxu0 0
      %1178 = vmatprep.subr.bf16.mxu0 0
      %1179 = vmatpush1.bf16.msra.mxu0 0
      %1180 = vmatprep.subr.bf16.mxu0 0
      %1181 = vmatpush1.bf16.msra.mxu0 0
      %1182 = vmatprep.subr.bf16.mxu0 0
      %1183 = vmatpush1.bf16.msra.mxu0 0
      %1184 = vmatprep.subr.bf16.mxu0 0
      %1185 = vmatpush1.bf16.msra.mxu0 0
      %1186 = vmatprep.subr.bf16.mxu0 0
      %1187 = vmatpush1.bf16.msra.mxu0 0
      %1188 = vmatprep.subr.bf16.mxu0 0
      %1189 = vmatpush1.bf16.msra.mxu0 0
      %1190 = vmatprep.mubr.bf16.mxu0 0
      %1191 = vmatmul.mubr.bf16.gmra.mrb[0].mxu0 %v1106
      %v1192 = vpop.f32.mrb[0].mxu0
      %v1193 = vadd.f32 0.0, %v1192
      %v1194 = vpop.f32.mrb[0].mxu0
      %v1195 = vpop.f32.mrb[0].mxu0
      %v1196 = vadd.f32 0.0, %v1195
      %v1197 = vpop.f32.mrb[0].mxu0
      %1198 = vmatprep.mubr.bf16.mxu0 0
      %1199 = vmatmul.mubr.bf16.gmra.mrb[0].mxu0 %v1107
      %v1200 = vpop.f32.mrb[0].mxu0
      %v1201 = vadd.f32 0.0, %v1200
      %v1202 = vpop.f32.mrb[0].mxu0
      %v1203 = vpop.f32.mrb[0].mxu0
      %v1204 = vadd.f32 0.0, %v1203
      %v1205 = vpop.f32.mrb[0].mxu0
      %1206 = vdwg.mxu0
      %v1207 = vadd.f32 %v1071, %v1193
      %v1208 = vadd.f32 %v1072, %v1196
      %v1209 = vadd.f32 %v1073, %v1201
      %v1210 = vadd.f32 %v1074, %v1204
      %v1211 = vld [vmem:[%s940] sm:$0xf]
      %v1212 = vld [vmem:[%s940 + $0x4] sm:$0x1]
      %v1213 = vld [vmem:[%s940 + $0x8] sm:$0xf]
      %v1214 = vld [vmem:[%s940 + $0xc] sm:$0x1]
      %v1215 = vld [vmem:[%s940 + $0x10] sm:$0xf]
      %v1216 = vld [vmem:[%s940 + $0x14] sm:$0x1]
      %v1217 = vld [vmem:[%s940 + $0x18] sm:$0xf]
      %v1218 = vld [vmem:[%s940 + $0x1c] sm:$0x1]
      %v1220 = vshrl.u32 %v1211, 16
      %v1222 = vrot.slane %v1220, 4
      %v1223 = vshll.u32 %v1211, 16
      %v1225 = vrot.slane %v1223, 5
      %v1226 = vor.u32 %v1222, %v1225
      %v1227 = vrot.slane %v1226, 4
      %v1229 = vshll.u32 %v1212, 16
      %v1231 = vrot.slane %v1229, 5
      %v1232 = vsel %vm756, %v1227, %v1231
      %v1234 = vshrl.u32 %v1213, 16
      %v1236 = vrot.slane %v1234, 4
      %v1237 = vshll.u32 %v1213, 16
      %v1239 = vrot.slane %v1237, 5
      %v1240 = vor.u32 %v1236, %v1239
      %v1241 = vrot.slane %v1240, 4
      %v1243 = vshll.u32 %v1214, 16
      %v1245 = vrot.slane %v1243, 5
      %v1246 = vsel %vm756, %v1241, %v1245
      %v1248 = vshrl.u32 %v1215, 16
      %v1250 = vrot.slane %v1248, 4
      %v1251 = vshll.u32 %v1215, 16
      %v1253 = vrot.slane %v1251, 5
      %v1254 = vor.u32 %v1250, %v1253
      %v1255 = vrot.slane %v1254, 4
      %v1257 = vshll.u32 %v1216, 16
      %v1259 = vrot.slane %v1257, 5
      %v1260 = vsel %vm756, %v1255, %v1259
      %v1262 = vshrl.u32 %v1217, 16
      %v1264 = vrot.slane %v1262, 4
      %v1265 = vshll.u32 %v1217, 16
      %v1267 = vrot.slane %v1265, 5
      %v1268 = vor.u32 %v1264, %v1267
      %v1269 = vrot.slane %v1268, 4
      %v1271 = vshll.u32 %v1218, 16
      %v1273 = vrot.slane %v1271, 5
      %v1274 = vsel %vm756, %v1269, %v1273
      %s1275 = scalar_lea.vmem %s4, 320
      %v1276 = vld [vmem:[%s1275] sm:$0xf]
      %v1277 = vld [vmem:[%s1275 + $0x4] sm:$0xf]
      %v1278 = vld [vmem:[%s1275 + $0x8] sm:$0xf]
      %v1279 = vld [vmem:[%s1275 + $0xc] sm:$0xf]
      %v1280 = vld [vmem:[%s1275 + $0x10] sm:$0xf]
      %v1281 = vld [vmem:[%s1275 + $0x14] sm:$0xf]
      %v1282 = vld [vmem:[%s1275 + $0x18] sm:$0xf]
      %v1283 = vld [vmem:[%s1275 + $0x1c] sm:$0xf]
      %v1284 = vld [vmem:[%s1275 + $0x20] sm:$0xf]
      %v1285 = vld [vmem:[%s1275 + $0x24] sm:$0xf]
      %v1286 = vld [vmem:[%s1275 + $0x28] sm:$0xf]
      %v1287 = vld [vmem:[%s1275 + $0x2c] sm:$0xf]
      %v1288 = vld [vmem:[%s1275 + $0x30] sm:$0xf]
      %v1289 = vld [vmem:[%s1275 + $0x34] sm:$0xf]
      %v1290 = vld [vmem:[%s1275 + $0x38] sm:$0xf]
      %v1291 = vld [vmem:[%s1275 + $0x3c] sm:$0xf]
      %v1292 = vunpack.c.l.b16 %v1232
      %v1293 = vunpack.c.l.b16 %v1246
      %v1294 = vunpack.c.l.b16 %v1260
      %v1295 = vunpack.c.l.b16 %v1274
      %v1296 = vpack.c.b16 %v1293, %v1292
      %v1297 = vpack.c.b16 %v1295, %v1294
      %v1316 = vunpack.c.l.b16 %v1276
      %v1317 = vunpack.c.l.b16 %v1277
      %v1318 = vunpack.c.l.b16 %v1278
      %v1319 = vunpack.c.l.b16 %v1279
      %v1320 = vunpack.c.l.b16 %v1280
      %v1321 = vunpack.c.l.b16 %v1281
      %v1322 = vunpack.c.l.b16 %v1282
      %v1323 = vunpack.c.l.b16 %v1283
      %v1324 = vunpack.c.l.b16 %v1284
      %v1325 = vunpack.c.l.b16 %v1285
      %v1326 = vunpack.c.l.b16 %v1286
      %v1327 = vunpack.c.l.b16 %v1287
      %v1328 = vunpack.c.l.b16 %v1288
      %v1329 = vunpack.c.l.b16 %v1289
      %v1330 = vunpack.c.l.b16 %v1290
      %v1331 = vunpack.c.l.b16 %v1291
      %v1332 = vpack.c.b16 %v1317, %v1316
      %v1333 = vpack.c.b16 %v1319, %v1318
      %v1334 = vpack.c.b16 %v1321, %v1320
      %v1335 = vpack.c.b16 %v1323, %v1322
      %v1336 = vpack.c.b16 %v1325, %v1324
      %v1337 = vpack.c.b16 %v1327, %v1326
      %v1338 = vpack.c.b16 %v1329, %v1328
      %v1339 = vpack.c.b16 %v1331, %v1330
      %1348 = vmatprep.subr.bf16.mxu0 0
      %1349 = vmatpush1.bf16.msra.mxu0 %v1332
      %1350 = vmatprep.subr.bf16.mxu0 0
      %1351 = vmatpush1.bf16.msra.mxu0 %v1333
      %1352 = vmatprep.subr.bf16.mxu0 0
      %1353 = vmatpush1.bf16.msra.mxu0 %v1334
      %1354 = vmatprep.subr.bf16.mxu0 0
      %1355 = vmatpush1.bf16.msra.mxu0 %v1335
      %1356 = vmatprep.subr.bf16.mxu0 0
      %1357 = vmatpush1.bf16.msra.mxu0 %v1336
      %1358 = vmatprep.subr.bf16.mxu0 0
      %1359 = vmatpush1.bf16.msra.mxu0 %v1337
      %1360 = vmatprep.subr.bf16.mxu0 0
      %1361 = vmatpush1.bf16.msra.mxu0 %v1338
      %1362 = vmatprep.subr.bf16.mxu0 0
      %1363 = vmatpush1.bf16.msra.mxu0 %v1339
      %1364 = vmatprep.subr.bf16.mxu0 0
      %1365 = vmatpush1.bf16.msra.mxu0 0
      %1366 = vmatprep.subr.bf16.mxu0 0
      %1367 = vmatpush1.bf16.msra.mxu0 0
      %1368 = vmatprep.subr.bf16.mxu0 0
      %1369 = vmatpush1.bf16.msra.mxu0 0
      %1370 = vmatprep.subr.bf16.mxu0 0
      %1371 = vmatpush1.bf16.msra.mxu0 0
      %1372 = vmatprep.subr.bf16.mxu0 0
      %1373 = vmatpush1.bf16.msra.mxu0 0
      %1374 = vmatprep.subr.bf16.mxu0 0
      %1375 = vmatpush1.bf16.msra.mxu0 0
      %1376 = vmatprep.subr.bf16.mxu0 0
      %1377 = vmatpush1.bf16.msra.mxu0 0
      %1378 = vmatprep.subr.bf16.mxu0 0
      %1379 = vmatpush1.bf16.msra.mxu0 0
      %1380 = vmatprep.mubr.bf16.mxu0 0
      %1381 = vmatmul.mubr.bf16.gmra.mrb[0].mxu0 %v1296
      %v1382 = vpop.f32.mrb[0].mxu0
      %v1383 = vadd.f32 0.0, %v1382
      %v1384 = vpop.f32.mrb[0].mxu0
      %v1385 = vpop.f32.mrb[0].mxu0
      %v1386 = vadd.f32 0.0, %v1385
      %v1387 = vpop.f32.mrb[0].mxu0
      %1388 = vmatprep.mubr.bf16.mxu0 0
      %1389 = vmatmul.mubr.bf16.gmra.mrb[0].mxu0 %v1297
      %v1390 = vpop.f32.mrb[0].mxu0
      %v1391 = vadd.f32 0.0, %v1390
      %v1392 = vpop.f32.mrb[0].mxu0
      %v1393 = vpop.f32.mrb[0].mxu0
      %v1394 = vadd.f32 0.0, %v1393
      %v1395 = vpop.f32.mrb[0].mxu0
      %1396 = vdwg.mxu0
      %v1397 = vadd.f32 %v1207, %v1383
      %v1398 = vadd.f32 %v1208, %v1386
      %v1399 = vadd.f32 %v1209, %v1391
      %v1400 = vadd.f32 %v1210, %v1394
      %s1401 = sadd.s32 %s481, 1
      %s1402 = smul.u32 %s1401, 2
      %s1403 = smul.addr %s1402, 4
      %s1404 = scalar_lea.vmem %s428, %s1403
      %v1405 = vld [vmem:[%s1404] sm:$0xf]
      %v1406 = vld [vmem:[%s1404 + $0x8] sm:$0xf]
      %v1407 = vld [vmem:[%s1404 + $0x10] sm:$0xf]
      %v1408 = vld [vmem:[%s1404 + $0x18] sm:$0xf]
      %s1409 = scalar_lea.vmem %s4, 384
      %v1410 = vld [vmem:[%s1409] sm:$0xf]
      %v1411 = vld [vmem:[%s1409 + $0x4] sm:$0xf]
      %v1412 = vld [vmem:[%s1409 + $0x8] sm:$0xf]
      %v1413 = vld [vmem:[%s1409 + $0xc] sm:$0xf]
      %v1414 = vld [vmem:[%s1409 + $0x10] sm:$0xf]
      %v1415 = vld [vmem:[%s1409 + $0x14] sm:$0xf]
      %v1416 = vld [vmem:[%s1409 + $0x18] sm:$0xf]
      %v1417 = vld [vmem:[%s1409 + $0x1c] sm:$0xf]
      %v1418 = vld [vmem:[%s1409 + $0x20] sm:$0xf]
      %v1419 = vld [vmem:[%s1409 + $0x24] sm:$0xf]
      %v1420 = vld [vmem:[%s1409 + $0x28] sm:$0xf]
      %v1421 = vld [vmem:[%s1409 + $0x2c] sm:$0xf]
      %v1422 = vld [vmem:[%s1409 + $0x30] sm:$0xf]
      %v1423 = vld [vmem:[%s1409 + $0x34] sm:$0xf]
      %v1424 = vld [vmem:[%s1409 + $0x38] sm:$0xf]
      %v1425 = vld [vmem:[%s1409 + $0x3c] sm:$0xf]
      %v1430 = vunpack.c.l.b16 %v1405
      %v1431 = vunpack.c.l.b16 %v1406
      %v1432 = vunpack.c.l.b16 %v1407
      %v1433 = vunpack.c.l.b16 %v1408
      %v1434 = vpack.c.b16 %v1431, %v1430
      %v1435 = vpack.c.b16 %v1433, %v1432
      %v1454 = vunpack.c.l.b16 %v1410
      %v1455 = vunpack.c.l.b16 %v1411
      %v1456 = vunpack.c.l.b16 %v1412
      %v1457 = vunpack.c.l.b16 %v1413
      %v1458 = vunpack.c.l.b16 %v1414
      %v1459 = vunpack.c.l.b16 %v1415
      %v1460 = vunpack.c.l.b16 %v1416
      %v1461 = vunpack.c.l.b16 %v1417
      %v1462 = vunpack.c.l.b16 %v1418
      %v1463 = vunpack.c.l.b16 %v1419
      %v1464 = vunpack.c.l.b16 %v1420
      %v1465 = vunpack.c.l.b16 %v1421
      %v1466 = vunpack.c.l.b16 %v1422
      %v1467 = vunpack.c.l.b16 %v1423
      %v1468 = vunpack.c.l.b16 %v1424
      %v1469 = vunpack.c.l.b16 %v1425
      %v1470 = vpack.c.b16 %v1455, %v1454
      %v1471 = vpack.c.b16 %v1457, %v1456
      %v1472 = vpack.c.b16 %v1459, %v1458
      %v1473 = vpack.c.b16 %v1461, %v1460
      %v1474 = vpack.c.b16 %v1463, %v1462
      %v1475 = vpack.c.b16 %v1465, %v1464
      %v1476 = vpack.c.b16 %v1467, %v1466
      %v1477 = vpack.c.b16 %v1469, %v1468
      %1486 = vmatprep.subr.bf16.mxu0 0
      %1487 = vmatpush1.bf16.msra.mxu0 %v1470
      %1488 = vmatprep.subr.bf16.mxu0 0
      %1489 = vmatpush1.bf16.msra.mxu0 %v1471
      %1490 = vmatprep.subr.bf16.mxu0 0
      %1491 = vmatpush1.bf16.msra.mxu0 %v1472
      %1492 = vmatprep.subr.bf16.mxu0 0
      %1493 = vmatpush1.bf16.msra.mxu0 %v1473
      %1494 = vmatprep.subr.bf16.mxu0 0
      %1495 = vmatpush1.bf16.msra.mxu0 %v1474
      %1496 = vmatprep.subr.bf16.mxu0 0
      %1497 = vmatpush1.bf16.msra.mxu0 %v1475
      %1498 = vmatprep.subr.bf16.mxu0 0
      %1499 = vmatpush1.bf16.msra.mxu0 %v1476
      %1500 = vmatprep.subr.bf16.mxu0 0
      %1501 = vmatpush1.bf16.msra.mxu0 %v1477
      %1502 = vmatprep.subr.bf16.mxu0 0
      %1503 = vmatpush1.bf16.msra.mxu0 0
      %1504 = vmatprep.subr.bf16.mxu0 0
      %1505 = vmatpush1.bf16.msra.mxu0 0
      %1506 = vmatprep.subr.bf16.mxu0 0
      %1507 = vmatpush1.bf16.msra.mxu0 0
      %1508 = vmatprep.subr.bf16.mxu0 0
      %1509 = vmatpush1.bf16.msra.mxu0 0
      %1510 = vmatprep.subr.bf16.mxu0 0
      %1511 = vmatpush1.bf16.msra.mxu0 0
      %1512 = vmatprep.subr.bf16.mxu0 0
      %1513 = vmatpush1.bf16.msra.mxu0 0
      %1514 = vmatprep.subr.bf16.mxu0 0
      %1515 = vmatpush1.bf16.msra.mxu0 0
      %1516 = vmatprep.subr.bf16.mxu0 0
      %1517 = vmatpush1.bf16.msra.mxu0 0
      %1518 = vmatprep.mubr.bf16.mxu0 0
      %1519 = vmatmul.mubr.bf16.gmra.mrb[0].mxu0 %v1434
      %v1520 = vpop.f32.mrb[0].mxu0
      %v1521 = vadd.f32 0.0, %v1520
      %v1522 = vpop.f32.mrb[0].mxu0
      %v1523 = vpop.f32.mrb[0].mxu0
      %v1524 = vadd.f32 0.0, %v1523
      %v1525 = vpop.f32.mrb[0].mxu0
      %1526 = vmatprep.mubr.bf16.mxu0 0
      %1527 = vmatmul.mubr.bf16.gmra.mrb[0].mxu0 %v1435
      %v1528 = vpop.f32.mrb[0].mxu0
      %v1529 = vadd.f32 0.0, %v1528
      %v1530 = vpop.f32.mrb[0].mxu0
      %v1531 = vpop.f32.mrb[0].mxu0
      %v1532 = vadd.f32 0.0, %v1531
      %v1533 = vpop.f32.mrb[0].mxu0
      %1534 = vdwg.mxu0
      %v1535 = vadd.f32 %v1397, %v1521
      %v1536 = vadd.f32 %v1398, %v1524
      %v1537 = vadd.f32 %v1399, %v1529
      %v1538 = vadd.f32 %v1400, %v1532
      %s1539 = smul.addr %s1402, 4
      %s1540 = scalar_lea.vmem %s433, %s1539
      %v1541 = vld [vmem:[%s1540] sm:$0xf]
      %v1542 = vld [vmem:[%s1540 + $0x8] sm:$0xf]
      %v1543 = vld [vmem:[%s1540 + $0x10] sm:$0xf]
      %v1544 = vld [vmem:[%s1540 + $0x18] sm:$0xf]
      %s1545 = scalar_lea.vmem %s4, 448
      %v1546 = vld [vmem:[%s1545] sm:$0xf]
      %v1547 = vld [vmem:[%s1545 + $0x4] sm:$0xf]
      %v1548 = vld [vmem:[%s1545 + $0x8] sm:$0xf]
      %v1549 = vld [vmem:[%s1545 + $0xc] sm:$0xf]
      %v1550 = vld [vmem:[%s1545 + $0x10] sm:$0xf]
      %v1551 = vld [vmem:[%s1545 + $0x14] sm:$0xf]
      %v1552 = vld [vmem:[%s1545 + $0x18] sm:$0xf]
      %v1553 = vld [vmem:[%s1545 + $0x1c] sm:$0xf]
      %v1554 = vld [vmem:[%s1545 + $0x20] sm:$0xf]
      %v1555 = vld [vmem:[%s1545 + $0x24] sm:$0xf]
      %v1556 = vld [vmem:[%s1545 + $0x28] sm:$0xf]
      %v1557 = vld [vmem:[%s1545 + $0x2c] sm:$0xf]
      %v1558 = vld [vmem:[%s1545 + $0x30] sm:$0xf]
      %v1559 = vld [vmem:[%s1545 + $0x34] sm:$0xf]
      %v1560 = vld [vmem:[%s1545 + $0x38] sm:$0xf]
      %v1561 = vld [vmem:[%s1545 + $0x3c] sm:$0xf]
      %v1566 = vunpack.c.l.b16 %v1541
      %v1567 = vunpack.c.l.b16 %v1542
      %v1568 = vunpack.c.l.b16 %v1543
      %v1569 = vunpack.c.l.b16 %v1544
      %v1570 = vpack.c.b16 %v1567, %v1566
      %v1571 = vpack.c.b16 %v1569, %v1568
      %v1590 = vunpack.c.l.b16 %v1546
      %v1591 = vunpack.c.l.b16 %v1547
      %v1592 = vunpack.c.l.b16 %v1548
      %v1593 = vunpack.c.l.b16 %v1549
      %v1594 = vunpack.c.l.b16 %v1550
      %v1595 = vunpack.c.l.b16 %v1551
      %v1596 = vunpack.c.l.b16 %v1552
      %v1597 = vunpack.c.l.b16 %v1553
      %v1598 = vunpack.c.l.b16 %v1554
      %v1599 = vunpack.c.l.b16 %v1555
      %v1600 = vunpack.c.l.b16 %v1556
      %v1601 = vunpack.c.l.b16 %v1557
      %v1602 = vunpack.c.l.b16 %v1558
      %v1603 = vunpack.c.l.b16 %v1559
      %v1604 = vunpack.c.l.b16 %v1560
      %v1605 = vunpack.c.l.b16 %v1561
      %v1606 = vpack.c.b16 %v1591, %v1590
      %v1607 = vpack.c.b16 %v1593, %v1592
      %v1608 = vpack.c.b16 %v1595, %v1594
      %v1609 = vpack.c.b16 %v1597, %v1596
      %v1610 = vpack.c.b16 %v1599, %v1598
      %v1611 = vpack.c.b16 %v1601, %v1600
      %v1612 = vpack.c.b16 %v1603, %v1602
      %v1613 = vpack.c.b16 %v1605, %v1604
      %1622 = vmatprep.subr.bf16.mxu0 0
      %1623 = vmatpush1.bf16.msra.mxu0 %v1606
      %1624 = vmatprep.subr.bf16.mxu0 0
      %1625 = vmatpush1.bf16.msra.mxu0 %v1607
      %1626 = vmatprep.subr.bf16.mxu0 0
      %1627 = vmatpush1.bf16.msra.mxu0 %v1608
      %1628 = vmatprep.subr.bf16.mxu0 0
      %1629 = vmatpush1.bf16.msra.mxu0 %v1609
      %1630 = vmatprep.subr.bf16.mxu0 0
      %1631 = vmatpush1.bf16.msra.mxu0 %v1610
      %1632 = vmatprep.subr.bf16.mxu0 0
      %1633 = vmatpush1.bf16.msra.mxu0 %v1611
      %1634 = vmatprep.subr.bf16.mxu0 0
      %1635 = vmatpush1.bf16.msra.mxu0 %v1612
      %1636 = vmatprep.subr.bf16.mxu0 0
      %1637 = vmatpush1.bf16.msra.mxu0 %v1613
      %1638 = vmatprep.subr.bf16.mxu0 0
      %1639 = vmatpush1.bf16.msra.mxu0 0
      %1640 = vmatprep.subr.bf16.mxu0 0
      %1641 = vmatpush1.bf16.msra.mxu0 0
      %1642 = vmatprep.subr.bf16.mxu0 0
      %1643 = vmatpush1.bf16.msra.mxu0 0
      %1644 = vmatprep.subr.bf16.mxu0 0
      %1645 = vmatpush1.bf16.msra.mxu0 0
      %1646 = vmatprep.subr.bf16.mxu0 0
      %1647 = vmatpush1.bf16.msra.mxu0 0
      %1648 = vmatprep.subr.bf16.mxu0 0
      %1649 = vmatpush1.bf16.msra.mxu0 0
      %1650 = vmatprep.subr.bf16.mxu0 0
      %1651 = vmatpush1.bf16.msra.mxu0 0
      %1652 = vmatprep.subr.bf16.mxu0 0
      %1653 = vmatpush1.bf16.msra.mxu0 0
      %1654 = vmatprep.mubr.bf16.mxu0 0
      %1655 = vmatmul.mubr.bf16.gmra.mrb[0].mxu0 %v1570
      %v1656 = vpop.f32.mrb[0].mxu0
      %v1657 = vadd.f32 0.0, %v1656
      %v1658 = vpop.f32.mrb[0].mxu0
      %v1659 = vpop.f32.mrb[0].mxu0
      %v1660 = vadd.f32 0.0, %v1659
      %v1661 = vpop.f32.mrb[0].mxu0
      %1662 = vmatprep.mubr.bf16.mxu0 0
      %1663 = vmatmul.mubr.bf16.gmra.mrb[0].mxu0 %v1571
      %v1664 = vpop.f32.mrb[0].mxu0
      %v1665 = vadd.f32 0.0, %v1664
      %v1666 = vpop.f32.mrb[0].mxu0
      %v1667 = vpop.f32.mrb[0].mxu0
      %v1668 = vadd.f32 0.0, %v1667
      %v1669 = vpop.f32.mrb[0].mxu0
      %1670 = vdwg.mxu0
      %v1671 = vadd.f32 %v1535, %v1657
      %v1672 = vadd.f32 %v1536, %v1660
      %v1673 = vadd.f32 %v1537, %v1665
      %v1674 = vadd.f32 %v1538, %v1668
      %v1675 = vld [vmem:[%s1404] sm:$0xf]
      %v1676 = vld [vmem:[%s1404 + $0x4] sm:$0x1]
      %v1677 = vld [vmem:[%s1404 + $0x8] sm:$0xf]
      %v1678 = vld [vmem:[%s1404 + $0xc] sm:$0x1]
      %v1679 = vld [vmem:[%s1404 + $0x10] sm:$0xf]
      %v1680 = vld [vmem:[%s1404 + $0x14] sm:$0x1]
      %v1681 = vld [vmem:[%s1404 + $0x18] sm:$0xf]
      %v1682 = vld [vmem:[%s1404 + $0x1c] sm:$0x1]
      %v1684 = vshrl.u32 %v1675, 16
      %v1686 = vrot.slane %v1684, 4
      %v1687 = vshll.u32 %v1675, 16
      %v1689 = vrot.slane %v1687, 5
      %v1690 = vor.u32 %v1686, %v1689
      %v1691 = vrot.slane %v1690, 4
      %v1693 = vshll.u32 %v1676, 16
      %v1695 = vrot.slane %v1693, 5
      %v1696 = vsel %vm756, %v1691, %v1695
      %v1698 = vshrl.u32 %v1677, 16
      %v1700 = vrot.slane %v1698, 4
      %v1701 = vshll.u32 %v1677, 16
      %v1703 = vrot.slane %v1701, 5
      %v1704 = vor.u32 %v1700, %v1703
      %v1705 = vrot.slane %v1704, 4
      %v1707 = vshll.u32 %v1678, 16
      %v1709 = vrot.slane %v1707, 5
      %v1710 = vsel %vm756, %v1705, %v1709
      %v1712 = vshrl.u32 %v1679, 16
      %v1714 = vrot.slane %v1712, 4
      %v1715 = vshll.u32 %v1679, 16
      %v1717 = vrot.slane %v1715, 5
      %v1718 = vor.u32 %v1714, %v1717
      %v1719 = vrot.slane %v1718, 4
      %v1721 = vshll.u32 %v1680, 16
      %v1723 = vrot.slane %v1721, 5
      %v1724 = vsel %vm756, %v1719, %v1723
      %v1726 = vshrl.u32 %v1681, 16
      %v1728 = vrot.slane %v1726, 4
      %v1729 = vshll.u32 %v1681, 16
      %v1731 = vrot.slane %v1729, 5
      %v1732 = vor.u32 %v1728, %v1731
      %v1733 = vrot.slane %v1732, 4
      %v1735 = vshll.u32 %v1682, 16
      %v1737 = vrot.slane %v1735, 5
      %v1738 = vsel %vm756, %v1733, %v1737
      %s1739 = scalar_lea.vmem %s4, 512
      %v1740 = vld [vmem:[%s1739] sm:$0xf]
      %v1741 = vld [vmem:[%s1739 + $0x4] sm:$0xf]
      %v1742 = vld [vmem:[%s1739 + $0x8] sm:$0xf]
      %v1743 = vld [vmem:[%s1739 + $0xc] sm:$0xf]
      %v1744 = vld [vmem:[%s1739 + $0x10] sm:$0xf]
      %v1745 = vld [vmem:[%s1739 + $0x14] sm:$0xf]
      %v1746 = vld [vmem:[%s1739 + $0x18] sm:$0xf]
      %v1747 = vld [vmem:[%s1739 + $0x1c] sm:$0xf]
      %v1748 = vld [vmem:[%s1739 + $0x20] sm:$0xf]
      %v1749 = vld [vmem:[%s1739 + $0x24] sm:$0xf]
      %v1750 = vld [vmem:[%s1739 + $0x28] sm:$0xf]
      %v1751 = vld [vmem:[%s1739 + $0x2c] sm:$0xf]
      %v1752 = vld [vmem:[%s1739 + $0x30] sm:$0xf]
      %v1753 = vld [vmem:[%s1739 + $0x34] sm:$0xf]
      %v1754 = vld [vmem:[%s1739 + $0x38] sm:$0xf]
      %v1755 = vld [vmem:[%s1739 + $0x3c] sm:$0xf]
      %v1756 = vunpack.c.l.b16 %v1696
      %v1757 = vunpack.c.l.b16 %v1710
      %v1758 = vunpack.c.l.b16 %v1724
      %v1759 = vunpack.c.l.b16 %v1738
      %v1760 = vpack.c.b16 %v1757, %v1756
      %v1761 = vpack.c.b16 %v1759, %v1758
      %v1780 = vunpack.c.l.b16 %v1740
      %v1781 = vunpack.c.l.b16 %v1741
      %v1782 = vunpack.c.l.b16 %v1742
      %v1783 = vunpack.c.l.b16 %v1743
      %v1784 = vunpack.c.l.b16 %v1744
      %v1785 = vunpack.c.l.b16 %v1745
      %v1786 = vunpack.c.l.b16 %v1746
      %v1787 = vunpack.c.l.b16 %v1747
      %v1788 = vunpack.c.l.b16 %v1748
      %v1789 = vunpack.c.l.b16 %v1749
      %v1790 = vunpack.c.l.b16 %v1750
      %v1791 = vunpack.c.l.b16 %v1751
      %v1792 = vunpack.c.l.b16 %v1752
      %v1793 = vunpack.c.l.b16 %v1753
      %v1794 = vunpack.c.l.b16 %v1754
      %v1795 = vunpack.c.l.b16 %v1755
      %v1796 = vpack.c.b16 %v1781, %v1780
      %v1797 = vpack.c.b16 %v1783, %v1782
      %v1798 = vpack.c.b16 %v1785, %v1784
      %v1799 = vpack.c.b16 %v1787, %v1786
      %v1800 = vpack.c.b16 %v1789, %v1788
      %v1801 = vpack.c.b16 %v1791, %v1790
      %v1802 = vpack.c.b16 %v1793, %v1792
      %v1803 = vpack.c.b16 %v1795, %v1794
      %1812 = vmatprep.subr.bf16.mxu0 0
      %1813 = vmatpush1.bf16.msra.mxu0 %v1796
      %1814 = vmatprep.subr.bf16.mxu0 0
      %1815 = vmatpush1.bf16.msra.mxu0 %v1797
      %1816 = vmatprep.subr.bf16.mxu0 0
      %1817 = vmatpush1.bf16.msra.mxu0 %v1798
      %1818 = vmatprep.subr.bf16.mxu0 0
      %1819 = vmatpush1.bf16.msra.mxu0 %v1799
      %1820 = vmatprep.subr.bf16.mxu0 0
      %1821 = vmatpush1.bf16.msra.mxu0 %v1800
      %1822 = vmatprep.subr.bf16.mxu0 0
      %1823 = vmatpush1.bf16.msra.mxu0 %v1801
      %1824 = vmatprep.subr.bf16.mxu0 0
      %1825 = vmatpush1.bf16.msra.mxu0 %v1802
      %1826 = vmatprep.subr.bf16.mxu0 0
      %1827 = vmatpush1.bf16.msra.mxu0 %v1803
      %1828 = vmatprep.subr.bf16.mxu0 0
      %1829 = vmatpush1.bf16.msra.mxu0 0
      %1830 = vmatprep.subr.bf16.mxu0 0
      %1831 = vmatpush1.bf16.msra.mxu0 0
      %1832 = vmatprep.subr.bf16.mxu0 0
      %1833 = vmatpush1.bf16.msra.mxu0 0
      %1834 = vmatprep.subr.bf16.mxu0 0
      %1835 = vmatpush1.bf16.msra.mxu0 0
      %1836 = vmatprep.subr.bf16.mxu0 0
      %1837 = vmatpush1.bf16.msra.mxu0 0
      %1838 = vmatprep.subr.bf16.mxu0 0
      %1839 = vmatpush1.bf16.msra.mxu0 0
      %1840 = vmatprep.subr.bf16.mxu0 0
      %1841 = vmatpush1.bf16.msra.mxu0 0
      %1842 = vmatprep.subr.bf16.mxu0 0
      %1843 = vmatpush1.bf16.msra.mxu0 0
      %1844 = vmatprep.mubr.bf16.mxu0 0
      %1845 = vmatmul.mubr.bf16.gmra.mrb[0].mxu0 %v1760
      %v1846 = vpop.f32.mrb[0].mxu0
      %v1847 = vadd.f32 0.0, %v1846
      %v1848 = vpop.f32.mrb[0].mxu0
      %v1849 = vpop.f32.mrb[0].mxu0
      %v1850 = vadd.f32 0.0, %v1849
      %v1851 = vpop.f32.mrb[0].mxu0
      %1852 = vmatprep.mubr.bf16.mxu0 0
      %1853 = vmatmul.mubr.bf16.gmra.mrb[0].mxu0 %v1761
      %v1854 = vpop.f32.mrb[0].mxu0
      %v1855 = vadd.f32 0.0, %v1854
      %v1856 = vpop.f32.mrb[0].mxu0
      %v1857 = vpop.f32.mrb[0].mxu0
      %v1858 = vadd.f32 0.0, %v1857
      %v1859 = vpop.f32.mrb[0].mxu0
      %1860 = vdwg.mxu0
      %v1861 = vadd.f32 %v1671, %v1847
      %v1862 = vadd.f32 %v1672, %v1850
      %v1863 = vadd.f32 %v1673, %v1855
      %v1864 = vadd.f32 %v1674, %v1858
      %1865 = vst [vmem:[%s452] sm:$0xff] %v1861
      %1866 = vst [vmem:[%s452 + $0x8] sm:$0xff] %v1862
      %1867 = vst [vmem:[%s452 + $0x10] sm:$0xff] %v1863
      %1868 = vst [vmem:[%s452 + $0x18] sm:$0xff] %v1864
      %v1869 = vadd.f32 %v1861, %v1862
      %v1870 = vadd.f32 %v1869, %v1863
      %v1871 = vadd.f32 %v1870, %v1864
      %v1872 = vrot.slane %v1871, 4
      %v1873 = vadd.f32 %v1871, %v1872
      %v1874 = vrot.slane %v1873, 2
      %v1875 = vadd.f32 %v1873, %v1874
      %v1876 = vrot.slane %v1875, 1
      %v1877 = vadd.f32 %v1875, %v1876
      %v1878 = vmul.f32 %v1861, %v1861
      %v1879 = vmul.f32 %v1862, %v1862
      %v1880 = vmul.f32 %v1863, %v1863
      %v1881 = vmul.f32 %v1864, %v1864
      %v1882 = vadd.f32 %v1878, %v1879
      %v1883 = vadd.f32 %v1882, %v1880
      %v1884 = vadd.f32 %v1883, %v1881
      %v1885 = vrot.slane %v1884, 4
      %v1886 = vadd.f32 %v1884, %v1885
      %v1887 = vrot.slane %v1886, 2
      %v1888 = vadd.f32 %v1886, %v1887
      %v1889 = vrot.slane %v1888, 1
      %v1890 = vadd.f32 %v1888, %v1889
      %vm1891 = vcmask 1040384
      %v1892 = vsel %vm1891, %v1877, %v1890
      %vm1893 = vcmask 1041408
      %v1894 = vsel %vm1893, %v1892, 0.0
      %1895 = vst [vmem:[%s461] sm:$0xff] %v1894
      %v1896 = vld [vmem:[%s1076] sm:$0xf]
      %v1897 = vld [vmem:[%s1076 + $0x8] sm:$0xf]
      %v1898 = vld [vmem:[%s1076 + $0x10] sm:$0xf]
      %v1899 = vld [vmem:[%s1076 + $0x18] sm:$0xf]
      %v1900 = vld [vmem:[%s5] sm:$0xf]
      %v1901 = vld [vmem:[%s5 + $0x4] sm:$0xf]
      %v1902 = vld [vmem:[%s5 + $0x8] sm:$0xf]
      %v1903 = vld [vmem:[%s5 + $0xc] sm:$0xf]
      %v1904 = vld [vmem:[%s5 + $0x10] sm:$0xf]
      %v1905 = vld [vmem:[%s5 + $0x14] sm:$0xf]
      %v1906 = vld [vmem:[%s5 + $0x18] sm:$0xf]
      %v1907 = vld [vmem:[%s5 + $0x1c] sm:$0xf]
      %v1908 = vld [vmem:[%s5 + $0x20] sm:$0xf]
      %v1909 = vld [vmem:[%s5 + $0x24] sm:$0xf]
      %v1910 = vld [vmem:[%s5 + $0x28] sm:$0xf]
      %v1911 = vld [vmem:[%s5 + $0x2c] sm:$0xf]
      %v1912 = vld [vmem:[%s5 + $0x30] sm:$0xf]
      %v1913 = vld [vmem:[%s5 + $0x34] sm:$0xf]
      %v1914 = vld [vmem:[%s5 + $0x38] sm:$0xf]
      %v1915 = vld [vmem:[%s5 + $0x3c] sm:$0xf]
      %v1920 = vunpack.c.l.b16 %v1896
      %v1921 = vunpack.c.l.b16 %v1897
      %v1922 = vunpack.c.l.b16 %v1898
      %v1923 = vunpack.c.l.b16 %v1899
      %v1924 = vpack.c.b16 %v1921, %v1920
      %v1925 = vpack.c.b16 %v1923, %v1922
      %v1944 = vunpack.c.l.b16 %v1900
      %v1945 = vunpack.c.l.b16 %v1901
      %v1946 = vunpack.c.l.b16 %v1902
      %v1947 = vunpack.c.l.b16 %v1903
      %v1948 = vunpack.c.l.b16 %v1904
      %v1949 = vunpack.c.l.b16 %v1905
      %v1950 = vunpack.c.l.b16 %v1906
      %v1951 = vunpack.c.l.b16 %v1907
      %v1952 = vunpack.c.l.b16 %v1908
      %v1953 = vunpack.c.l.b16 %v1909
      %v1954 = vunpack.c.l.b16 %v1910
      %v1955 = vunpack.c.l.b16 %v1911
      %v1956 = vunpack.c.l.b16 %v1912
      %v1957 = vunpack.c.l.b16 %v1913
      %v1958 = vunpack.c.l.b16 %v1914
      %v1959 = vunpack.c.l.b16 %v1915
      %v1960 = vpack.c.b16 %v1945, %v1944
      %v1961 = vpack.c.b16 %v1947, %v1946
      %v1962 = vpack.c.b16 %v1949, %v1948
      %v1963 = vpack.c.b16 %v1951, %v1950
      %v1964 = vpack.c.b16 %v1953, %v1952
      %v1965 = vpack.c.b16 %v1955, %v1954
      %v1966 = vpack.c.b16 %v1957, %v1956
      %v1967 = vpack.c.b16 %v1959, %v1958
      %1976 = vmatprep.subr.bf16.mxu0 0
      %1977 = vmatpush1.bf16.msra.mxu0 %v1960
      %1978 = vmatprep.subr.bf16.mxu0 0
      %1979 = vmatpush1.bf16.msra.mxu0 %v1961
      %1980 = vmatprep.subr.bf16.mxu0 0
      %1981 = vmatpush1.bf16.msra.mxu0 %v1962
      %1982 = vmatprep.subr.bf16.mxu0 0
      %1983 = vmatpush1.bf16.msra.mxu0 %v1963
      %1984 = vmatprep.subr.bf16.mxu0 0
      %1985 = vmatpush1.bf16.msra.mxu0 %v1964
      %1986 = vmatprep.subr.bf16.mxu0 0
      %1987 = vmatpush1.bf16.msra.mxu0 %v1965
      %1988 = vmatprep.subr.bf16.mxu0 0
      %1989 = vmatpush1.bf16.msra.mxu0 %v1966
      %1990 = vmatprep.subr.bf16.mxu0 0
      %1991 = vmatpush1.bf16.msra.mxu0 %v1967
      %1992 = vmatprep.subr.bf16.mxu0 0
      %1993 = vmatpush1.bf16.msra.mxu0 0
      %1994 = vmatprep.subr.bf16.mxu0 0
      %1995 = vmatpush1.bf16.msra.mxu0 0
      %1996 = vmatprep.subr.bf16.mxu0 0
      %1997 = vmatpush1.bf16.msra.mxu0 0
      %1998 = vmatprep.subr.bf16.mxu0 0
      %1999 = vmatpush1.bf16.msra.mxu0 0
      %2000 = vmatprep.subr.bf16.mxu0 0
      %2001 = vmatpush1.bf16.msra.mxu0 0
      %2002 = vmatprep.subr.bf16.mxu0 0
      %2003 = vmatpush1.bf16.msra.mxu0 0
      %2004 = vmatprep.subr.bf16.mxu0 0
      %2005 = vmatpush1.bf16.msra.mxu0 0
      %2006 = vmatprep.subr.bf16.mxu0 0
      %2007 = vmatpush1.bf16.msra.mxu0 0
      %2008 = vmatprep.mubr.bf16.mxu0 0
      %2009 = vmatmul.mubr.bf16.gmra.mrb[0].mxu0 %v1924
      %v2010 = vpop.f32.mrb[0].mxu0
      %v2011 = vadd.f32 0.0, %v2010
      %v2012 = vpop.f32.mrb[0].mxu0
      %v2013 = vpop.f32.mrb[0].mxu0
      %v2014 = vadd.f32 0.0, %v2013
      %v2015 = vpop.f32.mrb[0].mxu0
      %2016 = vmatprep.mubr.bf16.mxu0 0
      %2017 = vmatmul.mubr.bf16.gmra.mrb[0].mxu0 %v1925
      %v2018 = vpop.f32.mrb[0].mxu0
      %v2019 = vadd.f32 0.0, %v2018
      %v2020 = vpop.f32.mrb[0].mxu0
      %v2021 = vpop.f32.mrb[0].mxu0
      %v2022 = vadd.f32 0.0, %v2021
      %v2023 = vpop.f32.mrb[0].mxu0
      %2024 = vdwg.mxu0
      %2025 = vst [vmem:[%s470] sm:$0xff] %v2011
      %2026 = vst [vmem:[%s470 + $0x8] sm:$0xff] %v2014
      %2027 = vst [vmem:[%s470 + $0x10] sm:$0xff] %v2019
      %2028 = vst [vmem:[%s470 + $0x18] sm:$0xff] %v2022
      %v2029 = vadd.f32 %v2011, %v2014
      %v2030 = vadd.f32 %v2029, %v2019
      %v2031 = vadd.f32 %v2030, %v2022
      %v2032 = vrot.slane %v2031, 4
      %v2033 = vadd.f32 %v2031, %v2032
      %v2034 = vrot.slane %v2033, 2
      %v2035 = vadd.f32 %v2033, %v2034
      %v2036 = vrot.slane %v2035, 1
      %v2037 = vadd.f32 %v2035, %v2036
      %v2038 = vmul.f32 %v2011, %v2011
      %v2039 = vmul.f32 %v2014, %v2014
      %v2040 = vmul.f32 %v2019, %v2019
      %v2041 = vmul.f32 %v2022, %v2022
      %v2042 = vadd.f32 %v2038, %v2039
      %v2043 = vadd.f32 %v2042, %v2040
      %v2044 = vadd.f32 %v2043, %v2041
      %v2045 = vrot.slane %v2044, 4
      %v2046 = vadd.f32 %v2044, %v2045
      %v2047 = vrot.slane %v2046, 2
      %v2048 = vadd.f32 %v2046, %v2047
      %v2049 = vrot.slane %v2048, 1
      %v2050 = vadd.f32 %v2048, %v2049
      %v2051 = vsel %vm1891, %v2037, %v2050
      %v2052 = vsel %vm1893, %v2051, 0.0
      %2053 = vst [vmem:[%s479] sm:$0xff] %v2052
      %s2054 = smul.u32 4, %s26
      %p2055 = scmp.lt.s32.totalorder %s25, 1
      %s2056 = scalar_select %p2055, %s25, 1
      %p2057 = scmp.lt.s32.totalorder %s2054, 7
      %s2058 = scalar_select %p2057, %s2054, 7
      %s2059 = smul.addr %s2056, 8
      %s2060 = sadd.s32 %s2058, %s2059
      %s2061 = smul.addr %s2060, 8
      %s2062 = scalar_lea.vmem %s6, %s2061
      %p2063 = scmp.lt.s32.totalorder %s25, 1
      %s2064 = scalar_select %p2063, %s25, 1
      %p2065 = scmp.lt.s32.totalorder %s26, 1
      %s2066 = scalar_select %p2065, %s26, 1
      %s2067 = smul.addr %s2064, 2
      %s2068 = sadd.s32 %s2066, %s2067
      %s2069 = smul.addr %s2068, 8
      %s2070 = scalar_lea.vmem %s7, %s2069
      %s2071 = smul.u32 4, %s26
      %p2072 = scmp.lt.s32.totalorder %s25, 1
      %s2073 = scalar_select %p2072, %s25, 1
      %p2074 = scmp.lt.s32.totalorder %s2071, 7
      %s2075 = scalar_select %p2074, %s2071, 7
      %s2076 = smul.addr %s2073, 8
      %s2077 = sadd.s32 %s2075, %s2076
      %s2078 = smul.addr %s2077, 8
      %s2079 = scalar_lea.vmem %s8, %s2078
      %p2080 = scmp.lt.s32.totalorder %s25, 1
      %s2081 = scalar_select %p2080, %s25, 1
      %p2082 = scmp.lt.s32.totalorder %s26, 1
      %s2083 = scalar_select %p2082, %s26, 1
      %s2084 = smul.addr %s2081, 2
      %s2085 = sadd.s32 %s2083, %s2084
      %s2086 = smul.addr %s2085, 8
      %s2087 = scalar_lea.vmem %s9, %s2086
      // Predicated region
      $region45: #{basic_block_dubn.4} parent=43 // pred_check
        %p2088 = pneg %p199
      $region46: #{basic_block_dubn.4} parent=43 // pred_check_branch
        %2090 = sbr.rel (%p2088) target = $region48
      $region47: #{basic_block_dubn.4} parent=43 // pred_region
        %s2091 = smul.u32 4, %s26
      $region48: #{basic_block_dubn.4} parent=43 // pred_fallthru
        _
      // Predicated region
      $region49: #{basic_block_dubn.4} parent=43 // pred_check
        %p2092 = pneg %p227
      $region50: #{basic_block_dubn.4} parent=43 // pred_check_branch
        %2094 = sbr.rel (%p2092) target = $region52
      $region51: #{basic_block_dubn.4} parent=43 // pred_region
        _
      $region52: #{basic_block_dubn.4} parent=43 // pred_fallthru
        _
      // Predicated region
      $region53: #{basic_block_dubn.4} parent=43 // pred_check
        %p2095 = pneg %p255
      $region54: #{basic_block_dubn.4} parent=43 // pred_check_branch
        %2097 = sbr.rel (%p2095) target = $region56
      $region55: #{basic_block_dubn.4} parent=43 // pred_region
        %s2098 = smul.u32 4, %s26
      $region56: #{basic_block_dubn.4} parent=43 // pred_fallthru
        _
      // Predicated region
      $region57: #{basic_block_dubn.4} parent=43 // pred_check
        %p2099 = pneg %p283
      $region58: #{basic_block_dubn.4} parent=43 // pred_check_branch
        %2101 = sbr.rel (%p2099) target = $region60
      $region59: #{basic_block_dubn.4} parent=43 // pred_region
        _
      $region60: #{basic_block_dubn.4} parent=43 // pred_fallthru
        _
    $region44: #{basic_block_dubn.4} parent=5 // pred_fallthru
      _
    %p2102 = scmp.le.s32.totalorder 2, %s16
    // Predicated region
    $region61: #{basic_block_dubn.4} parent=5 // pred_check
      %p2103 = pneg %p2102
    $region62: #{basic_block_dubn.4} parent=5 // pred_check_branch
      %2105 = sbr.rel (%p2103) target = $region64
    $region63: #{basic_block_dubn.4} parent=5 // pred_region
      %s2106 = ssub.s32 %s16, 2
      // Predicated region
      $region65: #{basic_block_dubn.4} parent=63 // pred_check
        %p2107 = pneg %p205
      $region66: #{basic_block_dubn.4} parent=63 // pred_check_branch
        %2109 = sbr.rel (%p2107) target = $region68
      $region67: #{basic_block_dubn.4} parent=63 // pred_region
        %s2110 = smul.u32 4, %s28
        %p2111 = scmp.lt.s32.totalorder %s27, 1
        %s2112 = scalar_select %p2111, %s27, 1
        %p2113 = scmp.lt.s32.totalorder %s2110, 7
        %s2114 = scalar_select %p2113, %s2110, 7
        %s2115 = smul.addr %s2112, 8
        %s2116 = sadd.s32 %s2114, %s2115
        %s2117 = smul.addr %s2116, 8
        %s2118 = scalar_lea.vmem %s6, %s2117
      $region68: #{basic_block_dubn.4} parent=63 // pred_fallthru
        _
      // Predicated region
      $region69: #{basic_block_dubn.4} parent=63 // pred_check
        %p2119 = pneg %p233
      $region70: #{basic_block_dubn.4} parent=63 // pred_check_branch
        %2121 = sbr.rel (%p2119) target = $region72
      $region71: #{basic_block_dubn.4} parent=63 // pred_region
        %p2122 = scmp.lt.s32.totalorder %s27, 1
        %s2123 = scalar_select %p2122, %s27, 1
        %p2124 = scmp.lt.s32.totalorder %s28, 1
        %s2125 = scalar_select %p2124, %s28, 1
        %s2126 = smul.addr %s2123, 2
        %s2127 = sadd.s32 %s2125, %s2126
        %s2128 = smul.addr %s2127, 8
        %s2129 = scalar_lea.vmem %s7, %s2128
      $region72: #{basic_block_dubn.4} parent=63 // pred_fallthru
        _
      // Predicated region
      $region73: #{basic_block_dubn.4} parent=63 // pred_check
        %p2130 = pneg %p261
      $region74: #{basic_block_dubn.4} parent=63 // pred_check_branch
        %2132 = sbr.rel (%p2130) target = $region76
      $region75: #{basic_block_dubn.4} parent=63 // pred_region
        %s2133 = smul.u32 4, %s28
        %p2134 = scmp.lt.s32.totalorder %s27, 1
        %s2135 = scalar_select %p2134, %s27, 1
        %p2136 = scmp.lt.s32.totalorder %s2133, 7
        %s2137 = scalar_select %p2136, %s2133, 7
        %s2138 = smul.addr %s2135, 8
        %s2139 = sadd.s32 %s2137, %s2138
        %s2140 = smul.addr %s2139, 8
        %s2141 = scalar_lea.vmem %s8, %s2140
      $region76: #{basic_block_dubn.4} parent=63 // pred_fallthru
        _
      // Predicated region
      $region77: #{basic_block_dubn.4} parent=63 // pred_check
        %p2142 = pneg %p289
      $region78: #{basic_block_dubn.4} parent=63 // pred_check_branch
        %2144 = sbr.rel (%p2142) target = $region80
      $region79: #{basic_block_dubn.4} parent=63 // pred_region
        %p2145 = scmp.lt.s32.totalorder %s27, 1
        %s2146 = scalar_select %p2145, %s27, 1
        %p2147 = scmp.lt.s32.totalorder %s28, 1
        %s2148 = scalar_select %p2147, %s28, 1
        %s2149 = smul.addr %s2146, 2
        %s2150 = sadd.s32 %s2148, %s2149
        %s2151 = smul.addr %s2150, 8
        %s2152 = scalar_lea.vmem %s9, %s2151
      $region80: #{basic_block_dubn.4} parent=63 // pred_fallthru
        _
    $region64: #{basic_block_dubn.4} parent=5 // pred_fallthru
      _
  $region6: #{basic_block_dubn.4} parent=0 // loop_footer
    %s20 = sadd.s32 1, %s16
  $region7: #{basic_block_dubn.4} parent=0 // loop_footer_branch
    %15 = sbr.rel target = $region3
  $region8: #{basic_block_dubn.4} parent=0 // loop_exit
    _

</llo_original>
